<compile_context>
chip_gen: v7x
topology: tpu7x:2x2x1
jax: 0.10.0
libtpu: 0.0.40
codegen_flags: <defaults>
</compile_context>

<pallas_src>
import jax
import jax.numpy as jnp
from jax.experimental import pallas as pl
from jax.experimental.pallas import tpu as pltpu


def _tensorcores_per_chip() -> int:
    """Best-effort TensorCores-per-chip query (v7x: 2, v5e/v6e: 1)."""
    try:
        info = pltpu.get_tpu_info()
        for attr in ("num_cores", "core_count", "num_tensorcores",
                     "tensorcores_per_chip"):
            n = getattr(info, attr, None)
            if isinstance(n, int) and not isinstance(n, bool) and n > 0:
                return n
    except Exception:
        pass
    try:
        kind = jax.devices()[0].device_kind.lower()
        if "v7" in kind or "7x" in kind:
            return 2
    except Exception:
        pass
    return 1


def _se_kernel(s_ref, w1_ref, b1_ref, x_ref, w2_ref, o_ref):
    # s_ref  : [1, C_se]        f32       squeezed excitation input (x378)
    # w1_ref : [C_mid, C_se]    bf16      conv2d116 weight
    # b1_ref : [C_mid, 1]       f32       conv2d116 bias (column)
    # x_ref  : [C_mid, HW]      f32/bf16  main feature map (x375), channel-major
    # w2_ref : [BLK_CO, C_mid]  bf16      conv2d117 weight block
    # o_ref  : [BLK_CO, HW]     f32/bf16  output block
    #
    # gate[c] = sigmoid( sum_k w1[c,k] * s[k] + b1[c] )   -> column [C_mid, 1]
    w1 = w1_ref[...].astype(jnp.float32)          # keep the reduce in f32
    s = s_ref[...].astype(jnp.float32)
    logits = jnp.sum(w1 * s, axis=1, keepdims=True) + b1_ref[...]
    gate = jax.nn.sigmoid(logits)                 # [C_mid, 1] f32 (EUP)
    gated = (gate * x_ref[...].astype(jnp.float32)).astype(jnp.bfloat16)
    # [BLK_CO, C_mid] @ [C_mid, HW] -> [BLK_CO, HW], f32 accumulation on MXU
    o_ref[...] = jnp.dot(w2_ref[...], gated,
                         preferred_element_type=jnp.float32).astype(o_ref.dtype)


def prepare_se_params(w1, b1, w2):
    """One-time (model-load) weight preprocessing: reshape + dtype cast."""
    C_mid, C_se = w1.shape[0], w1.shape[1]
    C_out = w2.shape[0]
    w1_m = w1.reshape(C_mid, C_se).astype(jnp.bfloat16)    # HBM-read halved; gate math stays f32 in-kernel
    b1_col = b1.reshape(C_mid, 1).astype(jnp.float32)      # tiny, keep f32
    w2_m = w2.reshape(C_out, C_mid).astype(jnp.bfloat16)   # large weight -> bf16 (MXU native)
    return w1_m, b1_col, w2_m


def se_block(x378, x375, w1_m, b1_col, w2_m, *, out_dtype=jnp.float32, n_blk=None):
    """
    x378  : [N, C_se, 1, 1]   (N must be 1, as in the reference module)
    x375  : [N, C_mid, H, W]  f32 (or bf16 if the producer naturally emits it)
    w1_m  : [C_mid, C_se]     bf16  (from prepare_se_params)
    b1_col: [C_mid, 1]        f32
    w2_m  : [C_out, C_mid]    bf16
    returns [N, C_out, H, W]  out_dtype (f32 default = module semantics; use
                              bf16 when the consumer conv runs bf16)
    """
    N, C_se = x378.shape[0], x378.shape[1]
    _, C_mid, H, W = x375.shape
    C_out = w2_m.shape[0]
    assert N == 1
    HW = H * W

    s_row = x378.reshape(1, C_se).astype(jnp.float32)   # free reshape, no transpose
    x_cm = x375.reshape(C_mid, HW)                       # channel-major, free reshape

    if n_blk is None:
        # Split C_out across TensorCores only when the chip actually has more
        # than one (v7x).  On single-TC v5e/v6e the grid is a sequential loop,
        # so an extra step is pure overhead.
        n_blk = _tensorcores_per_chip()
    if C_out % n_blk != 0 or (C_out // n_blk) % 8 != 0:
        n_blk = 1
    blk_co = C_out // n_blk

    out_itemsize = jnp.dtype(out_dtype).itemsize
    # Resident operands (constant index_map) are fetched once per block/core.
    shared_bytes = (x_cm.size * x_cm.dtype.itemsize
                    + w1_m.size * w1_m.dtype.itemsize
                    + b1_col.size * 4 + s_row.size * 4)
    cost = pl.CostEstimate(
        flops=2 * C_out * C_mid * HW + n_blk * (2 * C_mid * C_se + 2 * C_mid * HW),
        transcendentals=n_blk * C_mid,
        bytes_accessed=(n_blk * shared_bytes
                        + w2_m.size * w2_m.dtype.itemsize
                        + C_out * HW * out_itemsize),
    )

    out_cm = pl.pallas_call(
        _se_kernel,
        out_shape=jax.ShapeDtypeStruct((C_out, HW), out_dtype),
        grid_spec=pltpu.PrefetchScalarGridSpec(
            num_scalar_prefetch=0,
            grid=(n_blk,),
            in_specs=[
                pl.BlockSpec((1, C_se), lambda i: (0, 0)),        # s  (resident)
                pl.BlockSpec((C_mid, C_se), lambda i: (0, 0)),    # w1 (resident)
                pl.BlockSpec((C_mid, 1), lambda i: (0, 0)),       # b1 (resident)
                pl.BlockSpec((C_mid, HW), lambda i: (0, 0)),      # x  (resident)
                pl.BlockSpec((blk_co, C_mid), lambda i: (i, 0)),  # w2 block
            ],
            out_specs=pl.BlockSpec((blk_co, HW), lambda i: (i, 0)),
        ),
        compiler_params=pltpu.CompilerParams(
            dimension_semantics=("parallel",)),
        cost_estimate=cost,
    )(s_row, w1_m, b1_col, x_cm, w2_m)

    return out_cm.reshape(N, C_out, H, W)   # free reshape, no transpose


def _reference(x378, x375, w1, b1, w2):
    # Pure-JAX f32 reference of the PyTorch forward (1x1 convs as einsums, NCHW).
    g = jnp.einsum('oc,nchw->nohw', w1.reshape(w1.shape[0], w1.shape[1]),
                   x378) + b1.reshape(1, -1, 1, 1)
    g = jax.nn.sigmoid(g)
    y = g * x375
    out = jnp.einsum('oc,nchw->nohw', w2.reshape(w2.shape[0], w2.shape[1]), y)
    return out


if __name__ == "__main__":
    key = jax.random.PRNGKey(0)
    k1, k2, k3, k4, k5 = jax.random.split(key, 5)

    # Shapes from the module: conv2d116: 56->1344 (1x1, bias), conv2d117: 1344->224 (1x1, no bias)
    N, C_se, C_mid, C_out, H, W = 1, 56, 1344, 224, 14, 14

    x375 = jax.random.normal(k1, (N, C_mid, H, W), dtype=jnp.float32)
    x378 = jax.random.normal(k2, (N, C_se, 1, 1), dtype=jnp.float32)

    # Deterministic parameter init (synthetic; not a checkpoint load).
    w1 = jax.random.normal(k3, (C_mid, C_se, 1, 1), dtype=jnp.float32) * (1.0 / C_se) ** 0.5
    b1 = jax.random.normal(k4, (C_mid,), dtype=jnp.float32) * 0.01
    w2 = jax.random.normal(k5, (C_out, C_mid, 1, 1), dtype=jnp.float32) * (1.0 / C_mid) ** 0.5

    # Weight preprocessing hoisted out of the per-call path (done once).
    params = prepare_se_params(w1, b1, w2)

    se_fn = jax.jit(se_block)   # out_dtype defaults to f32 (module semantics)
    out = jax.block_until_ready(se_fn(x378, x375, *params))

    ref = jax.block_until_ready(_reference(x378, x375, w1, b1, w2))
    assert out.shape == (N, C_out, H, W), out.shape
    max_err = float(jnp.max(jnp.abs(out - ref)))
    # bf16 operands on the big matmul + bf16 w1 storage (f32 accumulation everywhere)
    # -> small quantization error vs the f32 reference.
    assert jnp.allclose(out, ref, atol=2e-2, rtol=2e-2), f"mismatch vs reference, max abs err {max_err}"

    print("KERNEL_OK")
</pallas_src>

<mosaic_0001>
module attributes {stable_mosaic.version = 11 : i64} {
  func.func @_se_kernel(%arg0: i32, %arg1: memref<1x56xf32, #tpu.memory_space<vmem>>, %arg2: memref<1344x56xbf16, #tpu.memory_space<vmem>>, %arg3: memref<1344x1xf32, #tpu.memory_space<vmem>>, %arg4: memref<1344x196xf32, #tpu.memory_space<vmem>>, %arg5: memref<224x1344xbf16, #tpu.memory_space<vmem>>, %arg6: memref<224x196xf32, #tpu.memory_space<vmem>>) attributes {dimension_semantics = [#tpu.dimension_semantics<parallel>], iteration_bounds = array<i64: 1>, scalar_prefetch = 0 : i64, scratch_operands = 0 : i64, tpu.core_type = #tpu.core_type<tc>, window_params = [{pipeline_mode = #tpu.pipeline_mode<synchronous>, transform_indices = @transform_0, window_bounds = array<i64: 1, 56>}, {pipeline_mode = #tpu.pipeline_mode<synchronous>, transform_indices = @transform_1, window_bounds = array<i64: 1344, 56>}, {pipeline_mode = #tpu.pipeline_mode<synchronous>, transform_indices = @transform_2, window_bounds = array<i64: 1344, 1>}, {pipeline_mode = #tpu.pipeline_mode<synchronous>, transform_indices = @transform_3, window_bounds = array<i64: 1344, 196>}, {transform_indices = @transform_4, window_bounds = array<i64: 224, 1344>}, {transform_indices = @transform_5, window_bounds = array<i64: 224, 196>}]} {
    %c0 = arith.constant 0 : index
    %c0_0 = arith.constant 0 : index
    %0 = vector.load %arg2[%c0, %c0_0] : memref<1344x56xbf16, #tpu.memory_space<vmem>>, vector<1344x56xbf16>
    %1 = arith.extf %0 : vector<1344x56xbf16> to vector<1344x56xf32>
    %c0_1 = arith.constant 0 : index
    %c0_2 = arith.constant 0 : index
    %2 = vector.load %arg1[%c0_1, %c0_2] : memref<1x56xf32, #tpu.memory_space<vmem>>, vector<1x56xf32>
    %3 = vector.broadcast %2 : vector<1x56xf32> to vector<1344x56xf32>
    %4 = arith.mulf %1, %3 : vector<1344x56xf32>
    %cst = arith.constant dense<0.000000e+00> : vector<1344xf32>
    %5 = vector.multi_reduction <add>, %4, %cst [1] : vector<1344x56xf32> to vector<1344xf32>
    %6 = vector.shape_cast %5 : vector<1344xf32> to vector<1344x1xf32>
    %c0_3 = arith.constant 0 : index
    %c0_4 = arith.constant 0 : index
    %7 = vector.load %arg3[%c0_3, %c0_4] : memref<1344x1xf32, #tpu.memory_space<vmem>>, vector<1344x1xf32>
    %8 = arith.addf %6, %7 : vector<1344x1xf32>
    %9 = arith.negf %8 : vector<1344x1xf32>
    %10 = math.exp %9 : vector<1344x1xf32>
    %cst_5 = arith.constant 1.000000e+00 : f32
    %11 = vector.broadcast %cst_5 : f32 to vector<1344x1xf32>
    %12 = arith.addf %11, %10 : vector<1344x1xf32>
    %13 = arith.divf %11, %12 : vector<1344x1xf32>
    %c0_6 = arith.constant 0 : index
    %c0_7 = arith.constant 0 : index
    %14 = vector.load %arg4[%c0_6, %c0_7] : memref<1344x196xf32, #tpu.memory_space<vmem>>, vector<1344x196xf32>
    %15 = vector.broadcast %13 : vector<1344x1xf32> to vector<1344x196xf32>
    %16 = arith.mulf %15, %14 : vector<1344x196xf32>
    %17 = arith.truncf %16 : vector<1344x196xf32> to vector<1344x196xbf16>
    %c0_8 = arith.constant 0 : index
    %c0_9 = arith.constant 0 : index
    %18 = vector.load %arg5[%c0_8, %c0_9] : memref<224x1344xbf16, #tpu.memory_space<vmem>>, vector<224x1344xbf16>
    %cst_10 = arith.constant dense<0.000000e+00> : vector<224x196xf32>
    %19 = tpu.matmul %18, %17, %cst_10 {dimension_numbers = #tpu.dot_dimension_numbers<[1], [0], [0], [1], [0, 0, 1, 1], [], []>} : vector<224x1344xbf16>, vector<1344x196xbf16>, vector<224x196xf32> -> vector<224x196xf32>
    %c0_11 = arith.constant 0 : index
    %c0_12 = arith.constant 0 : index
    %20 = vector.load %arg6[%c0_11, %c0_12] : memref<224x196xf32, #tpu.memory_space<vmem>>, vector<224x196xf32>
    tpu.vector_store %arg6[%c0_11, %c0_12], %19 {strides = array<i32>} : memref<224x196xf32, #tpu.memory_space<vmem>>, vector<224x196xf32>,
    return
  }
  func.func @transform_0(%arg0: i32) -> (i32, i32) {
    %c0_i32 = arith.constant 0 : i32
    %c0_i32_0 = arith.constant 0 : i32
    %c0_i32_1 = arith.constant 0 : i32
    return %c0_i32, %c0_i32_0 : i32, i32
  }
  func.func @transform_1(%arg0: i32) -> (i32, i32) {
    %c0_i32 = arith.constant 0 : i32
    %c0_i32_0 = arith.constant 0 : i32
    %c0_i32_1 = arith.constant 0 : i32
    return %c0_i32, %c0_i32_0 : i32, i32
  }
  func.func @transform_2(%arg0: i32) -> (i32, i32) {
    %c0_i32 = arith.constant 0 : i32
    %c0_i32_0 = arith.constant 0 : i32
    %c0_i32_1 = arith.constant 0 : i32
    return %c0_i32, %c0_i32_0 : i32, i32
  }
  func.func @transform_3(%arg0: i32) -> (i32, i32) {
    %c0_i32 = arith.constant 0 : i32
    %c0_i32_0 = arith.constant 0 : i32
    %c0_i32_1 = arith.constant 0 : i32
    return %c0_i32, %c0_i32_0 : i32, i32
  }
  func.func @transform_4(%arg0: i32) -> (i32, i32) {
    %c0_i32 = arith.constant 0 : i32
    %c0_i32_0 = arith.constant 0 : i32
    return %arg0, %c0_i32 : i32, i32
  }
  func.func @transform_5(%arg0: i32) -> (i32, i32) {
    %c0_i32 = arith.constant 0 : i32
    %c0_i32_0 = arith.constant 0 : i32
    return %arg0, %c0_i32 : i32, i32
  }
}

</mosaic_0001>

<llo_original>
// kernel: se_block.1
$region0: #{se_block.1}
  #allocation0 [shape = 'u32[]', space=smem, size = 0x4, offset = 0x4, fixed_abs, tag = 'smem constant byte address 0x4 - core index']
  #allocation1 [shape = 'u32[144,128]{1,0:T(1,128)}', space=vmem, size = 0x12000, scoped, tag = 'internal scratch']
  %s0 = inlined_call_operand.vmem [shape: f32[1,56], index: 0, kind: input, shape index: {}]
  %s1 = inlined_call_operand.vmem [shape: bf16[1344,56], index: 1, kind: input, shape index: {}]
  %s2 = inlined_call_operand.vmem [shape: f32[1344,1], index: 2, kind: input, shape index: {}]
  %s3 = inlined_call_operand.vmem [shape: f32[1344,196], index: 3, kind: input, shape index: {}]
  %s4 = inlined_call_operand.vmem [shape: bf16[224,1344], index: 4, kind: input, shape index: {}]
  %s5 = inlined_call_operand.vmem [shape: f32[224,196], index: 5, kind: output, shape index: {}]
  %s6 = sld [smem:[#allocation0]]
  $region30: #{se_block.1} parent=0
    _
  %s8 = ssub.s32 1, %s6
  %s9 = scalar_select 0, %s8, %s6
  // Predicated region
  $region2: #{se_block.1} parent=0 // pred_check
    _
  $region3: #{se_block.1} parent=0 // pred_check_branch
    %11 = sbr.rel (0) target = $region5
  $region4: #{se_block.1} parent=0 // pred_region
    _
  $region5: #{se_block.1} parent=0 // pred_fallthru
    _
  // Predicated region
  $region6: #{se_block.1} parent=0 // pred_check
    _
  $region7: #{se_block.1} parent=0 // pred_check_branch
    %13 = sbr.rel (0) target = $region9
  $region8: #{se_block.1} parent=0 // pred_region
    _
  $region9: #{se_block.1} parent=0 // pred_fallthru
    _
  // Predicated region
  $region10: #{se_block.1} parent=0 // pred_check
    _
  $region11: #{se_block.1} parent=0 // pred_check_branch
    %15 = sbr.rel (0) target = $region13
  $region12: #{se_block.1} parent=0 // pred_region
    _
  $region13: #{se_block.1} parent=0 // pred_fallthru
    _
  // Predicated region
  $region14: #{se_block.1} parent=0 // pred_check
    _
  $region15: #{se_block.1} parent=0 // pred_check_branch
    %17 = sbr.rel (0) target = $region17
  $region16: #{se_block.1} parent=0 // pred_region
    _
  $region17: #{se_block.1} parent=0 // pred_fallthru
    _
  // Predicated region
  $region18: #{se_block.1} parent=0 // pred_check
    _
  $region19: #{se_block.1} parent=0 // pred_check_branch
    %19 = sbr.rel (0) target = $region21
  $region20: #{se_block.1} parent=0 // pred_region
    _
  $region21: #{se_block.1} parent=0 // pred_fallthru
    _
  %v21 = vld [vmem:[%s1] sm:$0xf]
  %v22 = vld [vmem:[%s1 + $0x4] sm:$0xf]
  %v23 = vld [vmem:[%s1 + $0x8] sm:$0xf]
  %v24 = vld [vmem:[%s1 + $0xc] sm:$0xf]
  %v25 = vld [vmem:[%s1 + $0x10] sm:$0xf]
  %v26 = vld [vmem:[%s1 + $0x14] sm:$0xf]
  %v27 = vld [vmem:[%s1 + $0x18] sm:$0xf]
  %v28 = vld [vmem:[%s1 + $0x1c] sm:$0xf]
  %v29 = vld [vmem:[%s1 + $0x20] sm:$0xf]
  %v30 = vld [vmem:[%s1 + $0x24] sm:$0xf]
  %v31 = vld [vmem:[%s1 + $0x28] sm:$0xf]
  %v32 = vld [vmem:[%s1 + $0x2c] sm:$0xf]
  %v33 = vld [vmem:[%s1 + $0x30] sm:$0xf]
  %v34 = vld [vmem:[%s1 + $0x34] sm:$0xf]
  %v35 = vld [vmem:[%s1 + $0x38] sm:$0xf]
  %v36 = vld [vmem:[%s1 + $0x3c] sm:$0xf]
  %v37 = vld [vmem:[%s1 + $0x40] sm:$0xf]
  %v38 = vld [vmem:[%s1 + $0x44] sm:$0xf]
  %v39 = vld [vmem:[%s1 + $0x48] sm:$0xf]
  %v40 = vld [vmem:[%s1 + $0x4c] sm:$0xf]
  %v41 = vld [vmem:[%s1 + $0x50] sm:$0xf]
  %v42 = vld [vmem:[%s1 + $0x54] sm:$0xf]
  %v43 = vld [vmem:[%s1 + $0x58] sm:$0xf]
  %v44 = vld [vmem:[%s1 + $0x5c] sm:$0xf]
  %v45 = vld [vmem:[%s1 + $0x60] sm:$0xf]
  %v46 = vld [vmem:[%s1 + $0x64] sm:$0xf]
  %v47 = vld [vmem:[%s1 + $0x68] sm:$0xf]
  %v48 = vld [vmem:[%s1 + $0x6c] sm:$0xf]
  %v49 = vld [vmem:[%s1 + $0x70] sm:$0xf]
  %v50 = vld [vmem:[%s1 + $0x74] sm:$0xf]
  %v51 = vld [vmem:[%s1 + $0x78] sm:$0xf]
  %v52 = vld [vmem:[%s1 + $0x7c] sm:$0xf]
  %v53 = vld [vmem:[%s1 + $0x80] sm:$0xf]
  %v54 = vld [vmem:[%s1 + $0x84] sm:$0xf]
  %v55 = vld [vmem:[%s1 + $0x88] sm:$0xf]
  %v56 = vld [vmem:[%s1 + $0x8c] sm:$0xf]
  %v57 = vld [vmem:[%s1 + $0x90] sm:$0xf]
  %v58 = vld [vmem:[%s1 + $0x94] sm:$0xf]
  %v59 = vld [vmem:[%s1 + $0x98] sm:$0xf]
  %v60 = vld [vmem:[%s1 + $0x9c] sm:$0xf]
  %v61 = vld [vmem:[%s1 + $0xa0] sm:$0xf]
  %v62 = vld [vmem:[%s1 + $0xa4] sm:$0xf]
  %v63 = vld [vmem:[%s1 + $0xa8] sm:$0xf]
  %v64 = vld [vmem:[%s1 + $0xac] sm:$0xf]
  %v65 = vld [vmem:[%s1 + $0xb0] sm:$0xf]
  %v66 = vld [vmem:[%s1 + $0xb4] sm:$0xf]
  %v67 = vld [vmem:[%s1 + $0xb8] sm:$0xf]
  %v68 = vld [vmem:[%s1 + $0xbc] sm:$0xf]
  %v69 = vld [vmem:[%s1 + $0xc0] sm:$0xf]
  %v70 = vld [vmem:[%s1 + $0xc4] sm:$0xf]
  %v71 = vld [vmem:[%s1 + $0xc8] sm:$0xf]
  %v72 = vld [vmem:[%s1 + $0xcc] sm:$0xf]
  %v73 = vld [vmem:[%s1 + $0xd0] sm:$0xf]
  %v74 = vld [vmem:[%s1 + $0xd4] sm:$0xf]
  %v75 = vld [vmem:[%s1 + $0xd8] sm:$0xf]
  %v76 = vld [vmem:[%s1 + $0xdc] sm:$0xf]
  %v77 = vld [vmem:[%s1 + $0xe0] sm:$0xf]
  %v78 = vld [vmem:[%s1 + $0xe4] sm:$0xf]
  %v79 = vld [vmem:[%s1 + $0xe8] sm:$0xf]
  %v80 = vld [vmem:[%s1 + $0xec] sm:$0xf]
  %v81 = vld [vmem:[%s1 + $0xf0] sm:$0xf]
  %v82 = vld [vmem:[%s1 + $0xf4] sm:$0xf]
  %v83 = vld [vmem:[%s1 + $0xf8] sm:$0xf]
  %v84 = vld [vmem:[%s1 + $0xfc] sm:$0xf]
  %v85 = vld [vmem:[%s1 + $0x100] sm:$0xf]
  %v86 = vld [vmem:[%s1 + $0x104] sm:$0xf]
  %v87 = vld [vmem:[%s1 + $0x108] sm:$0xf]
  %v88 = vld [vmem:[%s1 + $0x10c] sm:$0xf]
  %v89 = vld [vmem:[%s1 + $0x110] sm:$0xf]
  %v90 = vld [vmem:[%s1 + $0x114] sm:$0xf]
  %v91 = vld [vmem:[%s1 + $0x118] sm:$0xf]
  %v92 = vld [vmem:[%s1 + $0x11c] sm:$0xf]
  %v93 = vld [vmem:[%s1 + $0x120] sm:$0xf]
  %v94 = vld [vmem:[%s1 + $0x124] sm:$0xf]
  %v95 = vld [vmem:[%s1 + $0x128] sm:$0xf]
  %v96 = vld [vmem:[%s1 + $0x12c] sm:$0xf]
  %v97 = vld [vmem:[%s1 + $0x130] sm:$0xf]
  %v98 = vld [vmem:[%s1 + $0x134] sm:$0xf]
  %v99 = vld [vmem:[%s1 + $0x138] sm:$0xf]
  %v100 = vld [vmem:[%s1 + $0x13c] sm:$0xf]
  %v101 = vld [vmem:[%s1 + $0x140] sm:$0xf]
  %v102 = vld [vmem:[%s1 + $0x144] sm:$0xf]
  %v103 = vld [vmem:[%s1 + $0x148] sm:$0xf]
  %v104 = vld [vmem:[%s1 + $0x14c] sm:$0xf]
  %v105 = vld [vmem:[%s1 + $0x150] sm:$0xf]
  %v106 = vld [vmem:[%s1 + $0x154] sm:$0xf]
  %v107 = vld [vmem:[%s1 + $0x158] sm:$0xf]
  %v108 = vld [vmem:[%s1 + $0x15c] sm:$0xf]
  %v109 = vld [vmem:[%s1 + $0x160] sm:$0xf]
  %v110 = vld [vmem:[%s1 + $0x164] sm:$0xf]
  %v111 = vld [vmem:[%s1 + $0x168] sm:$0xf]
  %v112 = vld [vmem:[%s1 + $0x16c] sm:$0xf]
  %v113 = vld [vmem:[%s1 + $0x170] sm:$0xf]
  %v114 = vld [vmem:[%s1 + $0x174] sm:$0xf]
  %v115 = vld [vmem:[%s1 + $0x178] sm:$0xf]
  %v116 = vld [vmem:[%s1 + $0x17c] sm:$0xf]
  %v117 = vld [vmem:[%s1 + $0x180] sm:$0xf]
  %v118 = vld [vmem:[%s1 + $0x184] sm:$0xf]
  %v119 = vld [vmem:[%s1 + $0x188] sm:$0xf]
  %v120 = vld [vmem:[%s1 + $0x18c] sm:$0xf]
  %v121 = vld [vmem:[%s1 + $0x190] sm:$0xf]
  %v122 = vld [vmem:[%s1 + $0x194] sm:$0xf]
  %v123 = vld [vmem:[%s1 + $0x198] sm:$0xf]
  %v124 = vld [vmem:[%s1 + $0x19c] sm:$0xf]
  %v125 = vld [vmem:[%s1 + $0x1a0] sm:$0xf]
  %v126 = vld [vmem:[%s1 + $0x1a4] sm:$0xf]
  %v127 = vld [vmem:[%s1 + $0x1a8] sm:$0xf]
  %v128 = vld [vmem:[%s1 + $0x1ac] sm:$0xf]
  %v129 = vld [vmem:[%s1 + $0x1b0] sm:$0xf]
  %v130 = vld [vmem:[%s1 + $0x1b4] sm:$0xf]
  %v131 = vld [vmem:[%s1 + $0x1b8] sm:$0xf]
  %v132 = vld [vmem:[%s1 + $0x1bc] sm:$0xf]
  %v133 = vld [vmem:[%s1 + $0x1c0] sm:$0xf]
  %v134 = vld [vmem:[%s1 + $0x1c4] sm:$0xf]
  %v135 = vld [vmem:[%s1 + $0x1c8] sm:$0xf]
  %v136 = vld [vmem:[%s1 + $0x1cc] sm:$0xf]
  %v137 = vld [vmem:[%s1 + $0x1d0] sm:$0xf]
  %v138 = vld [vmem:[%s1 + $0x1d4] sm:$0xf]
  %v139 = vld [vmem:[%s1 + $0x1d8] sm:$0xf]
  %v140 = vld [vmem:[%s1 + $0x1dc] sm:$0xf]
  %v141 = vld [vmem:[%s1 + $0x1e0] sm:$0xf]
  %v142 = vld [vmem:[%s1 + $0x1e4] sm:$0xf]
  %v143 = vld [vmem:[%s1 + $0x1e8] sm:$0xf]
  %v144 = vld [vmem:[%s1 + $0x1ec] sm:$0xf]
  %v145 = vld [vmem:[%s1 + $0x1f0] sm:$0xf]
  %v146 = vld [vmem:[%s1 + $0x1f4] sm:$0xf]
  %v147 = vld [vmem:[%s1 + $0x1f8] sm:$0xf]
  %v148 = vld [vmem:[%s1 + $0x1fc] sm:$0xf]
  %v149 = vld [vmem:[%s1 + $0x200] sm:$0xf]
  %v150 = vld [vmem:[%s1 + $0x204] sm:$0xf]
  %v151 = vld [vmem:[%s1 + $0x208] sm:$0xf]
  %v152 = vld [vmem:[%s1 + $0x20c] sm:$0xf]
  %v153 = vld [vmem:[%s1 + $0x210] sm:$0xf]
  %v154 = vld [vmem:[%s1 + $0x214] sm:$0xf]
  %v155 = vld [vmem:[%s1 + $0x218] sm:$0xf]
  %v156 = vld [vmem:[%s1 + $0x21c] sm:$0xf]
  %v157 = vld [vmem:[%s1 + $0x220] sm:$0xf]
  %v158 = vld [vmem:[%s1 + $0x224] sm:$0xf]
  %v159 = vld [vmem:[%s1 + $0x228] sm:$0xf]
  %v160 = vld [vmem:[%s1 + $0x22c] sm:$0xf]
  %v161 = vld [vmem:[%s1 + $0x230] sm:$0xf]
  %v162 = vld [vmem:[%s1 + $0x234] sm:$0xf]
  %v163 = vld [vmem:[%s1 + $0x238] sm:$0xf]
  %v164 = vld [vmem:[%s1 + $0x23c] sm:$0xf]
  %v165 = vld [vmem:[%s1 + $0x240] sm:$0xf]
  %v166 = vld [vmem:[%s1 + $0x244] sm:$0xf]
  %v167 = vld [vmem:[%s1 + $0x248] sm:$0xf]
  %v168 = vld [vmem:[%s1 + $0x24c] sm:$0xf]
  %v169 = vld [vmem:[%s1 + $0x250] sm:$0xf]
  %v170 = vld [vmem:[%s1 + $0x254] sm:$0xf]
  %v171 = vld [vmem:[%s1 + $0x258] sm:$0xf]
  %v172 = vld [vmem:[%s1 + $0x25c] sm:$0xf]
  %v173 = vld [vmem:[%s1 + $0x260] sm:$0xf]
  %v174 = vld [vmem:[%s1 + $0x264] sm:$0xf]
  %v175 = vld [vmem:[%s1 + $0x268] sm:$0xf]
  %v176 = vld [vmem:[%s1 + $0x26c] sm:$0xf]
  %v177 = vld [vmem:[%s1 + $0x270] sm:$0xf]
  %v178 = vld [vmem:[%s1 + $0x274] sm:$0xf]
  %v179 = vld [vmem:[%s1 + $0x278] sm:$0xf]
  %v180 = vld [vmem:[%s1 + $0x27c] sm:$0xf]
  %v181 = vld [vmem:[%s1 + $0x280] sm:$0xf]
  %v182 = vld [vmem:[%s1 + $0x284] sm:$0xf]
  %v183 = vld [vmem:[%s1 + $0x288] sm:$0xf]
  %v184 = vld [vmem:[%s1 + $0x28c] sm:$0xf]
  %v185 = vld [vmem:[%s1 + $0x290] sm:$0xf]
  %v186 = vld [vmem:[%s1 + $0x294] sm:$0xf]
  %v187 = vld [vmem:[%s1 + $0x298] sm:$0xf]
  %v188 = vld [vmem:[%s1 + $0x29c] sm:$0xf]
  %v189 = vunpack.c.l.bf16 %v21
  %v190 = vunpack.c.l.bf16 %v22
  %v191 = vunpack.c.l.bf16 %v23
  %v192 = vunpack.c.l.bf16 %v24
  %v193 = vunpack.c.l.bf16 %v25
  %v194 = vunpack.c.l.bf16 %v26
  %v195 = vunpack.c.l.bf16 %v27
  %v196 = vunpack.c.l.bf16 %v28
  %v197 = vunpack.c.l.bf16 %v29
  %v198 = vunpack.c.l.bf16 %v30
  %v199 = vunpack.c.l.bf16 %v31
  %v200 = vunpack.c.l.bf16 %v32
  %v201 = vunpack.c.l.bf16 %v33
  %v202 = vunpack.c.l.bf16 %v34
  %v203 = vunpack.c.l.bf16 %v35
  %v204 = vunpack.c.l.bf16 %v36
  %v205 = vunpack.c.l.bf16 %v37
  %v206 = vunpack.c.l.bf16 %v38
  %v207 = vunpack.c.l.bf16 %v39
  %v208 = vunpack.c.l.bf16 %v40
  %v209 = vunpack.c.l.bf16 %v41
  %v210 = vunpack.c.l.bf16 %v42
  %v211 = vunpack.c.l.bf16 %v43
  %v212 = vunpack.c.l.bf16 %v44
  %v213 = vunpack.c.l.bf16 %v45
  %v214 = vunpack.c.l.bf16 %v46
  %v215 = vunpack.c.l.bf16 %v47
  %v216 = vunpack.c.l.bf16 %v48
  %v217 = vunpack.c.l.bf16 %v49
  %v218 = vunpack.c.l.bf16 %v50
  %v219 = vunpack.c.l.bf16 %v51
  %v220 = vunpack.c.l.bf16 %v52
  %v221 = vunpack.c.l.bf16 %v53
  %v222 = vunpack.c.l.bf16 %v54
  %v223 = vunpack.c.l.bf16 %v55
  %v224 = vunpack.c.l.bf16 %v56
  %v225 = vunpack.c.l.bf16 %v57
  %v226 = vunpack.c.l.bf16 %v58
  %v227 = vunpack.c.l.bf16 %v59
  %v228 = vunpack.c.l.bf16 %v60
  %v229 = vunpack.c.l.bf16 %v61
  %v230 = vunpack.c.l.bf16 %v62
  %v231 = vunpack.c.l.bf16 %v63
  %v232 = vunpack.c.l.bf16 %v64
  %v233 = vunpack.c.l.bf16 %v65
  %v234 = vunpack.c.l.bf16 %v66
  %v235 = vunpack.c.l.bf16 %v67
  %v236 = vunpack.c.l.bf16 %v68
  %v237 = vunpack.c.l.bf16 %v69
  %v238 = vunpack.c.l.bf16 %v70
  %v239 = vunpack.c.l.bf16 %v71
  %v240 = vunpack.c.l.bf16 %v72
  %v241 = vunpack.c.l.bf16 %v73
  %v242 = vunpack.c.l.bf16 %v74
  %v243 = vunpack.c.l.bf16 %v75
  %v244 = vunpack.c.l.bf16 %v76
  %v245 = vunpack.c.l.bf16 %v77
  %v246 = vunpack.c.l.bf16 %v78
  %v247 = vunpack.c.l.bf16 %v79
  %v248 = vunpack.c.l.bf16 %v80
  %v249 = vunpack.c.l.bf16 %v81
  %v250 = vunpack.c.l.bf16 %v82
  %v251 = vunpack.c.l.bf16 %v83
  %v252 = vunpack.c.l.bf16 %v84
  %v253 = vunpack.c.l.bf16 %v85
  %v254 = vunpack.c.l.bf16 %v86
  %v255 = vunpack.c.l.bf16 %v87
  %v256 = vunpack.c.l.bf16 %v88
  %v257 = vunpack.c.l.bf16 %v89
  %v258 = vunpack.c.l.bf16 %v90
  %v259 = vunpack.c.l.bf16 %v91
  %v260 = vunpack.c.l.bf16 %v92
  %v261 = vunpack.c.l.bf16 %v93
  %v262 = vunpack.c.l.bf16 %v94
  %v263 = vunpack.c.l.bf16 %v95
  %v264 = vunpack.c.l.bf16 %v96
  %v265 = vunpack.c.l.bf16 %v97
  %v266 = vunpack.c.l.bf16 %v98
  %v267 = vunpack.c.l.bf16 %v99
  %v268 = vunpack.c.l.bf16 %v100
  %v269 = vunpack.c.l.bf16 %v101
  %v270 = vunpack.c.l.bf16 %v102
  %v271 = vunpack.c.l.bf16 %v103
  %v272 = vunpack.c.l.bf16 %v104
  %v273 = vunpack.c.l.bf16 %v105
  %v274 = vunpack.c.l.bf16 %v106
  %v275 = vunpack.c.l.bf16 %v107
  %v276 = vunpack.c.l.bf16 %v108
  %v277 = vunpack.c.l.bf16 %v109
  %v278 = vunpack.c.l.bf16 %v110
  %v279 = vunpack.c.l.bf16 %v111
  %v280 = vunpack.c.l.bf16 %v112
  %v281 = vunpack.c.l.bf16 %v113
  %v282 = vunpack.c.l.bf16 %v114
  %v283 = vunpack.c.l.bf16 %v115
  %v284 = vunpack.c.l.bf16 %v116
  %v285 = vunpack.c.l.bf16 %v117
  %v286 = vunpack.c.l.bf16 %v118
  %v287 = vunpack.c.l.bf16 %v119
  %v288 = vunpack.c.l.bf16 %v120
  %v289 = vunpack.c.l.bf16 %v121
  %v290 = vunpack.c.l.bf16 %v122
  %v291 = vunpack.c.l.bf16 %v123
  %v292 = vunpack.c.l.bf16 %v124
  %v293 = vunpack.c.l.bf16 %v125
  %v294 = vunpack.c.l.bf16 %v126
  %v295 = vunpack.c.l.bf16 %v127
  %v296 = vunpack.c.l.bf16 %v128
  %v297 = vunpack.c.l.bf16 %v129
  %v298 = vunpack.c.l.bf16 %v130
  %v299 = vunpack.c.l.bf16 %v131
  %v300 = vunpack.c.l.bf16 %v132
  %v301 = vunpack.c.l.bf16 %v133
  %v302 = vunpack.c.l.bf16 %v134
  %v303 = vunpack.c.l.bf16 %v135
  %v304 = vunpack.c.l.bf16 %v136
  %v305 = vunpack.c.l.bf16 %v137
  %v306 = vunpack.c.l.bf16 %v138
  %v307 = vunpack.c.l.bf16 %v139
  %v308 = vunpack.c.l.bf16 %v140
  %v309 = vunpack.c.l.bf16 %v141
  %v310 = vunpack.c.l.bf16 %v142
  %v311 = vunpack.c.l.bf16 %v143
  %v312 = vunpack.c.l.bf16 %v144
  %v313 = vunpack.c.l.bf16 %v145
  %v314 = vunpack.c.l.bf16 %v146
  %v315 = vunpack.c.l.bf16 %v147
  %v316 = vunpack.c.l.bf16 %v148
  %v317 = vunpack.c.l.bf16 %v149
  %v318 = vunpack.c.l.bf16 %v150
  %v319 = vunpack.c.l.bf16 %v151
  %v320 = vunpack.c.l.bf16 %v152
  %v321 = vunpack.c.l.bf16 %v153
  %v322 = vunpack.c.l.bf16 %v154
  %v323 = vunpack.c.l.bf16 %v155
  %v324 = vunpack.c.l.bf16 %v156
  %v325 = vunpack.c.l.bf16 %v157
  %v326 = vunpack.c.l.bf16 %v158
  %v327 = vunpack.c.l.bf16 %v159
  %v328 = vunpack.c.l.bf16 %v160
  %v329 = vunpack.c.l.bf16 %v161
  %v330 = vunpack.c.l.bf16 %v162
  %v331 = vunpack.c.l.bf16 %v163
  %v332 = vunpack.c.l.bf16 %v164
  %v333 = vunpack.c.l.bf16 %v165
  %v334 = vunpack.c.l.bf16 %v166
  %v335 = vunpack.c.l.bf16 %v167
  %v336 = vunpack.c.l.bf16 %v168
  %v337 = vunpack.c.l.bf16 %v169
  %v338 = vunpack.c.l.bf16 %v170
  %v339 = vunpack.c.l.bf16 %v171
  %v340 = vunpack.c.l.bf16 %v172
  %v341 = vunpack.c.l.bf16 %v173
  %v342 = vunpack.c.l.bf16 %v174
  %v343 = vunpack.c.l.bf16 %v175
  %v344 = vunpack.c.l.bf16 %v176
  %v345 = vunpack.c.l.bf16 %v177
  %v346 = vunpack.c.l.bf16 %v178
  %v347 = vunpack.c.l.bf16 %v179
  %v348 = vunpack.c.l.bf16 %v180
  %v349 = vunpack.c.l.bf16 %v181
  %v350 = vunpack.c.l.bf16 %v182
  %v351 = vunpack.c.l.bf16 %v183
  %v352 = vunpack.c.l.bf16 %v184
  %v353 = vunpack.c.l.bf16 %v185
  %v354 = vunpack.c.l.bf16 %v186
  %v355 = vunpack.c.l.bf16 %v187
  %v356 = vunpack.c.l.bf16 %v188
  %v357 = vld [vmem:[%s0] sm:$0x1]
  %v359 = vlaneseq
  %v360 = vshrl.u32 %v359, 7
  %v361 = vsub.s32 0, %v360
  %v362 = vrot.slane %v357, %v361
  %v364 = vmul.f32 %v189, %v362
  %v365 = vmul.f32 %v190, %v362
  %v366 = vmul.f32 %v191, %v362
  %v367 = vmul.f32 %v192, %v362
  %v368 = vmul.f32 %v193, %v362
  %v369 = vmul.f32 %v194, %v362
  %v370 = vmul.f32 %v195, %v362
  %v371 = vmul.f32 %v196, %v362
  %v372 = vmul.f32 %v197, %v362
  %v373 = vmul.f32 %v198, %v362
  %v374 = vmul.f32 %v199, %v362
  %v375 = vmul.f32 %v200, %v362
  %v376 = vmul.f32 %v201, %v362
  %v377 = vmul.f32 %v202, %v362
  %v378 = vmul.f32 %v203, %v362
  %v379 = vmul.f32 %v204, %v362
  %v380 = vmul.f32 %v205, %v362
  %v381 = vmul.f32 %v206, %v362
  %v382 = vmul.f32 %v207, %v362
  %v383 = vmul.f32 %v208, %v362
  %v384 = vmul.f32 %v209, %v362
  %v385 = vmul.f32 %v210, %v362
  %v386 = vmul.f32 %v211, %v362
  %v387 = vmul.f32 %v212, %v362
  %v388 = vmul.f32 %v213, %v362
  %v389 = vmul.f32 %v214, %v362
  %v390 = vmul.f32 %v215, %v362
  %v391 = vmul.f32 %v216, %v362
  %v392 = vmul.f32 %v217, %v362
  %v393 = vmul.f32 %v218, %v362
  %v394 = vmul.f32 %v219, %v362
  %v395 = vmul.f32 %v220, %v362
  %v396 = vmul.f32 %v221, %v362
  %v397 = vmul.f32 %v222, %v362
  %v398 = vmul.f32 %v223, %v362
  %v399 = vmul.f32 %v224, %v362
  %v400 = vmul.f32 %v225, %v362
  %v401 = vmul.f32 %v226, %v362
  %v402 = vmul.f32 %v227, %v362
  %v403 = vmul.f32 %v228, %v362
  %v404 = vmul.f32 %v229, %v362
  %v405 = vmul.f32 %v230, %v362
  %v406 = vmul.f32 %v231, %v362
  %v407 = vmul.f32 %v232, %v362
  %v408 = vmul.f32 %v233, %v362
  %v409 = vmul.f32 %v234, %v362
  %v410 = vmul.f32 %v235, %v362
  %v411 = vmul.f32 %v236, %v362
  %v412 = vmul.f32 %v237, %v362
  %v413 = vmul.f32 %v238, %v362
  %v414 = vmul.f32 %v239, %v362
  %v415 = vmul.f32 %v240, %v362
  %v416 = vmul.f32 %v241, %v362
  %v417 = vmul.f32 %v242, %v362
  %v418 = vmul.f32 %v243, %v362
  %v419 = vmul.f32 %v244, %v362
  %v420 = vmul.f32 %v245, %v362
  %v421 = vmul.f32 %v246, %v362
  %v422 = vmul.f32 %v247, %v362
  %v423 = vmul.f32 %v248, %v362
  %v424 = vmul.f32 %v249, %v362
  %v425 = vmul.f32 %v250, %v362
  %v426 = vmul.f32 %v251, %v362
  %v427 = vmul.f32 %v252, %v362
  %v428 = vmul.f32 %v253, %v362
  %v429 = vmul.f32 %v254, %v362
  %v430 = vmul.f32 %v255, %v362
  %v431 = vmul.f32 %v256, %v362
  %v432 = vmul.f32 %v257, %v362
  %v433 = vmul.f32 %v258, %v362
  %v434 = vmul.f32 %v259, %v362
  %v435 = vmul.f32 %v260, %v362
  %v436 = vmul.f32 %v261, %v362
  %v437 = vmul.f32 %v262, %v362
  %v438 = vmul.f32 %v263, %v362
  %v439 = vmul.f32 %v264, %v362
  %v440 = vmul.f32 %v265, %v362
  %v441 = vmul.f32 %v266, %v362
  %v442 = vmul.f32 %v267, %v362
  %v443 = vmul.f32 %v268, %v362
  %v444 = vmul.f32 %v269, %v362
  %v445 = vmul.f32 %v270, %v362
  %v446 = vmul.f32 %v271, %v362
  %v447 = vmul.f32 %v272, %v362
  %v448 = vmul.f32 %v273, %v362
  %v449 = vmul.f32 %v274, %v362
  %v450 = vmul.f32 %v275, %v362
  %v451 = vmul.f32 %v276, %v362
  %v452 = vmul.f32 %v277, %v362
  %v453 = vmul.f32 %v278, %v362
  %v454 = vmul.f32 %v279, %v362
  %v455 = vmul.f32 %v280, %v362
  %v456 = vmul.f32 %v281, %v362
  %v457 = vmul.f32 %v282, %v362
  %v458 = vmul.f32 %v283, %v362
  %v459 = vmul.f32 %v284, %v362
  %v460 = vmul.f32 %v285, %v362
  %v461 = vmul.f32 %v286, %v362
  %v462 = vmul.f32 %v287, %v362
  %v463 = vmul.f32 %v288, %v362
  %v464 = vmul.f32 %v289, %v362
  %v465 = vmul.f32 %v290, %v362
  %v466 = vmul.f32 %v291, %v362
  %v467 = vmul.f32 %v292, %v362
  %v468 = vmul.f32 %v293, %v362
  %v469 = vmul.f32 %v294, %v362
  %v470 = vmul.f32 %v295, %v362
  %v471 = vmul.f32 %v296, %v362
  %v472 = vmul.f32 %v297, %v362
  %v473 = vmul.f32 %v298, %v362
  %v474 = vmul.f32 %v299, %v362
  %v475 = vmul.f32 %v300, %v362
  %v476 = vmul.f32 %v301, %v362
  %v477 = vmul.f32 %v302, %v362
  %v478 = vmul.f32 %v303, %v362
  %v479 = vmul.f32 %v304, %v362
  %v480 = vmul.f32 %v305, %v362
  %v481 = vmul.f32 %v306, %v362
  %v482 = vmul.f32 %v307, %v362
  %v483 = vmul.f32 %v308, %v362
  %v484 = vmul.f32 %v309, %v362
  %v485 = vmul.f32 %v310, %v362
  %v486 = vmul.f32 %v311, %v362
  %v487 = vmul.f32 %v312, %v362
  %v488 = vmul.f32 %v313, %v362
  %v489 = vmul.f32 %v314, %v362
  %v490 = vmul.f32 %v315, %v362
  %v491 = vmul.f32 %v316, %v362
  %v492 = vmul.f32 %v317, %v362
  %v493 = vmul.f32 %v318, %v362
  %v494 = vmul.f32 %v319, %v362
  %v495 = vmul.f32 %v320, %v362
  %v496 = vmul.f32 %v321, %v362
  %v497 = vmul.f32 %v322, %v362
  %v498 = vmul.f32 %v323, %v362
  %v499 = vmul.f32 %v324, %v362
  %v500 = vmul.f32 %v325, %v362
  %v501 = vmul.f32 %v326, %v362
  %v502 = vmul.f32 %v327, %v362
  %v503 = vmul.f32 %v328, %v362
  %v504 = vmul.f32 %v329, %v362
  %v505 = vmul.f32 %v330, %v362
  %v506 = vmul.f32 %v331, %v362
  %v507 = vmul.f32 %v332, %v362
  %v508 = vmul.f32 %v333, %v362
  %v509 = vmul.f32 %v334, %v362
  %v510 = vmul.f32 %v335, %v362
  %v511 = vmul.f32 %v336, %v362
  %v512 = vmul.f32 %v337, %v362
  %v513 = vmul.f32 %v338, %v362
  %v514 = vmul.f32 %v339, %v362
  %v515 = vmul.f32 %v340, %v362
  %v516 = vmul.f32 %v341, %v362
  %v517 = vmul.f32 %v342, %v362
  %v518 = vmul.f32 %v343, %v362
  %v519 = vmul.f32 %v344, %v362
  %v520 = vmul.f32 %v345, %v362
  %v521 = vmul.f32 %v346, %v362
  %v522 = vmul.f32 %v347, %v362
  %v523 = vmul.f32 %v348, %v362
  %v524 = vmul.f32 %v349, %v362
  %v525 = vmul.f32 %v350, %v362
  %v526 = vmul.f32 %v351, %v362
  %v527 = vmul.f32 %v352, %v362
  %v528 = vmul.f32 %v353, %v362
  %v529 = vmul.f32 %v354, %v362
  %v530 = vmul.f32 %v355, %v362
  %v531 = vmul.f32 %v356, %v362
  %vm532 = vcmask 457728
  %v533 = vsel %vm532, %v364, 0.0
  %534 = vadd.xlane.f32.xlu0 %v533
  %v535 = vpop.xlane.xlu0 %534
  %v536 = vsel %vm532, %v365, 0.0
  %537 = vadd.xlane.f32.xlu0 %v536
  %v538 = vpop.xlane.xlu0 %537
  %v539 = vsel %vm532, %v366, 0.0
  %540 = vadd.xlane.f32.xlu0 %v539
  %v541 = vpop.xlane.xlu0 %540
  %v542 = vsel %vm532, %v367, 0.0
  %543 = vadd.xlane.f32.xlu0 %v542
  %v544 = vpop.xlane.xlu0 %543
  %v545 = vsel %vm532, %v368, 0.0
  %546 = vadd.xlane.f32.xlu0 %v545
  %v547 = vpop.xlane.xlu0 %546
  %v548 = vsel %vm532, %v369, 0.0
  %549 = vadd.xlane.f32.xlu0 %v548
  %v550 = vpop.xlane.xlu0 %549
  %v551 = vsel %vm532, %v370, 0.0
  %552 = vadd.xlane.f32.xlu0 %v551
  %v553 = vpop.xlane.xlu0 %552
  %v554 = vsel %vm532, %v371, 0.0
  %555 = vadd.xlane.f32.xlu0 %v554
  %v556 = vpop.xlane.xlu0 %555
  %v557 = vsel %vm532, %v372, 0.0
  %558 = vadd.xlane.f32.xlu0 %v557
  %v559 = vpop.xlane.xlu0 %558
  %v560 = vsel %vm532, %v373, 0.0
  %561 = vadd.xlane.f32.xlu0 %v560
  %v562 = vpop.xlane.xlu0 %561
  %v563 = vsel %vm532, %v374, 0.0
  %564 = vadd.xlane.f32.xlu0 %v563
  %v565 = vpop.xlane.xlu0 %564
  %v566 = vsel %vm532, %v375, 0.0
  %567 = vadd.xlane.f32.xlu0 %v566
  %v568 = vpop.xlane.xlu0 %567
  %v569 = vsel %vm532, %v376, 0.0
  %570 = vadd.xlane.f32.xlu0 %v569
  %v571 = vpop.xlane.xlu0 %570
  %v572 = vsel %vm532, %v377, 0.0
  %573 = vadd.xlane.f32.xlu0 %v572
  %v574 = vpop.xlane.xlu0 %573
  %v575 = vsel %vm532, %v378, 0.0
  %576 = vadd.xlane.f32.xlu0 %v575
  %v577 = vpop.xlane.xlu0 %576
  %v578 = vsel %vm532, %v379, 0.0
  %579 = vadd.xlane.f32.xlu0 %v578
  %v580 = vpop.xlane.xlu0 %579
  %v581 = vsel %vm532, %v380, 0.0
  %582 = vadd.xlane.f32.xlu0 %v581
  %v583 = vpop.xlane.xlu0 %582
  %v584 = vsel %vm532, %v381, 0.0
  %585 = vadd.xlane.f32.xlu0 %v584
  %v586 = vpop.xlane.xlu0 %585
  %v587 = vsel %vm532, %v382, 0.0
  %588 = vadd.xlane.f32.xlu0 %v587
  %v589 = vpop.xlane.xlu0 %588
  %v590 = vsel %vm532, %v383, 0.0
  %591 = vadd.xlane.f32.xlu0 %v590
  %v592 = vpop.xlane.xlu0 %591
  %v593 = vsel %vm532, %v384, 0.0
  %594 = vadd.xlane.f32.xlu0 %v593
  %v595 = vpop.xlane.xlu0 %594
  %v596 = vsel %vm532, %v385, 0.0
  %597 = vadd.xlane.f32.xlu0 %v596
  %v598 = vpop.xlane.xlu0 %597
  %v599 = vsel %vm532, %v386, 0.0
  %600 = vadd.xlane.f32.xlu0 %v599
  %v601 = vpop.xlane.xlu0 %600
  %v602 = vsel %vm532, %v387, 0.0
  %603 = vadd.xlane.f32.xlu0 %v602
  %v604 = vpop.xlane.xlu0 %603
  %v605 = vsel %vm532, %v388, 0.0
  %606 = vadd.xlane.f32.xlu0 %v605
  %v607 = vpop.xlane.xlu0 %606
  %v608 = vsel %vm532, %v389, 0.0
  %609 = vadd.xlane.f32.xlu0 %v608
  %v610 = vpop.xlane.xlu0 %609
  %v611 = vsel %vm532, %v390, 0.0
  %612 = vadd.xlane.f32.xlu0 %v611
  %v613 = vpop.xlane.xlu0 %612
  %v614 = vsel %vm532, %v391, 0.0
  %615 = vadd.xlane.f32.xlu0 %v614
  %v616 = vpop.xlane.xlu0 %615
  %v617 = vsel %vm532, %v392, 0.0
  %618 = vadd.xlane.f32.xlu0 %v617
  %v619 = vpop.xlane.xlu0 %618
  %v620 = vsel %vm532, %v393, 0.0
  %621 = vadd.xlane.f32.xlu0 %v620
  %v622 = vpop.xlane.xlu0 %621
  %v623 = vsel %vm532, %v394, 0.0
  %624 = vadd.xlane.f32.xlu0 %v623
  %v625 = vpop.xlane.xlu0 %624
  %v626 = vsel %vm532, %v395, 0.0
  %627 = vadd.xlane.f32.xlu0 %v626
  %v628 = vpop.xlane.xlu0 %627
  %v629 = vsel %vm532, %v396, 0.0
  %630 = vadd.xlane.f32.xlu0 %v629
  %v631 = vpop.xlane.xlu0 %630
  %v632 = vsel %vm532, %v397, 0.0
  %633 = vadd.xlane.f32.xlu0 %v632
  %v634 = vpop.xlane.xlu0 %633
  %v635 = vsel %vm532, %v398, 0.0
  %636 = vadd.xlane.f32.xlu0 %v635
  %v637 = vpop.xlane.xlu0 %636
  %v638 = vsel %vm532, %v399, 0.0
  %639 = vadd.xlane.f32.xlu0 %v638
  %v640 = vpop.xlane.xlu0 %639
  %v641 = vsel %vm532, %v400, 0.0
  %642 = vadd.xlane.f32.xlu0 %v641
  %v643 = vpop.xlane.xlu0 %642
  %v644 = vsel %vm532, %v401, 0.0
  %645 = vadd.xlane.f32.xlu0 %v644
  %v646 = vpop.xlane.xlu0 %645
  %v647 = vsel %vm532, %v402, 0.0
  %648 = vadd.xlane.f32.xlu0 %v647
  %v649 = vpop.xlane.xlu0 %648
  %v650 = vsel %vm532, %v403, 0.0
  %651 = vadd.xlane.f32.xlu0 %v650
  %v652 = vpop.xlane.xlu0 %651
  %v653 = vsel %vm532, %v404, 0.0
  %654 = vadd.xlane.f32.xlu0 %v653
  %v655 = vpop.xlane.xlu0 %654
  %v656 = vsel %vm532, %v405, 0.0
  %657 = vadd.xlane.f32.xlu0 %v656
  %v658 = vpop.xlane.xlu0 %657
  %v659 = vsel %vm532, %v406, 0.0
  %660 = vadd.xlane.f32.xlu0 %v659
  %v661 = vpop.xlane.xlu0 %660
  %v662 = vsel %vm532, %v407, 0.0
  %663 = vadd.xlane.f32.xlu0 %v662
  %v664 = vpop.xlane.xlu0 %663
  %v665 = vsel %vm532, %v408, 0.0
  %666 = vadd.xlane.f32.xlu0 %v665
  %v667 = vpop.xlane.xlu0 %666
  %v668 = vsel %vm532, %v409, 0.0
  %669 = vadd.xlane.f32.xlu0 %v668
  %v670 = vpop.xlane.xlu0 %669
  %v671 = vsel %vm532, %v410, 0.0
  %672 = vadd.xlane.f32.xlu0 %v671
  %v673 = vpop.xlane.xlu0 %672
  %v674 = vsel %vm532, %v411, 0.0
  %675 = vadd.xlane.f32.xlu0 %v674
  %v676 = vpop.xlane.xlu0 %675
  %v677 = vsel %vm532, %v412, 0.0
  %678 = vadd.xlane.f32.xlu0 %v677
  %v679 = vpop.xlane.xlu0 %678
  %v680 = vsel %vm532, %v413, 0.0
  %681 = vadd.xlane.f32.xlu0 %v680
  %v682 = vpop.xlane.xlu0 %681
  %v683 = vsel %vm532, %v414, 0.0
  %684 = vadd.xlane.f32.xlu0 %v683
  %v685 = vpop.xlane.xlu0 %684
  %v686 = vsel %vm532, %v415, 0.0
  %687 = vadd.xlane.f32.xlu0 %v686
  %v688 = vpop.xlane.xlu0 %687
  %v689 = vsel %vm532, %v416, 0.0
  %690 = vadd.xlane.f32.xlu0 %v689
  %v691 = vpop.xlane.xlu0 %690
  %v692 = vsel %vm532, %v417, 0.0
  %693 = vadd.xlane.f32.xlu0 %v692
  %v694 = vpop.xlane.xlu0 %693
  %v695 = vsel %vm532, %v418, 0.0
  %696 = vadd.xlane.f32.xlu0 %v695
  %v697 = vpop.xlane.xlu0 %696
  %v698 = vsel %vm532, %v419, 0.0
  %699 = vadd.xlane.f32.xlu0 %v698
  %v700 = vpop.xlane.xlu0 %699
  %v701 = vsel %vm532, %v420, 0.0
  %702 = vadd.xlane.f32.xlu0 %v701
  %v703 = vpop.xlane.xlu0 %702
  %v704 = vsel %vm532, %v421, 0.0
  %705 = vadd.xlane.f32.xlu0 %v704
  %v706 = vpop.xlane.xlu0 %705
  %v707 = vsel %vm532, %v422, 0.0
  %708 = vadd.xlane.f32.xlu0 %v707
  %v709 = vpop.xlane.xlu0 %708
  %v710 = vsel %vm532, %v423, 0.0
  %711 = vadd.xlane.f32.xlu0 %v710
  %v712 = vpop.xlane.xlu0 %711
  %v713 = vsel %vm532, %v424, 0.0
  %714 = vadd.xlane.f32.xlu0 %v713
  %v715 = vpop.xlane.xlu0 %714
  %v716 = vsel %vm532, %v425, 0.0
  %717 = vadd.xlane.f32.xlu0 %v716
  %v718 = vpop.xlane.xlu0 %717
  %v719 = vsel %vm532, %v426, 0.0
  %720 = vadd.xlane.f32.xlu0 %v719
  %v721 = vpop.xlane.xlu0 %720
  %v722 = vsel %vm532, %v427, 0.0
  %723 = vadd.xlane.f32.xlu0 %v722
  %v724 = vpop.xlane.xlu0 %723
  %v725 = vsel %vm532, %v428, 0.0
  %726 = vadd.xlane.f32.xlu0 %v725
  %v727 = vpop.xlane.xlu0 %726
  %v728 = vsel %vm532, %v429, 0.0
  %729 = vadd.xlane.f32.xlu0 %v728
  %v730 = vpop.xlane.xlu0 %729
  %v731 = vsel %vm532, %v430, 0.0
  %732 = vadd.xlane.f32.xlu0 %v731
  %v733 = vpop.xlane.xlu0 %732
  %v734 = vsel %vm532, %v431, 0.0
  %735 = vadd.xlane.f32.xlu0 %v734
  %v736 = vpop.xlane.xlu0 %735
  %v737 = vsel %vm532, %v432, 0.0
  %738 = vadd.xlane.f32.xlu0 %v737
  %v739 = vpop.xlane.xlu0 %738
  %v740 = vsel %vm532, %v433, 0.0
  %741 = vadd.xlane.f32.xlu0 %v740
  %v742 = vpop.xlane.xlu0 %741
  %v743 = vsel %vm532, %v434, 0.0
  %744 = vadd.xlane.f32.xlu0 %v743
  %v745 = vpop.xlane.xlu0 %744
  %v746 = vsel %vm532, %v435, 0.0
  %747 = vadd.xlane.f32.xlu0 %v746
  %v748 = vpop.xlane.xlu0 %747
  %v749 = vsel %vm532, %v436, 0.0
  %750 = vadd.xlane.f32.xlu0 %v749
  %v751 = vpop.xlane.xlu0 %750
  %v752 = vsel %vm532, %v437, 0.0
  %753 = vadd.xlane.f32.xlu0 %v752
  %v754 = vpop.xlane.xlu0 %753
  %v755 = vsel %vm532, %v438, 0.0
  %756 = vadd.xlane.f32.xlu0 %v755
  %v757 = vpop.xlane.xlu0 %756
  %v758 = vsel %vm532, %v439, 0.0
  %759 = vadd.xlane.f32.xlu0 %v758
  %v760 = vpop.xlane.xlu0 %759
  %v761 = vsel %vm532, %v440, 0.0
  %762 = vadd.xlane.f32.xlu0 %v761
  %v763 = vpop.xlane.xlu0 %762
  %v764 = vsel %vm532, %v441, 0.0
  %765 = vadd.xlane.f32.xlu0 %v764
  %v766 = vpop.xlane.xlu0 %765
  %v767 = vsel %vm532, %v442, 0.0
  %768 = vadd.xlane.f32.xlu0 %v767
  %v769 = vpop.xlane.xlu0 %768
  %v770 = vsel %vm532, %v443, 0.0
  %771 = vadd.xlane.f32.xlu0 %v770
  %v772 = vpop.xlane.xlu0 %771
  %v773 = vsel %vm532, %v444, 0.0
  %774 = vadd.xlane.f32.xlu0 %v773
  %v775 = vpop.xlane.xlu0 %774
  %v776 = vsel %vm532, %v445, 0.0
  %777 = vadd.xlane.f32.xlu0 %v776
  %v778 = vpop.xlane.xlu0 %777
  %v779 = vsel %vm532, %v446, 0.0
  %780 = vadd.xlane.f32.xlu0 %v779
  %v781 = vpop.xlane.xlu0 %780
  %v782 = vsel %vm532, %v447, 0.0
  %783 = vadd.xlane.f32.xlu0 %v782
  %v784 = vpop.xlane.xlu0 %783
  %v785 = vsel %vm532, %v448, 0.0
  %786 = vadd.xlane.f32.xlu0 %v785
  %v787 = vpop.xlane.xlu0 %786
  %v788 = vsel %vm532, %v449, 0.0
  %789 = vadd.xlane.f32.xlu0 %v788
  %v790 = vpop.xlane.xlu0 %789
  %v791 = vsel %vm532, %v450, 0.0
  %792 = vadd.xlane.f32.xlu0 %v791
  %v793 = vpop.xlane.xlu0 %792
  %v794 = vsel %vm532, %v451, 0.0
  %795 = vadd.xlane.f32.xlu0 %v794
  %v796 = vpop.xlane.xlu0 %795
  %v797 = vsel %vm532, %v452, 0.0
  %798 = vadd.xlane.f32.xlu0 %v797
  %v799 = vpop.xlane.xlu0 %798
  %v800 = vsel %vm532, %v453, 0.0
  %801 = vadd.xlane.f32.xlu0 %v800
  %v802 = vpop.xlane.xlu0 %801
  %v803 = vsel %vm532, %v454, 0.0
  %804 = vadd.xlane.f32.xlu0 %v803
  %v805 = vpop.xlane.xlu0 %804
  %v806 = vsel %vm532, %v455, 0.0
  %807 = vadd.xlane.f32.xlu0 %v806
  %v808 = vpop.xlane.xlu0 %807
  %v809 = vsel %vm532, %v456, 0.0
  %810 = vadd.xlane.f32.xlu0 %v809
  %v811 = vpop.xlane.xlu0 %810
  %v812 = vsel %vm532, %v457, 0.0
  %813 = vadd.xlane.f32.xlu0 %v812
  %v814 = vpop.xlane.xlu0 %813
  %v815 = vsel %vm532, %v458, 0.0
  %816 = vadd.xlane.f32.xlu0 %v815
  %v817 = vpop.xlane.xlu0 %816
  %v818 = vsel %vm532, %v459, 0.0
  %819 = vadd.xlane.f32.xlu0 %v818
  %v820 = vpop.xlane.xlu0 %819
  %v821 = vsel %vm532, %v460, 0.0
  %822 = vadd.xlane.f32.xlu0 %v821
  %v823 = vpop.xlane.xlu0 %822
  %v824 = vsel %vm532, %v461, 0.0
  %825 = vadd.xlane.f32.xlu0 %v824
  %v826 = vpop.xlane.xlu0 %825
  %v827 = vsel %vm532, %v462, 0.0
  %828 = vadd.xlane.f32.xlu0 %v827
  %v829 = vpop.xlane.xlu0 %828
  %v830 = vsel %vm532, %v463, 0.0
  %831 = vadd.xlane.f32.xlu0 %v830
  %v832 = vpop.xlane.xlu0 %831
  %v833 = vsel %vm532, %v464, 0.0
  %834 = vadd.xlane.f32.xlu0 %v833
  %v835 = vpop.xlane.xlu0 %834
  %v836 = vsel %vm532, %v465, 0.0
  %837 = vadd.xlane.f32.xlu0 %v836
  %v838 = vpop.xlane.xlu0 %837
  %v839 = vsel %vm532, %v466, 0.0
  %840 = vadd.xlane.f32.xlu0 %v839
  %v841 = vpop.xlane.xlu0 %840
  %v842 = vsel %vm532, %v467, 0.0
  %843 = vadd.xlane.f32.xlu0 %v842
  %v844 = vpop.xlane.xlu0 %843
  %v845 = vsel %vm532, %v468, 0.0
  %846 = vadd.xlane.f32.xlu0 %v845
  %v847 = vpop.xlane.xlu0 %846
  %v848 = vsel %vm532, %v469, 0.0
  %849 = vadd.xlane.f32.xlu0 %v848
  %v850 = vpop.xlane.xlu0 %849
  %v851 = vsel %vm532, %v470, 0.0
  %852 = vadd.xlane.f32.xlu0 %v851
  %v853 = vpop.xlane.xlu0 %852
  %v854 = vsel %vm532, %v471, 0.0
  %855 = vadd.xlane.f32.xlu0 %v854
  %v856 = vpop.xlane.xlu0 %855
  %v857 = vsel %vm532, %v472, 0.0
  %858 = vadd.xlane.f32.xlu0 %v857
  %v859 = vpop.xlane.xlu0 %858
  %v860 = vsel %vm532, %v473, 0.0
  %861 = vadd.xlane.f32.xlu0 %v860
  %v862 = vpop.xlane.xlu0 %861
  %v863 = vsel %vm532, %v474, 0.0
  %864 = vadd.xlane.f32.xlu0 %v863
  %v865 = vpop.xlane.xlu0 %864
  %v866 = vsel %vm532, %v475, 0.0
  %867 = vadd.xlane.f32.xlu0 %v866
  %v868 = vpop.xlane.xlu0 %867
  %v869 = vsel %vm532, %v476, 0.0
  %870 = vadd.xlane.f32.xlu0 %v869
  %v871 = vpop.xlane.xlu0 %870
  %v872 = vsel %vm532, %v477, 0.0
  %873 = vadd.xlane.f32.xlu0 %v872
  %v874 = vpop.xlane.xlu0 %873
  %v875 = vsel %vm532, %v478, 0.0
  %876 = vadd.xlane.f32.xlu0 %v875
  %v877 = vpop.xlane.xlu0 %876
  %v878 = vsel %vm532, %v479, 0.0
  %879 = vadd.xlane.f32.xlu0 %v878
  %v880 = vpop.xlane.xlu0 %879
  %v881 = vsel %vm532, %v480, 0.0
  %882 = vadd.xlane.f32.xlu0 %v881
  %v883 = vpop.xlane.xlu0 %882
  %v884 = vsel %vm532, %v481, 0.0
  %885 = vadd.xlane.f32.xlu0 %v884
  %v886 = vpop.xlane.xlu0 %885
  %v887 = vsel %vm532, %v482, 0.0
  %888 = vadd.xlane.f32.xlu0 %v887
  %v889 = vpop.xlane.xlu0 %888
  %v890 = vsel %vm532, %v483, 0.0
  %891 = vadd.xlane.f32.xlu0 %v890
  %v892 = vpop.xlane.xlu0 %891
  %v893 = vsel %vm532, %v484, 0.0
  %894 = vadd.xlane.f32.xlu0 %v893
  %v895 = vpop.xlane.xlu0 %894
  %v896 = vsel %vm532, %v485, 0.0
  %897 = vadd.xlane.f32.xlu0 %v896
  %v898 = vpop.xlane.xlu0 %897
  %v899 = vsel %vm532, %v486, 0.0
  %900 = vadd.xlane.f32.xlu0 %v899
  %v901 = vpop.xlane.xlu0 %900
  %v902 = vsel %vm532, %v487, 0.0
  %903 = vadd.xlane.f32.xlu0 %v902
  %v904 = vpop.xlane.xlu0 %903
  %v905 = vsel %vm532, %v488, 0.0
  %906 = vadd.xlane.f32.xlu0 %v905
  %v907 = vpop.xlane.xlu0 %906
  %v908 = vsel %vm532, %v489, 0.0
  %909 = vadd.xlane.f32.xlu0 %v908
  %v910 = vpop.xlane.xlu0 %909
  %v911 = vsel %vm532, %v490, 0.0
  %912 = vadd.xlane.f32.xlu0 %v911
  %v913 = vpop.xlane.xlu0 %912
  %v914 = vsel %vm532, %v491, 0.0
  %915 = vadd.xlane.f32.xlu0 %v914
  %v916 = vpop.xlane.xlu0 %915
  %v917 = vsel %vm532, %v492, 0.0
  %918 = vadd.xlane.f32.xlu0 %v917
  %v919 = vpop.xlane.xlu0 %918
  %v920 = vsel %vm532, %v493, 0.0
  %921 = vadd.xlane.f32.xlu0 %v920
  %v922 = vpop.xlane.xlu0 %921
  %v923 = vsel %vm532, %v494, 0.0
  %924 = vadd.xlane.f32.xlu0 %v923
  %v925 = vpop.xlane.xlu0 %924
  %v926 = vsel %vm532, %v495, 0.0
  %927 = vadd.xlane.f32.xlu0 %v926
  %v928 = vpop.xlane.xlu0 %927
  %v929 = vsel %vm532, %v496, 0.0
  %930 = vadd.xlane.f32.xlu0 %v929
  %v931 = vpop.xlane.xlu0 %930
  %v932 = vsel %vm532, %v497, 0.0
  %933 = vadd.xlane.f32.xlu0 %v932
  %v934 = vpop.xlane.xlu0 %933
  %v935 = vsel %vm532, %v498, 0.0
  %936 = vadd.xlane.f32.xlu0 %v935
  %v937 = vpop.xlane.xlu0 %936
  %v938 = vsel %vm532, %v499, 0.0
  %939 = vadd.xlane.f32.xlu0 %v938
  %v940 = vpop.xlane.xlu0 %939
  %v941 = vsel %vm532, %v500, 0.0
  %942 = vadd.xlane.f32.xlu0 %v941
  %v943 = vpop.xlane.xlu0 %942
  %v944 = vsel %vm532, %v501, 0.0
  %945 = vadd.xlane.f32.xlu0 %v944
  %v946 = vpop.xlane.xlu0 %945
  %v947 = vsel %vm532, %v502, 0.0
  %948 = vadd.xlane.f32.xlu0 %v947
  %v949 = vpop.xlane.xlu0 %948
  %v950 = vsel %vm532, %v503, 0.0
  %951 = vadd.xlane.f32.xlu0 %v950
  %v952 = vpop.xlane.xlu0 %951
  %v953 = vsel %vm532, %v504, 0.0
  %954 = vadd.xlane.f32.xlu0 %v953
  %v955 = vpop.xlane.xlu0 %954
  %v956 = vsel %vm532, %v505, 0.0
  %957 = vadd.xlane.f32.xlu0 %v956
  %v958 = vpop.xlane.xlu0 %957
  %v959 = vsel %vm532, %v506, 0.0
  %960 = vadd.xlane.f32.xlu0 %v959
  %v961 = vpop.xlane.xlu0 %960
  %v962 = vsel %vm532, %v507, 0.0
  %963 = vadd.xlane.f32.xlu0 %v962
  %v964 = vpop.xlane.xlu0 %963
  %v965 = vsel %vm532, %v508, 0.0
  %966 = vadd.xlane.f32.xlu0 %v965
  %v967 = vpop.xlane.xlu0 %966
  %v968 = vsel %vm532, %v509, 0.0
  %969 = vadd.xlane.f32.xlu0 %v968
  %v970 = vpop.xlane.xlu0 %969
  %v971 = vsel %vm532, %v510, 0.0
  %972 = vadd.xlane.f32.xlu0 %v971
  %v973 = vpop.xlane.xlu0 %972
  %v974 = vsel %vm532, %v511, 0.0
  %975 = vadd.xlane.f32.xlu0 %v974
  %v976 = vpop.xlane.xlu0 %975
  %v977 = vsel %vm532, %v512, 0.0
  %978 = vadd.xlane.f32.xlu0 %v977
  %v979 = vpop.xlane.xlu0 %978
  %v980 = vsel %vm532, %v513, 0.0
  %981 = vadd.xlane.f32.xlu0 %v980
  %v982 = vpop.xlane.xlu0 %981
  %v983 = vsel %vm532, %v514, 0.0
  %984 = vadd.xlane.f32.xlu0 %v983
  %v985 = vpop.xlane.xlu0 %984
  %v986 = vsel %vm532, %v515, 0.0
  %987 = vadd.xlane.f32.xlu0 %v986
  %v988 = vpop.xlane.xlu0 %987
  %v989 = vsel %vm532, %v516, 0.0
  %990 = vadd.xlane.f32.xlu0 %v989
  %v991 = vpop.xlane.xlu0 %990
  %v992 = vsel %vm532, %v517, 0.0
  %993 = vadd.xlane.f32.xlu0 %v992
  %v994 = vpop.xlane.xlu0 %993
  %v995 = vsel %vm532, %v518, 0.0
  %996 = vadd.xlane.f32.xlu0 %v995
  %v997 = vpop.xlane.xlu0 %996
  %v998 = vsel %vm532, %v519, 0.0
  %999 = vadd.xlane.f32.xlu0 %v998
  %v1000 = vpop.xlane.xlu0 %999
  %v1001 = vsel %vm532, %v520, 0.0
  %1002 = vadd.xlane.f32.xlu0 %v1001
  %v1003 = vpop.xlane.xlu0 %1002
  %v1004 = vsel %vm532, %v521, 0.0
  %1005 = vadd.xlane.f32.xlu0 %v1004
  %v1006 = vpop.xlane.xlu0 %1005
  %v1007 = vsel %vm532, %v522, 0.0
  %1008 = vadd.xlane.f32.xlu0 %v1007
  %v1009 = vpop.xlane.xlu0 %1008
  %v1010 = vsel %vm532, %v523, 0.0
  %1011 = vadd.xlane.f32.xlu0 %v1010
  %v1012 = vpop.xlane.xlu0 %1011
  %v1013 = vsel %vm532, %v524, 0.0
  %1014 = vadd.xlane.f32.xlu0 %v1013
  %v1015 = vpop.xlane.xlu0 %1014
  %v1016 = vsel %vm532, %v525, 0.0
  %1017 = vadd.xlane.f32.xlu0 %v1016
  %v1018 = vpop.xlane.xlu0 %1017
  %v1019 = vsel %vm532, %v526, 0.0
  %1020 = vadd.xlane.f32.xlu0 %v1019
  %v1021 = vpop.xlane.xlu0 %1020
  %v1022 = vsel %vm532, %v527, 0.0
  %1023 = vadd.xlane.f32.xlu0 %v1022
  %v1024 = vpop.xlane.xlu0 %1023
  %v1025 = vsel %vm532, %v528, 0.0
  %1026 = vadd.xlane.f32.xlu0 %v1025
  %v1027 = vpop.xlane.xlu0 %1026
  %v1028 = vsel %vm532, %v529, 0.0
  %1029 = vadd.xlane.f32.xlu0 %v1028
  %v1030 = vpop.xlane.xlu0 %1029
  %v1031 = vsel %vm532, %v530, 0.0
  %1032 = vadd.xlane.f32.xlu0 %v1031
  %v1033 = vpop.xlane.xlu0 %1032
  %v1034 = vsel %vm532, %v531, 0.0
  %1035 = vadd.xlane.f32.xlu0 %v1034
  %v1036 = vpop.xlane.xlu0 %1035
  %v1037 = vld [vmem:[%s2] sm:$0xff]
  %v1038 = vld [vmem:[%s2 + $0x8] sm:$0xff]
  %v1039 = vld [vmem:[%s2 + $0x10] sm:$0xff]
  %v1040 = vld [vmem:[%s2 + $0x18] sm:$0xff]
  %v1041 = vld [vmem:[%s2 + $0x20] sm:$0xff]
  %v1042 = vld [vmem:[%s2 + $0x28] sm:$0xff]
  %v1043 = vld [vmem:[%s2 + $0x30] sm:$0xff]
  %v1044 = vld [vmem:[%s2 + $0x38] sm:$0xff]
  %v1045 = vld [vmem:[%s2 + $0x40] sm:$0xff]
  %v1046 = vld [vmem:[%s2 + $0x48] sm:$0xff]
  %v1047 = vld [vmem:[%s2 + $0x50] sm:$0xff]
  %v1048 = vld [vmem:[%s2 + $0x58] sm:$0xff]
  %v1049 = vld [vmem:[%s2 + $0x60] sm:$0xff]
  %v1050 = vld [vmem:[%s2 + $0x68] sm:$0xff]
  %v1051 = vld [vmem:[%s2 + $0x70] sm:$0xff]
  %v1052 = vld [vmem:[%s2 + $0x78] sm:$0xff]
  %v1053 = vld [vmem:[%s2 + $0x80] sm:$0xff]
  %v1054 = vld [vmem:[%s2 + $0x88] sm:$0xff]
  %v1055 = vld [vmem:[%s2 + $0x90] sm:$0xff]
  %v1056 = vld [vmem:[%s2 + $0x98] sm:$0xff]
  %v1057 = vld [vmem:[%s2 + $0xa0] sm:$0xff]
  %v1058 = vld [vmem:[%s2 + $0xa8] sm:$0xff]
  %v1059 = vld [vmem:[%s2 + $0xb0] sm:$0xff]
  %v1060 = vld [vmem:[%s2 + $0xb8] sm:$0xff]
  %v1061 = vld [vmem:[%s2 + $0xc0] sm:$0xff]
  %v1062 = vld [vmem:[%s2 + $0xc8] sm:$0xff]
  %v1063 = vld [vmem:[%s2 + $0xd0] sm:$0xff]
  %v1064 = vld [vmem:[%s2 + $0xd8] sm:$0xff]
  %v1065 = vld [vmem:[%s2 + $0xe0] sm:$0xff]
  %v1066 = vld [vmem:[%s2 + $0xe8] sm:$0xff]
  %v1067 = vld [vmem:[%s2 + $0xf0] sm:$0xff]
  %v1068 = vld [vmem:[%s2 + $0xf8] sm:$0xff]
  %v1069 = vld [vmem:[%s2 + $0x100] sm:$0xff]
  %v1070 = vld [vmem:[%s2 + $0x108] sm:$0xff]
  %v1071 = vld [vmem:[%s2 + $0x110] sm:$0xff]
  %v1072 = vld [vmem:[%s2 + $0x118] sm:$0xff]
  %v1073 = vld [vmem:[%s2 + $0x120] sm:$0xff]
  %v1074 = vld [vmem:[%s2 + $0x128] sm:$0xff]
  %v1075 = vld [vmem:[%s2 + $0x130] sm:$0xff]
  %v1076 = vld [vmem:[%s2 + $0x138] sm:$0xff]
  %v1077 = vld [vmem:[%s2 + $0x140] sm:$0xff]
  %v1078 = vld [vmem:[%s2 + $0x148] sm:$0xff]
  %v1079 = vld [vmem:[%s2 + $0x150] sm:$0xff]
  %v1080 = vld [vmem:[%s2 + $0x158] sm:$0xff]
  %v1081 = vld [vmem:[%s2 + $0x160] sm:$0xff]
  %v1082 = vld [vmem:[%s2 + $0x168] sm:$0xff]
  %v1083 = vld [vmem:[%s2 + $0x170] sm:$0xff]
  %v1084 = vld [vmem:[%s2 + $0x178] sm:$0xff]
  %v1085 = vld [vmem:[%s2 + $0x180] sm:$0xff]
  %v1086 = vld [vmem:[%s2 + $0x188] sm:$0xff]
  %v1087 = vld [vmem:[%s2 + $0x190] sm:$0xff]
  %v1088 = vld [vmem:[%s2 + $0x198] sm:$0xff]
  %v1089 = vld [vmem:[%s2 + $0x1a0] sm:$0xff]
  %v1090 = vld [vmem:[%s2 + $0x1a8] sm:$0xff]
  %v1091 = vld [vmem:[%s2 + $0x1b0] sm:$0xff]
  %v1092 = vld [vmem:[%s2 + $0x1b8] sm:$0xff]
  %v1093 = vld [vmem:[%s2 + $0x1c0] sm:$0xff]
  %v1094 = vld [vmem:[%s2 + $0x1c8] sm:$0xff]
  %v1095 = vld [vmem:[%s2 + $0x1d0] sm:$0xff]
  %v1096 = vld [vmem:[%s2 + $0x1d8] sm:$0xff]
  %v1097 = vld [vmem:[%s2 + $0x1e0] sm:$0xff]
  %v1098 = vld [vmem:[%s2 + $0x1e8] sm:$0xff]
  %v1099 = vld [vmem:[%s2 + $0x1f0] sm:$0xff]
  %v1100 = vld [vmem:[%s2 + $0x1f8] sm:$0xff]
  %v1101 = vld [vmem:[%s2 + $0x200] sm:$0xff]
  %v1102 = vld [vmem:[%s2 + $0x208] sm:$0xff]
  %v1103 = vld [vmem:[%s2 + $0x210] sm:$0xff]
  %v1104 = vld [vmem:[%s2 + $0x218] sm:$0xff]
  %v1105 = vld [vmem:[%s2 + $0x220] sm:$0xff]
  %v1106 = vld [vmem:[%s2 + $0x228] sm:$0xff]
  %v1107 = vld [vmem:[%s2 + $0x230] sm:$0xff]
  %v1108 = vld [vmem:[%s2 + $0x238] sm:$0xff]
  %v1109 = vld [vmem:[%s2 + $0x240] sm:$0xff]
  %v1110 = vld [vmem:[%s2 + $0x248] sm:$0xff]
  %v1111 = vld [vmem:[%s2 + $0x250] sm:$0xff]
  %v1112 = vld [vmem:[%s2 + $0x258] sm:$0xff]
  %v1113 = vld [vmem:[%s2 + $0x260] sm:$0xff]
  %v1114 = vld [vmem:[%s2 + $0x268] sm:$0xff]
  %v1115 = vld [vmem:[%s2 + $0x270] sm:$0xff]
  %v1116 = vld [vmem:[%s2 + $0x278] sm:$0xff]
  %v1117 = vld [vmem:[%s2 + $0x280] sm:$0xff]
  %v1118 = vld [vmem:[%s2 + $0x288] sm:$0xff]
  %v1119 = vld [vmem:[%s2 + $0x290] sm:$0xff]
  %v1120 = vld [vmem:[%s2 + $0x298] sm:$0xff]
  %v1121 = vld [vmem:[%s2 + $0x2a0] sm:$0xff]
  %v1122 = vld [vmem:[%s2 + $0x2a8] sm:$0xff]
  %v1123 = vld [vmem:[%s2 + $0x2b0] sm:$0xff]
  %v1124 = vld [vmem:[%s2 + $0x2b8] sm:$0xff]
  %v1125 = vld [vmem:[%s2 + $0x2c0] sm:$0xff]
  %v1126 = vld [vmem:[%s2 + $0x2c8] sm:$0xff]
  %v1127 = vld [vmem:[%s2 + $0x2d0] sm:$0xff]
  %v1128 = vld [vmem:[%s2 + $0x2d8] sm:$0xff]
  %v1129 = vld [vmem:[%s2 + $0x2e0] sm:$0xff]
  %v1130 = vld [vmem:[%s2 + $0x2e8] sm:$0xff]
  %v1131 = vld [vmem:[%s2 + $0x2f0] sm:$0xff]
  %v1132 = vld [vmem:[%s2 + $0x2f8] sm:$0xff]
  %v1133 = vld [vmem:[%s2 + $0x300] sm:$0xff]
  %v1134 = vld [vmem:[%s2 + $0x308] sm:$0xff]
  %v1135 = vld [vmem:[%s2 + $0x310] sm:$0xff]
  %v1136 = vld [vmem:[%s2 + $0x318] sm:$0xff]
  %v1137 = vld [vmem:[%s2 + $0x320] sm:$0xff]
  %v1138 = vld [vmem:[%s2 + $0x328] sm:$0xff]
  %v1139 = vld [vmem:[%s2 + $0x330] sm:$0xff]
  %v1140 = vld [vmem:[%s2 + $0x338] sm:$0xff]
  %v1141 = vld [vmem:[%s2 + $0x340] sm:$0xff]
  %v1142 = vld [vmem:[%s2 + $0x348] sm:$0xff]
  %v1143 = vld [vmem:[%s2 + $0x350] sm:$0xff]
  %v1144 = vld [vmem:[%s2 + $0x358] sm:$0xff]
  %v1145 = vld [vmem:[%s2 + $0x360] sm:$0xff]
  %v1146 = vld [vmem:[%s2 + $0x368] sm:$0xff]
  %v1147 = vld [vmem:[%s2 + $0x370] sm:$0xff]
  %v1148 = vld [vmem:[%s2 + $0x378] sm:$0xff]
  %v1149 = vld [vmem:[%s2 + $0x380] sm:$0xff]
  %v1150 = vld [vmem:[%s2 + $0x388] sm:$0xff]
  %v1151 = vld [vmem:[%s2 + $0x390] sm:$0xff]
  %v1152 = vld [vmem:[%s2 + $0x398] sm:$0xff]
  %v1153 = vld [vmem:[%s2 + $0x3a0] sm:$0xff]
  %v1154 = vld [vmem:[%s2 + $0x3a8] sm:$0xff]
  %v1155 = vld [vmem:[%s2 + $0x3b0] sm:$0xff]
  %v1156 = vld [vmem:[%s2 + $0x3b8] sm:$0xff]
  %v1157 = vld [vmem:[%s2 + $0x3c0] sm:$0xff]
  %v1158 = vld [vmem:[%s2 + $0x3c8] sm:$0xff]
  %v1159 = vld [vmem:[%s2 + $0x3d0] sm:$0xff]
  %v1160 = vld [vmem:[%s2 + $0x3d8] sm:$0xff]
  %v1161 = vld [vmem:[%s2 + $0x3e0] sm:$0xff]
  %v1162 = vld [vmem:[%s2 + $0x3e8] sm:$0xff]
  %v1163 = vld [vmem:[%s2 + $0x3f0] sm:$0xff]
  %v1164 = vld [vmem:[%s2 + $0x3f8] sm:$0xff]
  %v1165 = vld [vmem:[%s2 + $0x400] sm:$0xff]
  %v1166 = vld [vmem:[%s2 + $0x408] sm:$0xff]
  %v1167 = vld [vmem:[%s2 + $0x410] sm:$0xff]
  %v1168 = vld [vmem:[%s2 + $0x418] sm:$0xff]
  %v1169 = vld [vmem:[%s2 + $0x420] sm:$0xff]
  %v1170 = vld [vmem:[%s2 + $0x428] sm:$0xff]
  %v1171 = vld [vmem:[%s2 + $0x430] sm:$0xff]
  %v1172 = vld [vmem:[%s2 + $0x438] sm:$0xff]
  %v1173 = vld [vmem:[%s2 + $0x440] sm:$0xff]
  %v1174 = vld [vmem:[%s2 + $0x448] sm:$0xff]
  %v1175 = vld [vmem:[%s2 + $0x450] sm:$0xff]
  %v1176 = vld [vmem:[%s2 + $0x458] sm:$0xff]
  %v1177 = vld [vmem:[%s2 + $0x460] sm:$0xff]
  %v1178 = vld [vmem:[%s2 + $0x468] sm:$0xff]
  %v1179 = vld [vmem:[%s2 + $0x470] sm:$0xff]
  %v1180 = vld [vmem:[%s2 + $0x478] sm:$0xff]
  %v1181 = vld [vmem:[%s2 + $0x480] sm:$0xff]
  %v1182 = vld [vmem:[%s2 + $0x488] sm:$0xff]
  %v1183 = vld [vmem:[%s2 + $0x490] sm:$0xff]
  %v1184 = vld [vmem:[%s2 + $0x498] sm:$0xff]
  %v1185 = vld [vmem:[%s2 + $0x4a0] sm:$0xff]
  %v1186 = vld [vmem:[%s2 + $0x4a8] sm:$0xff]
  %v1187 = vld [vmem:[%s2 + $0x4b0] sm:$0xff]
  %v1188 = vld [vmem:[%s2 + $0x4b8] sm:$0xff]
  %v1189 = vld [vmem:[%s2 + $0x4c0] sm:$0xff]
  %v1190 = vld [vmem:[%s2 + $0x4c8] sm:$0xff]
  %v1191 = vld [vmem:[%s2 + $0x4d0] sm:$0xff]
  %v1192 = vld [vmem:[%s2 + $0x4d8] sm:$0xff]
  %v1193 = vld [vmem:[%s2 + $0x4e0] sm:$0xff]
  %v1194 = vld [vmem:[%s2 + $0x4e8] sm:$0xff]
  %v1195 = vld [vmem:[%s2 + $0x4f0] sm:$0xff]
  %v1196 = vld [vmem:[%s2 + $0x4f8] sm:$0xff]
  %v1197 = vld [vmem:[%s2 + $0x500] sm:$0xff]
  %v1198 = vld [vmem:[%s2 + $0x508] sm:$0xff]
  %v1199 = vld [vmem:[%s2 + $0x510] sm:$0xff]
  %v1200 = vld [vmem:[%s2 + $0x518] sm:$0xff]
  %v1201 = vld [vmem:[%s2 + $0x520] sm:$0xff]
  %v1202 = vld [vmem:[%s2 + $0x528] sm:$0xff]
  %v1203 = vld [vmem:[%s2 + $0x530] sm:$0xff]
  %v1204 = vld [vmem:[%s2 + $0x538] sm:$0xff]
  %v1205 = vadd.f32 %v535, %v1037
  %v1206 = vadd.f32 %v538, %v1038
  %v1207 = vadd.f32 %v541, %v1039
  %v1208 = vadd.f32 %v544, %v1040
  %v1209 = vadd.f32 %v547, %v1041
  %v1210 = vadd.f32 %v550, %v1042
  %v1211 = vadd.f32 %v553, %v1043
  %v1212 = vadd.f32 %v556, %v1044
  %v1213 = vadd.f32 %v559, %v1045
  %v1214 = vadd.f32 %v562, %v1046
  %v1215 = vadd.f32 %v565, %v1047
  %v1216 = vadd.f32 %v568, %v1048
  %v1217 = vadd.f32 %v571, %v1049
  %v1218 = vadd.f32 %v574, %v1050
  %v1219 = vadd.f32 %v577, %v1051
  %v1220 = vadd.f32 %v580, %v1052
  %v1221 = vadd.f32 %v583, %v1053
  %v1222 = vadd.f32 %v586, %v1054
  %v1223 = vadd.f32 %v589, %v1055
  %v1224 = vadd.f32 %v592, %v1056
  %v1225 = vadd.f32 %v595, %v1057
  %v1226 = vadd.f32 %v598, %v1058
  %v1227 = vadd.f32 %v601, %v1059
  %v1228 = vadd.f32 %v604, %v1060
  %v1229 = vadd.f32 %v607, %v1061
  %v1230 = vadd.f32 %v610, %v1062
  %v1231 = vadd.f32 %v613, %v1063
  %v1232 = vadd.f32 %v616, %v1064
  %v1233 = vadd.f32 %v619, %v1065
  %v1234 = vadd.f32 %v622, %v1066
  %v1235 = vadd.f32 %v625, %v1067
  %v1236 = vadd.f32 %v628, %v1068
  %v1237 = vadd.f32 %v631, %v1069
  %v1238 = vadd.f32 %v634, %v1070
  %v1239 = vadd.f32 %v637, %v1071
  %v1240 = vadd.f32 %v640, %v1072
  %v1241 = vadd.f32 %v643, %v1073
  %v1242 = vadd.f32 %v646, %v1074
  %v1243 = vadd.f32 %v649, %v1075
  %v1244 = vadd.f32 %v652, %v1076
  %v1245 = vadd.f32 %v655, %v1077
  %v1246 = vadd.f32 %v658, %v1078
  %v1247 = vadd.f32 %v661, %v1079
  %v1248 = vadd.f32 %v664, %v1080
  %v1249 = vadd.f32 %v667, %v1081
  %v1250 = vadd.f32 %v670, %v1082
  %v1251 = vadd.f32 %v673, %v1083
  %v1252 = vadd.f32 %v676, %v1084
  %v1253 = vadd.f32 %v679, %v1085
  %v1254 = vadd.f32 %v682, %v1086
  %v1255 = vadd.f32 %v685, %v1087
  %v1256 = vadd.f32 %v688, %v1088
  %v1257 = vadd.f32 %v691, %v1089
  %v1258 = vadd.f32 %v694, %v1090
  %v1259 = vadd.f32 %v697, %v1091
  %v1260 = vadd.f32 %v700, %v1092
  %v1261 = vadd.f32 %v703, %v1093
  %v1262 = vadd.f32 %v706, %v1094
  %v1263 = vadd.f32 %v709, %v1095
  %v1264 = vadd.f32 %v712, %v1096
  %v1265 = vadd.f32 %v715, %v1097
  %v1266 = vadd.f32 %v718, %v1098
  %v1267 = vadd.f32 %v721, %v1099
  %v1268 = vadd.f32 %v724, %v1100
  %v1269 = vadd.f32 %v727, %v1101
  %v1270 = vadd.f32 %v730, %v1102
  %v1271 = vadd.f32 %v733, %v1103
  %v1272 = vadd.f32 %v736, %v1104
  %v1273 = vadd.f32 %v739, %v1105
  %v1274 = vadd.f32 %v742, %v1106
  %v1275 = vadd.f32 %v745, %v1107
  %v1276 = vadd.f32 %v748, %v1108
  %v1277 = vadd.f32 %v751, %v1109
  %v1278 = vadd.f32 %v754, %v1110
  %v1279 = vadd.f32 %v757, %v1111
  %v1280 = vadd.f32 %v760, %v1112
  %v1281 = vadd.f32 %v763, %v1113
  %v1282 = vadd.f32 %v766, %v1114
  %v1283 = vadd.f32 %v769, %v1115
  %v1284 = vadd.f32 %v772, %v1116
  %v1285 = vadd.f32 %v775, %v1117
  %v1286 = vadd.f32 %v778, %v1118
  %v1287 = vadd.f32 %v781, %v1119
  %v1288 = vadd.f32 %v784, %v1120
  %v1289 = vadd.f32 %v787, %v1121
  %v1290 = vadd.f32 %v790, %v1122
  %v1291 = vadd.f32 %v793, %v1123
  %v1292 = vadd.f32 %v796, %v1124
  %v1293 = vadd.f32 %v799, %v1125
  %v1294 = vadd.f32 %v802, %v1126
  %v1295 = vadd.f32 %v805, %v1127
  %v1296 = vadd.f32 %v808, %v1128
  %v1297 = vadd.f32 %v811, %v1129
  %v1298 = vadd.f32 %v814, %v1130
  %v1299 = vadd.f32 %v817, %v1131
  %v1300 = vadd.f32 %v820, %v1132
  %v1301 = vadd.f32 %v823, %v1133
  %v1302 = vadd.f32 %v826, %v1134
  %v1303 = vadd.f32 %v829, %v1135
  %v1304 = vadd.f32 %v832, %v1136
  %v1305 = vadd.f32 %v835, %v1137
  %v1306 = vadd.f32 %v838, %v1138
  %v1307 = vadd.f32 %v841, %v1139
  %v1308 = vadd.f32 %v844, %v1140
  %v1309 = vadd.f32 %v847, %v1141
  %v1310 = vadd.f32 %v850, %v1142
  %v1311 = vadd.f32 %v853, %v1143
  %v1312 = vadd.f32 %v856, %v1144
  %v1313 = vadd.f32 %v859, %v1145
  %v1314 = vadd.f32 %v862, %v1146
  %v1315 = vadd.f32 %v865, %v1147
  %v1316 = vadd.f32 %v868, %v1148
  %v1317 = vadd.f32 %v871, %v1149
  %v1318 = vadd.f32 %v874, %v1150
  %v1319 = vadd.f32 %v877, %v1151
  %v1320 = vadd.f32 %v880, %v1152
  %v1321 = vadd.f32 %v883, %v1153
  %v1322 = vadd.f32 %v886, %v1154
  %v1323 = vadd.f32 %v889, %v1155
  %v1324 = vadd.f32 %v892, %v1156
  %v1325 = vadd.f32 %v895, %v1157
  %v1326 = vadd.f32 %v898, %v1158
  %v1327 = vadd.f32 %v901, %v1159
  %v1328 = vadd.f32 %v904, %v1160
  %v1329 = vadd.f32 %v907, %v1161
  %v1330 = vadd.f32 %v910, %v1162
  %v1331 = vadd.f32 %v913, %v1163
  %v1332 = vadd.f32 %v916, %v1164
  %v1333 = vadd.f32 %v919, %v1165
  %v1334 = vadd.f32 %v922, %v1166
  %v1335 = vadd.f32 %v925, %v1167
  %v1336 = vadd.f32 %v928, %v1168
  %v1337 = vadd.f32 %v931, %v1169
  %v1338 = vadd.f32 %v934, %v1170
  %v1339 = vadd.f32 %v937, %v1171
  %v1340 = vadd.f32 %v940, %v1172
  %v1341 = vadd.f32 %v943, %v1173
  %v1342 = vadd.f32 %v946, %v1174
  %v1343 = vadd.f32 %v949, %v1175
  %v1344 = vadd.f32 %v952, %v1176
  %v1345 = vadd.f32 %v955, %v1177
  %v1346 = vadd.f32 %v958, %v1178
  %v1347 = vadd.f32 %v961, %v1179
  %v1348 = vadd.f32 %v964, %v1180
  %v1349 = vadd.f32 %v967, %v1181
  %v1350 = vadd.f32 %v970, %v1182
  %v1351 = vadd.f32 %v973, %v1183
  %v1352 = vadd.f32 %v976, %v1184
  %v1353 = vadd.f32 %v979, %v1185
  %v1354 = vadd.f32 %v982, %v1186
  %v1355 = vadd.f32 %v985, %v1187
  %v1356 = vadd.f32 %v988, %v1188
  %v1357 = vadd.f32 %v991, %v1189
  %v1358 = vadd.f32 %v994, %v1190
  %v1359 = vadd.f32 %v997, %v1191
  %v1360 = vadd.f32 %v1000, %v1192
  %v1361 = vadd.f32 %v1003, %v1193
  %v1362 = vadd.f32 %v1006, %v1194
  %v1363 = vadd.f32 %v1009, %v1195
  %v1364 = vadd.f32 %v1012, %v1196
  %v1365 = vadd.f32 %v1015, %v1197
  %v1366 = vadd.f32 %v1018, %v1198
  %v1367 = vadd.f32 %v1021, %v1199
  %v1368 = vadd.f32 %v1024, %v1200
  %v1369 = vadd.f32 %v1027, %v1201
  %v1370 = vadd.f32 %v1030, %v1202
  %v1371 = vadd.f32 %v1033, %v1203
  %v1372 = vadd.f32 %v1036, %v1204
  %v1373 = vxor.u32 %v1205, 2147483648
  %v1374 = vxor.u32 %v1206, 2147483648
  %v1375 = vxor.u32 %v1207, 2147483648
  %v1376 = vxor.u32 %v1208, 2147483648
  %v1377 = vxor.u32 %v1209, 2147483648
  %v1378 = vxor.u32 %v1210, 2147483648
  %v1379 = vxor.u32 %v1211, 2147483648
  %v1380 = vxor.u32 %v1212, 2147483648
  %v1381 = vxor.u32 %v1213, 2147483648
  %v1382 = vxor.u32 %v1214, 2147483648
  %v1383 = vxor.u32 %v1215, 2147483648
  %v1384 = vxor.u32 %v1216, 2147483648
  %v1385 = vxor.u32 %v1217, 2147483648
  %v1386 = vxor.u32 %v1218, 2147483648
  %v1387 = vxor.u32 %v1219, 2147483648
  %v1388 = vxor.u32 %v1220, 2147483648
  %v1389 = vxor.u32 %v1221, 2147483648
  %v1390 = vxor.u32 %v1222, 2147483648
  %v1391 = vxor.u32 %v1223, 2147483648
  %v1392 = vxor.u32 %v1224, 2147483648
  %v1393 = vxor.u32 %v1225, 2147483648
  %v1394 = vxor.u32 %v1226, 2147483648
  %v1395 = vxor.u32 %v1227, 2147483648
  %v1396 = vxor.u32 %v1228, 2147483648
  %v1397 = vxor.u32 %v1229, 2147483648
  %v1398 = vxor.u32 %v1230, 2147483648
  %v1399 = vxor.u32 %v1231, 2147483648
  %v1400 = vxor.u32 %v1232, 2147483648
  %v1401 = vxor.u32 %v1233, 2147483648
  %v1402 = vxor.u32 %v1234, 2147483648
  %v1403 = vxor.u32 %v1235, 2147483648
  %v1404 = vxor.u32 %v1236, 2147483648
  %v1405 = vxor.u32 %v1237, 2147483648
  %v1406 = vxor.u32 %v1238, 2147483648
  %v1407 = vxor.u32 %v1239, 2147483648
  %v1408 = vxor.u32 %v1240, 2147483648
  %v1409 = vxor.u32 %v1241, 2147483648
  %v1410 = vxor.u32 %v1242, 2147483648
  %v1411 = vxor.u32 %v1243, 2147483648
  %v1412 = vxor.u32 %v1244, 2147483648
  %v1413 = vxor.u32 %v1245, 2147483648
  %v1414 = vxor.u32 %v1246, 2147483648
  %v1415 = vxor.u32 %v1247, 2147483648
  %v1416 = vxor.u32 %v1248, 2147483648
  %v1417 = vxor.u32 %v1249, 2147483648
  %v1418 = vxor.u32 %v1250, 2147483648
  %v1419 = vxor.u32 %v1251, 2147483648
  %v1420 = vxor.u32 %v1252, 2147483648
  %v1421 = vxor.u32 %v1253, 2147483648
  %v1422 = vxor.u32 %v1254, 2147483648
  %v1423 = vxor.u32 %v1255, 2147483648
  %v1424 = vxor.u32 %v1256, 2147483648
  %v1425 = vxor.u32 %v1257, 2147483648
  %v1426 = vxor.u32 %v1258, 2147483648
  %v1427 = vxor.u32 %v1259, 2147483648
  %v1428 = vxor.u32 %v1260, 2147483648
  %v1429 = vxor.u32 %v1261, 2147483648
  %v1430 = vxor.u32 %v1262, 2147483648
  %v1431 = vxor.u32 %v1263, 2147483648
  %v1432 = vxor.u32 %v1264, 2147483648
  %v1433 = vxor.u32 %v1265, 2147483648
  %v1434 = vxor.u32 %v1266, 2147483648
  %v1435 = vxor.u32 %v1267, 2147483648
  %v1436 = vxor.u32 %v1268, 2147483648
  %v1437 = vxor.u32 %v1269, 2147483648
  %v1438 = vxor.u32 %v1270, 2147483648
  %v1439 = vxor.u32 %v1271, 2147483648
  %v1440 = vxor.u32 %v1272, 2147483648
  %v1441 = vxor.u32 %v1273, 2147483648
  %v1442 = vxor.u32 %v1274, 2147483648
  %v1443 = vxor.u32 %v1275, 2147483648
  %v1444 = vxor.u32 %v1276, 2147483648
  %v1445 = vxor.u32 %v1277, 2147483648
  %v1446 = vxor.u32 %v1278, 2147483648
  %v1447 = vxor.u32 %v1279, 2147483648
  %v1448 = vxor.u32 %v1280, 2147483648
  %v1449 = vxor.u32 %v1281, 2147483648
  %v1450 = vxor.u32 %v1282, 2147483648
  %v1451 = vxor.u32 %v1283, 2147483648
  %v1452 = vxor.u32 %v1284, 2147483648
  %v1453 = vxor.u32 %v1285, 2147483648
  %v1454 = vxor.u32 %v1286, 2147483648
  %v1455 = vxor.u32 %v1287, 2147483648
  %v1456 = vxor.u32 %v1288, 2147483648
  %v1457 = vxor.u32 %v1289, 2147483648
  %v1458 = vxor.u32 %v1290, 2147483648
  %v1459 = vxor.u32 %v1291, 2147483648
  %v1460 = vxor.u32 %v1292, 2147483648
  %v1461 = vxor.u32 %v1293, 2147483648
  %v1462 = vxor.u32 %v1294, 2147483648
  %v1463 = vxor.u32 %v1295, 2147483648
  %v1464 = vxor.u32 %v1296, 2147483648
  %v1465 = vxor.u32 %v1297, 2147483648
  %v1466 = vxor.u32 %v1298, 2147483648
  %v1467 = vxor.u32 %v1299, 2147483648
  %v1468 = vxor.u32 %v1300, 2147483648
  %v1469 = vxor.u32 %v1301, 2147483648
  %v1470 = vxor.u32 %v1302, 2147483648
  %v1471 = vxor.u32 %v1303, 2147483648
  %v1472 = vxor.u32 %v1304, 2147483648
  %v1473 = vxor.u32 %v1305, 2147483648
  %v1474 = vxor.u32 %v1306, 2147483648
  %v1475 = vxor.u32 %v1307, 2147483648
  %v1476 = vxor.u32 %v1308, 2147483648
  %v1477 = vxor.u32 %v1309, 2147483648
  %v1478 = vxor.u32 %v1310, 2147483648
  %v1479 = vxor.u32 %v1311, 2147483648
  %v1480 = vxor.u32 %v1312, 2147483648
  %v1481 = vxor.u32 %v1313, 2147483648
  %v1482 = vxor.u32 %v1314, 2147483648
  %v1483 = vxor.u32 %v1315, 2147483648
  %v1484 = vxor.u32 %v1316, 2147483648
  %v1485 = vxor.u32 %v1317, 2147483648
  %v1486 = vxor.u32 %v1318, 2147483648
  %v1487 = vxor.u32 %v1319, 2147483648
  %v1488 = vxor.u32 %v1320, 2147483648
  %v1489 = vxor.u32 %v1321, 2147483648
  %v1490 = vxor.u32 %v1322, 2147483648
  %v1491 = vxor.u32 %v1323, 2147483648
  %v1492 = vxor.u32 %v1324, 2147483648
  %v1493 = vxor.u32 %v1325, 2147483648
  %v1494 = vxor.u32 %v1326, 2147483648
  %v1495 = vxor.u32 %v1327, 2147483648
  %v1496 = vxor.u32 %v1328, 2147483648
  %v1497 = vxor.u32 %v1329, 2147483648
  %v1498 = vxor.u32 %v1330, 2147483648
  %v1499 = vxor.u32 %v1331, 2147483648
  %v1500 = vxor.u32 %v1332, 2147483648
  %v1501 = vxor.u32 %v1333, 2147483648
  %v1502 = vxor.u32 %v1334, 2147483648
  %v1503 = vxor.u32 %v1335, 2147483648
  %v1504 = vxor.u32 %v1336, 2147483648
  %v1505 = vxor.u32 %v1337, 2147483648
  %v1506 = vxor.u32 %v1338, 2147483648
  %v1507 = vxor.u32 %v1339, 2147483648
  %v1508 = vxor.u32 %v1340, 2147483648
  %v1509 = vxor.u32 %v1341, 2147483648
  %v1510 = vxor.u32 %v1342, 2147483648
  %v1511 = vxor.u32 %v1343, 2147483648
  %v1512 = vxor.u32 %v1344, 2147483648
  %v1513 = vxor.u32 %v1345, 2147483648
  %v1514 = vxor.u32 %v1346, 2147483648
  %v1515 = vxor.u32 %v1347, 2147483648
  %v1516 = vxor.u32 %v1348, 2147483648
  %v1517 = vxor.u32 %v1349, 2147483648
  %v1518 = vxor.u32 %v1350, 2147483648
  %v1519 = vxor.u32 %v1351, 2147483648
  %v1520 = vxor.u32 %v1352, 2147483648
  %v1521 = vxor.u32 %v1353, 2147483648
  %v1522 = vxor.u32 %v1354, 2147483648
  %v1523 = vxor.u32 %v1355, 2147483648
  %v1524 = vxor.u32 %v1356, 2147483648
  %v1525 = vxor.u32 %v1357, 2147483648
  %v1526 = vxor.u32 %v1358, 2147483648
  %v1527 = vxor.u32 %v1359, 2147483648
  %v1528 = vxor.u32 %v1360, 2147483648
  %v1529 = vxor.u32 %v1361, 2147483648
  %v1530 = vxor.u32 %v1362, 2147483648
  %v1531 = vxor.u32 %v1363, 2147483648
  %v1532 = vxor.u32 %v1364, 2147483648
  %v1533 = vxor.u32 %v1365, 2147483648
  %v1534 = vxor.u32 %v1366, 2147483648
  %v1535 = vxor.u32 %v1367, 2147483648
  %v1536 = vxor.u32 %v1368, 2147483648
  %v1537 = vxor.u32 %v1369, 2147483648
  %v1538 = vxor.u32 %v1370, 2147483648
  %v1539 = vxor.u32 %v1371, 2147483648
  %v1540 = vxor.u32 %v1372, 2147483648
  %v1541 = vmul.f32 %v1373, 1.442695
  %v1542 = vpow.pop %v1541
  %v1543 = vmul.f32 %v1374, 1.442695
  %v1544 = vpow.pop %v1543
  %v1545 = vmul.f32 %v1375, 1.442695
  %v1546 = vpow.pop %v1545
  %v1547 = vmul.f32 %v1376, 1.442695
  %v1548 = vpow.pop %v1547
  %v1549 = vmul.f32 %v1377, 1.442695
  %v1550 = vpow.pop %v1549
  %v1551 = vmul.f32 %v1378, 1.442695
  %v1552 = vpow.pop %v1551
  %v1553 = vmul.f32 %v1379, 1.442695
  %v1554 = vpow.pop %v1553
  %v1555 = vmul.f32 %v1380, 1.442695
  %v1556 = vpow.pop %v1555
  %v1557 = vmul.f32 %v1381, 1.442695
  %v1558 = vpow.pop %v1557
  %v1559 = vmul.f32 %v1382, 1.442695
  %v1560 = vpow.pop %v1559
  %v1561 = vmul.f32 %v1383, 1.442695
  %v1562 = vpow.pop %v1561
  %v1563 = vmul.f32 %v1384, 1.442695
  %v1564 = vpow.pop %v1563
  %v1565 = vmul.f32 %v1385, 1.442695
  %v1566 = vpow.pop %v1565
  %v1567 = vmul.f32 %v1386, 1.442695
  %v1568 = vpow.pop %v1567
  %v1569 = vmul.f32 %v1387, 1.442695
  %v1570 = vpow.pop %v1569
  %v1571 = vmul.f32 %v1388, 1.442695
  %v1572 = vpow.pop %v1571
  %v1573 = vmul.f32 %v1389, 1.442695
  %v1574 = vpow.pop %v1573
  %v1575 = vmul.f32 %v1390, 1.442695
  %v1576 = vpow.pop %v1575
  %v1577 = vmul.f32 %v1391, 1.442695
  %v1578 = vpow.pop %v1577
  %v1579 = vmul.f32 %v1392, 1.442695
  %v1580 = vpow.pop %v1579
  %v1581 = vmul.f32 %v1393, 1.442695
  %v1582 = vpow.pop %v1581
  %v1583 = vmul.f32 %v1394, 1.442695
  %v1584 = vpow.pop %v1583
  %v1585 = vmul.f32 %v1395, 1.442695
  %v1586 = vpow.pop %v1585
  %v1587 = vmul.f32 %v1396, 1.442695
  %v1588 = vpow.pop %v1587
  %v1589 = vmul.f32 %v1397, 1.442695
  %v1590 = vpow.pop %v1589
  %v1591 = vmul.f32 %v1398, 1.442695
  %v1592 = vpow.pop %v1591
  %v1593 = vmul.f32 %v1399, 1.442695
  %v1594 = vpow.pop %v1593
  %v1595 = vmul.f32 %v1400, 1.442695
  %v1596 = vpow.pop %v1595
  %v1597 = vmul.f32 %v1401, 1.442695
  %v1598 = vpow.pop %v1597
  %v1599 = vmul.f32 %v1402, 1.442695
  %v1600 = vpow.pop %v1599
  %v1601 = vmul.f32 %v1403, 1.442695
  %v1602 = vpow.pop %v1601
  %v1603 = vmul.f32 %v1404, 1.442695
  %v1604 = vpow.pop %v1603
  %v1605 = vmul.f32 %v1405, 1.442695
  %v1606 = vpow.pop %v1605
  %v1607 = vmul.f32 %v1406, 1.442695
  %v1608 = vpow.pop %v1607
  %v1609 = vmul.f32 %v1407, 1.442695
  %v1610 = vpow.pop %v1609
  %v1611 = vmul.f32 %v1408, 1.442695
  %v1612 = vpow.pop %v1611
  %v1613 = vmul.f32 %v1409, 1.442695
  %v1614 = vpow.pop %v1613
  %v1615 = vmul.f32 %v1410, 1.442695
  %v1616 = vpow.pop %v1615
  %v1617 = vmul.f32 %v1411, 1.442695
  %v1618 = vpow.pop %v1617
  %v1619 = vmul.f32 %v1412, 1.442695
  %v1620 = vpow.pop %v1619
  %v1621 = vmul.f32 %v1413, 1.442695
  %v1622 = vpow.pop %v1621
  %v1623 = vmul.f32 %v1414, 1.442695
  %v1624 = vpow.pop %v1623
  %v1625 = vmul.f32 %v1415, 1.442695
  %v1626 = vpow.pop %v1625
  %v1627 = vmul.f32 %v1416, 1.442695
  %v1628 = vpow.pop %v1627
  %v1629 = vmul.f32 %v1417, 1.442695
  %v1630 = vpow.pop %v1629
  %v1631 = vmul.f32 %v1418, 1.442695
  %v1632 = vpow.pop %v1631
  %v1633 = vmul.f32 %v1419, 1.442695
  %v1634 = vpow.pop %v1633
  %v1635 = vmul.f32 %v1420, 1.442695
  %v1636 = vpow.pop %v1635
  %v1637 = vmul.f32 %v1421, 1.442695
  %v1638 = vpow.pop %v1637
  %v1639 = vmul.f32 %v1422, 1.442695
  %v1640 = vpow.pop %v1639
  %v1641 = vmul.f32 %v1423, 1.442695
  %v1642 = vpow.pop %v1641
  %v1643 = vmul.f32 %v1424, 1.442695
  %v1644 = vpow.pop %v1643
  %v1645 = vmul.f32 %v1425, 1.442695
  %v1646 = vpow.pop %v1645
  %v1647 = vmul.f32 %v1426, 1.442695
  %v1648 = vpow.pop %v1647
  %v1649 = vmul.f32 %v1427, 1.442695
  %v1650 = vpow.pop %v1649
  %v1651 = vmul.f32 %v1428, 1.442695
  %v1652 = vpow.pop %v1651
  %v1653 = vmul.f32 %v1429, 1.442695
  %v1654 = vpow.pop %v1653
  %v1655 = vmul.f32 %v1430, 1.442695
  %v1656 = vpow.pop %v1655
  %v1657 = vmul.f32 %v1431, 1.442695
  %v1658 = vpow.pop %v1657
  %v1659 = vmul.f32 %v1432, 1.442695
  %v1660 = vpow.pop %v1659
  %v1661 = vmul.f32 %v1433, 1.442695
  %v1662 = vpow.pop %v1661
  %v1663 = vmul.f32 %v1434, 1.442695
  %v1664 = vpow.pop %v1663
  %v1665 = vmul.f32 %v1435, 1.442695
  %v1666 = vpow.pop %v1665
  %v1667 = vmul.f32 %v1436, 1.442695
  %v1668 = vpow.pop %v1667
  %v1669 = vmul.f32 %v1437, 1.442695
  %v1670 = vpow.pop %v1669
  %v1671 = vmul.f32 %v1438, 1.442695
  %v1672 = vpow.pop %v1671
  %v1673 = vmul.f32 %v1439, 1.442695
  %v1674 = vpow.pop %v1673
  %v1675 = vmul.f32 %v1440, 1.442695
  %v1676 = vpow.pop %v1675
  %v1677 = vmul.f32 %v1441, 1.442695
  %v1678 = vpow.pop %v1677
  %v1679 = vmul.f32 %v1442, 1.442695
  %v1680 = vpow.pop %v1679
  %v1681 = vmul.f32 %v1443, 1.442695
  %v1682 = vpow.pop %v1681
  %v1683 = vmul.f32 %v1444, 1.442695
  %v1684 = vpow.pop %v1683
  %v1685 = vmul.f32 %v1445, 1.442695
  %v1686 = vpow.pop %v1685
  %v1687 = vmul.f32 %v1446, 1.442695
  %v1688 = vpow.pop %v1687
  %v1689 = vmul.f32 %v1447, 1.442695
  %v1690 = vpow.pop %v1689
  %v1691 = vmul.f32 %v1448, 1.442695
  %v1692 = vpow.pop %v1691
  %v1693 = vmul.f32 %v1449, 1.442695
  %v1694 = vpow.pop %v1693
  %v1695 = vmul.f32 %v1450, 1.442695
  %v1696 = vpow.pop %v1695
  %v1697 = vmul.f32 %v1451, 1.442695
  %v1698 = vpow.pop %v1697
  %v1699 = vmul.f32 %v1452, 1.442695
  %v1700 = vpow.pop %v1699
  %v1701 = vmul.f32 %v1453, 1.442695
  %v1702 = vpow.pop %v1701
  %v1703 = vmul.f32 %v1454, 1.442695
  %v1704 = vpow.pop %v1703
  %v1705 = vmul.f32 %v1455, 1.442695
  %v1706 = vpow.pop %v1705
  %v1707 = vmul.f32 %v1456, 1.442695
  %v1708 = vpow.pop %v1707
  %v1709 = vmul.f32 %v1457, 1.442695
  %v1710 = vpow.pop %v1709
  %v1711 = vmul.f32 %v1458, 1.442695
  %v1712 = vpow.pop %v1711
  %v1713 = vmul.f32 %v1459, 1.442695
  %v1714 = vpow.pop %v1713
  %v1715 = vmul.f32 %v1460, 1.442695
  %v1716 = vpow.pop %v1715
  %v1717 = vmul.f32 %v1461, 1.442695
  %v1718 = vpow.pop %v1717
  %v1719 = vmul.f32 %v1462, 1.442695
  %v1720 = vpow.pop %v1719
  %v1721 = vmul.f32 %v1463, 1.442695
  %v1722 = vpow.pop %v1721
  %v1723 = vmul.f32 %v1464, 1.442695
  %v1724 = vpow.pop %v1723
  %v1725 = vmul.f32 %v1465, 1.442695
  %v1726 = vpow.pop %v1725
  %v1727 = vmul.f32 %v1466, 1.442695
  %v1728 = vpow.pop %v1727
  %v1729 = vmul.f32 %v1467, 1.442695
  %v1730 = vpow.pop %v1729
  %v1731 = vmul.f32 %v1468, 1.442695
  %v1732 = vpow.pop %v1731
  %v1733 = vmul.f32 %v1469, 1.442695
  %v1734 = vpow.pop %v1733
  %v1735 = vmul.f32 %v1470, 1.442695
  %v1736 = vpow.pop %v1735
  %v1737 = vmul.f32 %v1471, 1.442695
  %v1738 = vpow.pop %v1737
  %v1739 = vmul.f32 %v1472, 1.442695
  %v1740 = vpow.pop %v1739
  %v1741 = vmul.f32 %v1473, 1.442695
  %v1742 = vpow.pop %v1741
  %v1743 = vmul.f32 %v1474, 1.442695
  %v1744 = vpow.pop %v1743
  %v1745 = vmul.f32 %v1475, 1.442695
  %v1746 = vpow.pop %v1745
  %v1747 = vmul.f32 %v1476, 1.442695
  %v1748 = vpow.pop %v1747
  %v1749 = vmul.f32 %v1477, 1.442695
  %v1750 = vpow.pop %v1749
  %v1751 = vmul.f32 %v1478, 1.442695
  %v1752 = vpow.pop %v1751
  %v1753 = vmul.f32 %v1479, 1.442695
  %v1754 = vpow.pop %v1753
  %v1755 = vmul.f32 %v1480, 1.442695
  %v1756 = vpow.pop %v1755
  %v1757 = vmul.f32 %v1481, 1.442695
  %v1758 = vpow.pop %v1757
  %v1759 = vmul.f32 %v1482, 1.442695
  %v1760 = vpow.pop %v1759
  %v1761 = vmul.f32 %v1483, 1.442695
  %v1762 = vpow.pop %v1761
  %v1763 = vmul.f32 %v1484, 1.442695
  %v1764 = vpow.pop %v1763
  %v1765 = vmul.f32 %v1485, 1.442695
  %v1766 = vpow.pop %v1765
  %v1767 = vmul.f32 %v1486, 1.442695
  %v1768 = vpow.pop %v1767
  %v1769 = vmul.f32 %v1487, 1.442695
  %v1770 = vpow.pop %v1769
  %v1771 = vmul.f32 %v1488, 1.442695
  %v1772 = vpow.pop %v1771
  %v1773 = vmul.f32 %v1489, 1.442695
  %v1774 = vpow.pop %v1773
  %v1775 = vmul.f32 %v1490, 1.442695
  %v1776 = vpow.pop %v1775
  %v1777 = vmul.f32 %v1491, 1.442695
  %v1778 = vpow.pop %v1777
  %v1779 = vmul.f32 %v1492, 1.442695
  %v1780 = vpow.pop %v1779
  %v1781 = vmul.f32 %v1493, 1.442695
  %v1782 = vpow.pop %v1781
  %v1783 = vmul.f32 %v1494, 1.442695
  %v1784 = vpow.pop %v1783
  %v1785 = vmul.f32 %v1495, 1.442695
  %v1786 = vpow.pop %v1785
  %v1787 = vmul.f32 %v1496, 1.442695
  %v1788 = vpow.pop %v1787
  %v1789 = vmul.f32 %v1497, 1.442695
  %v1790 = vpow.pop %v1789
  %v1791 = vmul.f32 %v1498, 1.442695
  %v1792 = vpow.pop %v1791
  %v1793 = vmul.f32 %v1499, 1.442695
  %v1794 = vpow.pop %v1793
  %v1795 = vmul.f32 %v1500, 1.442695
  %v1796 = vpow.pop %v1795
  %v1797 = vmul.f32 %v1501, 1.442695
  %v1798 = vpow.pop %v1797
  %v1799 = vmul.f32 %v1502, 1.442695
  %v1800 = vpow.pop %v1799
  %v1801 = vmul.f32 %v1503, 1.442695
  %v1802 = vpow.pop %v1801
  %v1803 = vmul.f32 %v1504, 1.442695
  %v1804 = vpow.pop %v1803
  %v1805 = vmul.f32 %v1505, 1.442695
  %v1806 = vpow.pop %v1805
  %v1807 = vmul.f32 %v1506, 1.442695
  %v1808 = vpow.pop %v1807
  %v1809 = vmul.f32 %v1507, 1.442695
  %v1810 = vpow.pop %v1809
  %v1811 = vmul.f32 %v1508, 1.442695
  %v1812 = vpow.pop %v1811
  %v1813 = vmul.f32 %v1509, 1.442695
  %v1814 = vpow.pop %v1813
  %v1815 = vmul.f32 %v1510, 1.442695
  %v1816 = vpow.pop %v1815
  %v1817 = vmul.f32 %v1511, 1.442695
  %v1818 = vpow.pop %v1817
  %v1819 = vmul.f32 %v1512, 1.442695
  %v1820 = vpow.pop %v1819
  %v1821 = vmul.f32 %v1513, 1.442695
  %v1822 = vpow.pop %v1821
  %v1823 = vmul.f32 %v1514, 1.442695
  %v1824 = vpow.pop %v1823
  %v1825 = vmul.f32 %v1515, 1.442695
  %v1826 = vpow.pop %v1825
  %v1827 = vmul.f32 %v1516, 1.442695
  %v1828 = vpow.pop %v1827
  %v1829 = vmul.f32 %v1517, 1.442695
  %v1830 = vpow.pop %v1829
  %v1831 = vmul.f32 %v1518, 1.442695
  %v1832 = vpow.pop %v1831
  %v1833 = vmul.f32 %v1519, 1.442695
  %v1834 = vpow.pop %v1833
  %v1835 = vmul.f32 %v1520, 1.442695
  %v1836 = vpow.pop %v1835
  %v1837 = vmul.f32 %v1521, 1.442695
  %v1838 = vpow.pop %v1837
  %v1839 = vmul.f32 %v1522, 1.442695
  %v1840 = vpow.pop %v1839
  %v1841 = vmul.f32 %v1523, 1.442695
  %v1842 = vpow.pop %v1841
  %v1843 = vmul.f32 %v1524, 1.442695
  %v1844 = vpow.pop %v1843
  %v1845 = vmul.f32 %v1525, 1.442695
  %v1846 = vpow.pop %v1845
  %v1847 = vmul.f32 %v1526, 1.442695
  %v1848 = vpow.pop %v1847
  %v1849 = vmul.f32 %v1527, 1.442695
  %v1850 = vpow.pop %v1849
  %v1851 = vmul.f32 %v1528, 1.442695
  %v1852 = vpow.pop %v1851
  %v1853 = vmul.f32 %v1529, 1.442695
  %v1854 = vpow.pop %v1853
  %v1855 = vmul.f32 %v1530, 1.442695
  %v1856 = vpow.pop %v1855
  %v1857 = vmul.f32 %v1531, 1.442695
  %v1858 = vpow.pop %v1857
  %v1859 = vmul.f32 %v1532, 1.442695
  %v1860 = vpow.pop %v1859
  %v1861 = vmul.f32 %v1533, 1.442695
  %v1862 = vpow.pop %v1861
  %v1863 = vmul.f32 %v1534, 1.442695
  %v1864 = vpow.pop %v1863
  %v1865 = vmul.f32 %v1535, 1.442695
  %v1866 = vpow.pop %v1865
  %v1867 = vmul.f32 %v1536, 1.442695
  %v1868 = vpow.pop %v1867
  %v1869 = vmul.f32 %v1537, 1.442695
  %v1870 = vpow.pop %v1869
  %v1871 = vmul.f32 %v1538, 1.442695
  %v1872 = vpow.pop %v1871
  %v1873 = vmul.f32 %v1539, 1.442695
  %v1874 = vpow.pop %v1873
  %v1875 = vmul.f32 %v1540, 1.442695
  %v1876 = vpow.pop %v1875
  %v1877 = vadd.f32 %v1542, 1.0
  %v1878 = vadd.f32 %v1544, 1.0
  %v1879 = vadd.f32 %v1546, 1.0
  %v1880 = vadd.f32 %v1548, 1.0
  %v1881 = vadd.f32 %v1550, 1.0
  %v1882 = vadd.f32 %v1552, 1.0
  %v1883 = vadd.f32 %v1554, 1.0
  %v1884 = vadd.f32 %v1556, 1.0
  %v1885 = vadd.f32 %v1558, 1.0
  %v1886 = vadd.f32 %v1560, 1.0
  %v1887 = vadd.f32 %v1562, 1.0
  %v1888 = vadd.f32 %v1564, 1.0
  %v1889 = vadd.f32 %v1566, 1.0
  %v1890 = vadd.f32 %v1568, 1.0
  %v1891 = vadd.f32 %v1570, 1.0
  %v1892 = vadd.f32 %v1572, 1.0
  %v1893 = vadd.f32 %v1574, 1.0
  %v1894 = vadd.f32 %v1576, 1.0
  %v1895 = vadd.f32 %v1578, 1.0
  %v1896 = vadd.f32 %v1580, 1.0
  %v1897 = vadd.f32 %v1582, 1.0
  %v1898 = vadd.f32 %v1584, 1.0
  %v1899 = vadd.f32 %v1586, 1.0
  %v1900 = vadd.f32 %v1588, 1.0
  %v1901 = vadd.f32 %v1590, 1.0
  %v1902 = vadd.f32 %v1592, 1.0
  %v1903 = vadd.f32 %v1594, 1.0
  %v1904 = vadd.f32 %v1596, 1.0
  %v1905 = vadd.f32 %v1598, 1.0
  %v1906 = vadd.f32 %v1600, 1.0
  %v1907 = vadd.f32 %v1602, 1.0
  %v1908 = vadd.f32 %v1604, 1.0
  %v1909 = vadd.f32 %v1606, 1.0
  %v1910 = vadd.f32 %v1608, 1.0
  %v1911 = vadd.f32 %v1610, 1.0
  %v1912 = vadd.f32 %v1612, 1.0
  %v1913 = vadd.f32 %v1614, 1.0
  %v1914 = vadd.f32 %v1616, 1.0
  %v1915 = vadd.f32 %v1618, 1.0
  %v1916 = vadd.f32 %v1620, 1.0
  %v1917 = vadd.f32 %v1622, 1.0
  %v1918 = vadd.f32 %v1624, 1.0
  %v1919 = vadd.f32 %v1626, 1.0
  %v1920 = vadd.f32 %v1628, 1.0
  %v1921 = vadd.f32 %v1630, 1.0
  %v1922 = vadd.f32 %v1632, 1.0
  %v1923 = vadd.f32 %v1634, 1.0
  %v1924 = vadd.f32 %v1636, 1.0
  %v1925 = vadd.f32 %v1638, 1.0
  %v1926 = vadd.f32 %v1640, 1.0
  %v1927 = vadd.f32 %v1642, 1.0
  %v1928 = vadd.f32 %v1644, 1.0
  %v1929 = vadd.f32 %v1646, 1.0
  %v1930 = vadd.f32 %v1648, 1.0
  %v1931 = vadd.f32 %v1650, 1.0
  %v1932 = vadd.f32 %v1652, 1.0
  %v1933 = vadd.f32 %v1654, 1.0
  %v1934 = vadd.f32 %v1656, 1.0
  %v1935 = vadd.f32 %v1658, 1.0
  %v1936 = vadd.f32 %v1660, 1.0
  %v1937 = vadd.f32 %v1662, 1.0
  %v1938 = vadd.f32 %v1664, 1.0
  %v1939 = vadd.f32 %v1666, 1.0
  %v1940 = vadd.f32 %v1668, 1.0
  %v1941 = vadd.f32 %v1670, 1.0
  %v1942 = vadd.f32 %v1672, 1.0
  %v1943 = vadd.f32 %v1674, 1.0
  %v1944 = vadd.f32 %v1676, 1.0
  %v1945 = vadd.f32 %v1678, 1.0
  %v1946 = vadd.f32 %v1680, 1.0
  %v1947 = vadd.f32 %v1682, 1.0
  %v1948 = vadd.f32 %v1684, 1.0
  %v1949 = vadd.f32 %v1686, 1.0
  %v1950 = vadd.f32 %v1688, 1.0
  %v1951 = vadd.f32 %v1690, 1.0
  %v1952 = vadd.f32 %v1692, 1.0
  %v1953 = vadd.f32 %v1694, 1.0
  %v1954 = vadd.f32 %v1696, 1.0
  %v1955 = vadd.f32 %v1698, 1.0
  %v1956 = vadd.f32 %v1700, 1.0
  %v1957 = vadd.f32 %v1702, 1.0
  %v1958 = vadd.f32 %v1704, 1.0
  %v1959 = vadd.f32 %v1706, 1.0
  %v1960 = vadd.f32 %v1708, 1.0
  %v1961 = vadd.f32 %v1710, 1.0
  %v1962 = vadd.f32 %v1712, 1.0
  %v1963 = vadd.f32 %v1714, 1.0
  %v1964 = vadd.f32 %v1716, 1.0
  %v1965 = vadd.f32 %v1718, 1.0
  %v1966 = vadd.f32 %v1720, 1.0
  %v1967 = vadd.f32 %v1722, 1.0
  %v1968 = vadd.f32 %v1724, 1.0
  %v1969 = vadd.f32 %v1726, 1.0
  %v1970 = vadd.f32 %v1728, 1.0
  %v1971 = vadd.f32 %v1730, 1.0
  %v1972 = vadd.f32 %v1732, 1.0
  %v1973 = vadd.f32 %v1734, 1.0
  %v1974 = vadd.f32 %v1736, 1.0
  %v1975 = vadd.f32 %v1738, 1.0
  %v1976 = vadd.f32 %v1740, 1.0
  %v1977 = vadd.f32 %v1742, 1.0
  %v1978 = vadd.f32 %v1744, 1.0
  %v1979 = vadd.f32 %v1746, 1.0
  %v1980 = vadd.f32 %v1748, 1.0
  %v1981 = vadd.f32 %v1750, 1.0
  %v1982 = vadd.f32 %v1752, 1.0
  %v1983 = vadd.f32 %v1754, 1.0
  %v1984 = vadd.f32 %v1756, 1.0
  %v1985 = vadd.f32 %v1758, 1.0
  %v1986 = vadd.f32 %v1760, 1.0
  %v1987 = vadd.f32 %v1762, 1.0
  %v1988 = vadd.f32 %v1764, 1.0
  %v1989 = vadd.f32 %v1766, 1.0
  %v1990 = vadd.f32 %v1768, 1.0
  %v1991 = vadd.f32 %v1770, 1.0
  %v1992 = vadd.f32 %v1772, 1.0
  %v1993 = vadd.f32 %v1774, 1.0
  %v1994 = vadd.f32 %v1776, 1.0
  %v1995 = vadd.f32 %v1778, 1.0
  %v1996 = vadd.f32 %v1780, 1.0
  %v1997 = vadd.f32 %v1782, 1.0
  %v1998 = vadd.f32 %v1784, 1.0
  %v1999 = vadd.f32 %v1786, 1.0
  %v2000 = vadd.f32 %v1788, 1.0
  %v2001 = vadd.f32 %v1790, 1.0
  %v2002 = vadd.f32 %v1792, 1.0
  %v2003 = vadd.f32 %v1794, 1.0
  %v2004 = vadd.f32 %v1796, 1.0
  %v2005 = vadd.f32 %v1798, 1.0
  %v2006 = vadd.f32 %v1800, 1.0
  %v2007 = vadd.f32 %v1802, 1.0
  %v2008 = vadd.f32 %v1804, 1.0
  %v2009 = vadd.f32 %v1806, 1.0
  %v2010 = vadd.f32 %v1808, 1.0
  %v2011 = vadd.f32 %v1810, 1.0
  %v2012 = vadd.f32 %v1812, 1.0
  %v2013 = vadd.f32 %v1814, 1.0
  %v2014 = vadd.f32 %v1816, 1.0
  %v2015 = vadd.f32 %v1818, 1.0
  %v2016 = vadd.f32 %v1820, 1.0
  %v2017 = vadd.f32 %v1822, 1.0
  %v2018 = vadd.f32 %v1824, 1.0
  %v2019 = vadd.f32 %v1826, 1.0
  %v2020 = vadd.f32 %v1828, 1.0
  %v2021 = vadd.f32 %v1830, 1.0
  %v2022 = vadd.f32 %v1832, 1.0
  %v2023 = vadd.f32 %v1834, 1.0
  %v2024 = vadd.f32 %v1836, 1.0
  %v2025 = vadd.f32 %v1838, 1.0
  %v2026 = vadd.f32 %v1840, 1.0
  %v2027 = vadd.f32 %v1842, 1.0
  %v2028 = vadd.f32 %v1844, 1.0
  %v2029 = vadd.f32 %v1846, 1.0
  %v2030 = vadd.f32 %v1848, 1.0
  %v2031 = vadd.f32 %v1850, 1.0
  %v2032 = vadd.f32 %v1852, 1.0
  %v2033 = vadd.f32 %v1854, 1.0
  %v2034 = vadd.f32 %v1856, 1.0
  %v2035 = vadd.f32 %v1858, 1.0
  %v2036 = vadd.f32 %v1860, 1.0
  %v2037 = vadd.f32 %v1862, 1.0
  %v2038 = vadd.f32 %v1864, 1.0
  %v2039 = vadd.f32 %v1866, 1.0
  %v2040 = vadd.f32 %v1868, 1.0
  %v2041 = vadd.f32 %v1870, 1.0
  %v2042 = vadd.f32 %v1872, 1.0
  %v2043 = vadd.f32 %v1874, 1.0
  %v2044 = vadd.f32 %v1876, 1.0
  %v2045 = vrcp.pop %v1877
  %v2046 = vmul.f32 1.0, %v2045
  %v2047 = vrcp.pop %v1878
  %v2048 = vmul.f32 1.0, %v2047
  %v2049 = vrcp.pop %v1879
  %v2050 = vmul.f32 1.0, %v2049
  %v2051 = vrcp.pop %v1880
  %v2052 = vmul.f32 1.0, %v2051
  %v2053 = vrcp.pop %v1881
  %v2054 = vmul.f32 1.0, %v2053
  %v2055 = vrcp.pop %v1882
  %v2056 = vmul.f32 1.0, %v2055
  %v2057 = vrcp.pop %v1883
  %v2058 = vmul.f32 1.0, %v2057
  %v2059 = vrcp.pop %v1884
  %v2060 = vmul.f32 1.0, %v2059
  %v2061 = vrcp.pop %v1885
  %v2062 = vmul.f32 1.0, %v2061
  %v2063 = vrcp.pop %v1886
  %v2064 = vmul.f32 1.0, %v2063
  %v2065 = vrcp.pop %v1887
  %v2066 = vmul.f32 1.0, %v2065
  %v2067 = vrcp.pop %v1888
  %v2068 = vmul.f32 1.0, %v2067
  %v2069 = vrcp.pop %v1889
  %v2070 = vmul.f32 1.0, %v2069
  %v2071 = vrcp.pop %v1890
  %v2072 = vmul.f32 1.0, %v2071
  %v2073 = vrcp.pop %v1891
  %v2074 = vmul.f32 1.0, %v2073
  %v2075 = vrcp.pop %v1892
  %v2076 = vmul.f32 1.0, %v2075
  %v2077 = vrcp.pop %v1893
  %v2078 = vmul.f32 1.0, %v2077
  %v2079 = vrcp.pop %v1894
  %v2080 = vmul.f32 1.0, %v2079
  %v2081 = vrcp.pop %v1895
  %v2082 = vmul.f32 1.0, %v2081
  %v2083 = vrcp.pop %v1896
  %v2084 = vmul.f32 1.0, %v2083
  %v2085 = vrcp.pop %v1897
  %v2086 = vmul.f32 1.0, %v2085
  %v2087 = vrcp.pop %v1898
  %v2088 = vmul.f32 1.0, %v2087
  %v2089 = vrcp.pop %v1899
  %v2090 = vmul.f32 1.0, %v2089
  %v2091 = vrcp.pop %v1900
  %v2092 = vmul.f32 1.0, %v2091
  %v2093 = vrcp.pop %v1901
  %v2094 = vmul.f32 1.0, %v2093
  %v2095 = vrcp.pop %v1902
  %v2096 = vmul.f32 1.0, %v2095
  %v2097 = vrcp.pop %v1903
  %v2098 = vmul.f32 1.0, %v2097
  %v2099 = vrcp.pop %v1904
  %v2100 = vmul.f32 1.0, %v2099
  %v2101 = vrcp.pop %v1905
  %v2102 = vmul.f32 1.0, %v2101
  %v2103 = vrcp.pop %v1906
  %v2104 = vmul.f32 1.0, %v2103
  %v2105 = vrcp.pop %v1907
  %v2106 = vmul.f32 1.0, %v2105
  %v2107 = vrcp.pop %v1908
  %v2108 = vmul.f32 1.0, %v2107
  %v2109 = vrcp.pop %v1909
  %v2110 = vmul.f32 1.0, %v2109
  %v2111 = vrcp.pop %v1910
  %v2112 = vmul.f32 1.0, %v2111
  %v2113 = vrcp.pop %v1911
  %v2114 = vmul.f32 1.0, %v2113
  %v2115 = vrcp.pop %v1912
  %v2116 = vmul.f32 1.0, %v2115
  %v2117 = vrcp.pop %v1913
  %v2118 = vmul.f32 1.0, %v2117
  %v2119 = vrcp.pop %v1914
  %v2120 = vmul.f32 1.0, %v2119
  %v2121 = vrcp.pop %v1915
  %v2122 = vmul.f32 1.0, %v2121
  %v2123 = vrcp.pop %v1916
  %v2124 = vmul.f32 1.0, %v2123
  %v2125 = vrcp.pop %v1917
  %v2126 = vmul.f32 1.0, %v2125
  %v2127 = vrcp.pop %v1918
  %v2128 = vmul.f32 1.0, %v2127
  %v2129 = vrcp.pop %v1919
  %v2130 = vmul.f32 1.0, %v2129
  %v2131 = vrcp.pop %v1920
  %v2132 = vmul.f32 1.0, %v2131
  %v2133 = vrcp.pop %v1921
  %v2134 = vmul.f32 1.0, %v2133
  %v2135 = vrcp.pop %v1922
  %v2136 = vmul.f32 1.0, %v2135
  %v2137 = vrcp.pop %v1923
  %v2138 = vmul.f32 1.0, %v2137
  %v2139 = vrcp.pop %v1924
  %v2140 = vmul.f32 1.0, %v2139
  %v2141 = vrcp.pop %v1925
  %v2142 = vmul.f32 1.0, %v2141
  %v2143 = vrcp.pop %v1926
  %v2144 = vmul.f32 1.0, %v2143
  %v2145 = vrcp.pop %v1927
  %v2146 = vmul.f32 1.0, %v2145
  %v2147 = vrcp.pop %v1928
  %v2148 = vmul.f32 1.0, %v2147
  %v2149 = vrcp.pop %v1929
  %v2150 = vmul.f32 1.0, %v2149
  %v2151 = vrcp.pop %v1930
  %v2152 = vmul.f32 1.0, %v2151
  %v2153 = vrcp.pop %v1931
  %v2154 = vmul.f32 1.0, %v2153
  %v2155 = vrcp.pop %v1932
  %v2156 = vmul.f32 1.0, %v2155
  %v2157 = vrcp.pop %v1933
  %v2158 = vmul.f32 1.0, %v2157
  %v2159 = vrcp.pop %v1934
  %v2160 = vmul.f32 1.0, %v2159
  %v2161 = vrcp.pop %v1935
  %v2162 = vmul.f32 1.0, %v2161
  %v2163 = vrcp.pop %v1936
  %v2164 = vmul.f32 1.0, %v2163
  %v2165 = vrcp.pop %v1937
  %v2166 = vmul.f32 1.0, %v2165
  %v2167 = vrcp.pop %v1938
  %v2168 = vmul.f32 1.0, %v2167
  %v2169 = vrcp.pop %v1939
  %v2170 = vmul.f32 1.0, %v2169
  %v2171 = vrcp.pop %v1940
  %v2172 = vmul.f32 1.0, %v2171
  %v2173 = vrcp.pop %v1941
  %v2174 = vmul.f32 1.0, %v2173
  %v2175 = vrcp.pop %v1942
  %v2176 = vmul.f32 1.0, %v2175
  %v2177 = vrcp.pop %v1943
  %v2178 = vmul.f32 1.0, %v2177
  %v2179 = vrcp.pop %v1944
  %v2180 = vmul.f32 1.0, %v2179
  %v2181 = vrcp.pop %v1945
  %v2182 = vmul.f32 1.0, %v2181
  %v2183 = vrcp.pop %v1946
  %v2184 = vmul.f32 1.0, %v2183
  %v2185 = vrcp.pop %v1947
  %v2186 = vmul.f32 1.0, %v2185
  %v2187 = vrcp.pop %v1948
  %v2188 = vmul.f32 1.0, %v2187
  %v2189 = vrcp.pop %v1949
  %v2190 = vmul.f32 1.0, %v2189
  %v2191 = vrcp.pop %v1950
  %v2192 = vmul.f32 1.0, %v2191
  %v2193 = vrcp.pop %v1951
  %v2194 = vmul.f32 1.0, %v2193
  %v2195 = vrcp.pop %v1952
  %v2196 = vmul.f32 1.0, %v2195
  %v2197 = vrcp.pop %v1953
  %v2198 = vmul.f32 1.0, %v2197
  %v2199 = vrcp.pop %v1954
  %v2200 = vmul.f32 1.0, %v2199
  %v2201 = vrcp.pop %v1955
  %v2202 = vmul.f32 1.0, %v2201
  %v2203 = vrcp.pop %v1956
  %v2204 = vmul.f32 1.0, %v2203
  %v2205 = vrcp.pop %v1957
  %v2206 = vmul.f32 1.0, %v2205
  %v2207 = vrcp.pop %v1958
  %v2208 = vmul.f32 1.0, %v2207
  %v2209 = vrcp.pop %v1959
  %v2210 = vmul.f32 1.0, %v2209
  %v2211 = vrcp.pop %v1960
  %v2212 = vmul.f32 1.0, %v2211
  %v2213 = vrcp.pop %v1961
  %v2214 = vmul.f32 1.0, %v2213
  %v2215 = vrcp.pop %v1962
  %v2216 = vmul.f32 1.0, %v2215
  %v2217 = vrcp.pop %v1963
  %v2218 = vmul.f32 1.0, %v2217
  %v2219 = vrcp.pop %v1964
  %v2220 = vmul.f32 1.0, %v2219
  %v2221 = vrcp.pop %v1965
  %v2222 = vmul.f32 1.0, %v2221
  %v2223 = vrcp.pop %v1966
  %v2224 = vmul.f32 1.0, %v2223
  %v2225 = vrcp.pop %v1967
  %v2226 = vmul.f32 1.0, %v2225
  %v2227 = vrcp.pop %v1968
  %v2228 = vmul.f32 1.0, %v2227
  %v2229 = vrcp.pop %v1969
  %v2230 = vmul.f32 1.0, %v2229
  %v2231 = vrcp.pop %v1970
  %v2232 = vmul.f32 1.0, %v2231
  %v2233 = vrcp.pop %v1971
  %v2234 = vmul.f32 1.0, %v2233
  %v2235 = vrcp.pop %v1972
  %v2236 = vmul.f32 1.0, %v2235
  %v2237 = vrcp.pop %v1973
  %v2238 = vmul.f32 1.0, %v2237
  %v2239 = vrcp.pop %v1974
  %v2240 = vmul.f32 1.0, %v2239
  %v2241 = vrcp.pop %v1975
  %v2242 = vmul.f32 1.0, %v2241
  %v2243 = vrcp.pop %v1976
  %v2244 = vmul.f32 1.0, %v2243
  %v2245 = vrcp.pop %v1977
  %v2246 = vmul.f32 1.0, %v2245
  %v2247 = vrcp.pop %v1978
  %v2248 = vmul.f32 1.0, %v2247
  %v2249 = vrcp.pop %v1979
  %v2250 = vmul.f32 1.0, %v2249
  %v2251 = vrcp.pop %v1980
  %v2252 = vmul.f32 1.0, %v2251
  %v2253 = vrcp.pop %v1981
  %v2254 = vmul.f32 1.0, %v2253
  %v2255 = vrcp.pop %v1982
  %v2256 = vmul.f32 1.0, %v2255
  %v2257 = vrcp.pop %v1983
  %v2258 = vmul.f32 1.0, %v2257
  %v2259 = vrcp.pop %v1984
  %v2260 = vmul.f32 1.0, %v2259
  %v2261 = vrcp.pop %v1985
  %v2262 = vmul.f32 1.0, %v2261
  %v2263 = vrcp.pop %v1986
  %v2264 = vmul.f32 1.0, %v2263
  %v2265 = vrcp.pop %v1987
  %v2266 = vmul.f32 1.0, %v2265
  %v2267 = vrcp.pop %v1988
  %v2268 = vmul.f32 1.0, %v2267
  %v2269 = vrcp.pop %v1989
  %v2270 = vmul.f32 1.0, %v2269
  %v2271 = vrcp.pop %v1990
  %v2272 = vmul.f32 1.0, %v2271
  %v2273 = vrcp.pop %v1991
  %v2274 = vmul.f32 1.0, %v2273
  %v2275 = vrcp.pop %v1992
  %v2276 = vmul.f32 1.0, %v2275
  %v2277 = vrcp.pop %v1993
  %v2278 = vmul.f32 1.0, %v2277
  %v2279 = vrcp.pop %v1994
  %v2280 = vmul.f32 1.0, %v2279
  %v2281 = vrcp.pop %v1995
  %v2282 = vmul.f32 1.0, %v2281
  %v2283 = vrcp.pop %v1996
  %v2284 = vmul.f32 1.0, %v2283
  %v2285 = vrcp.pop %v1997
  %v2286 = vmul.f32 1.0, %v2285
  %v2287 = vrcp.pop %v1998
  %v2288 = vmul.f32 1.0, %v2287
  %v2289 = vrcp.pop %v1999
  %v2290 = vmul.f32 1.0, %v2289
  %v2291 = vrcp.pop %v2000
  %v2292 = vmul.f32 1.0, %v2291
  %v2293 = vrcp.pop %v2001
  %v2294 = vmul.f32 1.0, %v2293
  %v2295 = vrcp.pop %v2002
  %v2296 = vmul.f32 1.0, %v2295
  %v2297 = vrcp.pop %v2003
  %v2298 = vmul.f32 1.0, %v2297
  %v2299 = vrcp.pop %v2004
  %v2300 = vmul.f32 1.0, %v2299
  %v2301 = vrcp.pop %v2005
  %v2302 = vmul.f32 1.0, %v2301
  %v2303 = vrcp.pop %v2006
  %v2304 = vmul.f32 1.0, %v2303
  %v2305 = vrcp.pop %v2007
  %v2306 = vmul.f32 1.0, %v2305
  %v2307 = vrcp.pop %v2008
  %v2308 = vmul.f32 1.0, %v2307
  %v2309 = vrcp.pop %v2009
  %v2310 = vmul.f32 1.0, %v2309
  %v2311 = vrcp.pop %v2010
  %v2312 = vmul.f32 1.0, %v2311
  %v2313 = vrcp.pop %v2011
  %v2314 = vmul.f32 1.0, %v2313
  %v2315 = vrcp.pop %v2012
  %v2316 = vmul.f32 1.0, %v2315
  %v2317 = vrcp.pop %v2013
  %v2318 = vmul.f32 1.0, %v2317
  %v2319 = vrcp.pop %v2014
  %v2320 = vmul.f32 1.0, %v2319
  %v2321 = vrcp.pop %v2015
  %v2322 = vmul.f32 1.0, %v2321
  %v2323 = vrcp.pop %v2016
  %v2324 = vmul.f32 1.0, %v2323
  %v2325 = vrcp.pop %v2017
  %v2326 = vmul.f32 1.0, %v2325
  %v2327 = vrcp.pop %v2018
  %v2328 = vmul.f32 1.0, %v2327
  %v2329 = vrcp.pop %v2019
  %v2330 = vmul.f32 1.0, %v2329
  %v2331 = vrcp.pop %v2020
  %v2332 = vmul.f32 1.0, %v2331
  %v2333 = vrcp.pop %v2021
  %v2334 = vmul.f32 1.0, %v2333
  %v2335 = vrcp.pop %v2022
  %v2336 = vmul.f32 1.0, %v2335
  %v2337 = vrcp.pop %v2023
  %v2338 = vmul.f32 1.0, %v2337
  %v2339 = vrcp.pop %v2024
  %v2340 = vmul.f32 1.0, %v2339
  %v2341 = vrcp.pop %v2025
  %v2342 = vmul.f32 1.0, %v2341
  %v2343 = vrcp.pop %v2026
  %v2344 = vmul.f32 1.0, %v2343
  %v2345 = vrcp.pop %v2027
  %v2346 = vmul.f32 1.0, %v2345
  %v2347 = vrcp.pop %v2028
  %v2348 = vmul.f32 1.0, %v2347
  %v2349 = vrcp.pop %v2029
  %v2350 = vmul.f32 1.0, %v2349
  %v2351 = vrcp.pop %v2030
  %v2352 = vmul.f32 1.0, %v2351
  %v2353 = vrcp.pop %v2031
  %v2354 = vmul.f32 1.0, %v2353
  %v2355 = vrcp.pop %v2032
  %v2356 = vmul.f32 1.0, %v2355
  %v2357 = vrcp.pop %v2033
  %v2358 = vmul.f32 1.0, %v2357
  %v2359 = vrcp.pop %v2034
  %v2360 = vmul.f32 1.0, %v2359
  %v2361 = vrcp.pop %v2035
  %v2362 = vmul.f32 1.0, %v2361
  %v2363 = vrcp.pop %v2036
  %v2364 = vmul.f32 1.0, %v2363
  %v2365 = vrcp.pop %v2037
  %v2366 = vmul.f32 1.0, %v2365
  %v2367 = vrcp.pop %v2038
  %v2368 = vmul.f32 1.0, %v2367
  %v2369 = vrcp.pop %v2039
  %v2370 = vmul.f32 1.0, %v2369
  %v2371 = vrcp.pop %v2040
  %v2372 = vmul.f32 1.0, %v2371
  %v2373 = vrcp.pop %v2041
  %v2374 = vmul.f32 1.0, %v2373
  %v2375 = vrcp.pop %v2042
  %v2376 = vmul.f32 1.0, %v2375
  %v2377 = vrcp.pop %v2043
  %v2378 = vmul.f32 1.0, %v2377
  %v2379 = vrcp.pop %v2044
  %v2380 = vmul.f32 1.0, %v2379
  %v2381 = vld [vmem:[%s3] sm:$0xff]
  %v2382 = vld [vmem:[%s3 + $0x8] sm:$0xff]
  %v2383 = vld [vmem:[%s3 + $0x10] sm:$0xff]
  %v2384 = vld [vmem:[%s3 + $0x18] sm:$0xff]
  %v2385 = vld [vmem:[%s3 + $0x20] sm:$0xff]
  %v2386 = vld [vmem:[%s3 + $0x28] sm:$0xff]
  %v2387 = vld [vmem:[%s3 + $0x30] sm:$0xff]
  %v2388 = vld [vmem:[%s3 + $0x38] sm:$0xff]
  %v2389 = vld [vmem:[%s3 + $0x40] sm:$0xff]
  %v2390 = vld [vmem:[%s3 + $0x48] sm:$0xff]
  %v2391 = vld [vmem:[%s3 + $0x50] sm:$0xff]
  %v2392 = vld [vmem:[%s3 + $0x58] sm:$0xff]
  %v2393 = vld [vmem:[%s3 + $0x60] sm:$0xff]
  %v2394 = vld [vmem:[%s3 + $0x68] sm:$0xff]
  %v2395 = vld [vmem:[%s3 + $0x70] sm:$0xff]
  %v2396 = vld [vmem:[%s3 + $0x78] sm:$0xff]
  %v2397 = vld [vmem:[%s3 + $0x80] sm:$0xff]
  %v2398 = vld [vmem:[%s3 + $0x88] sm:$0xff]
  %v2399 = vld [vmem:[%s3 + $0x90] sm:$0xff]
  %v2400 = vld [vmem:[%s3 + $0x98] sm:$0xff]
  %v2401 = vld [vmem:[%s3 + $0xa0] sm:$0xff]
  %v2402 = vld [vmem:[%s3 + $0xa8] sm:$0xff]
  %v2403 = vld [vmem:[%s3 + $0xb0] sm:$0xff]
  %v2404 = vld [vmem:[%s3 + $0xb8] sm:$0xff]
  %v2405 = vld [vmem:[%s3 + $0xc0] sm:$0xff]
  %v2406 = vld [vmem:[%s3 + $0xc8] sm:$0xff]
  %v2407 = vld [vmem:[%s3 + $0xd0] sm:$0xff]
  %v2408 = vld [vmem:[%s3 + $0xd8] sm:$0xff]
  %v2409 = vld [vmem:[%s3 + $0xe0] sm:$0xff]
  %v2410 = vld [vmem:[%s3 + $0xe8] sm:$0xff]
  %v2411 = vld [vmem:[%s3 + $0xf0] sm:$0xff]
  %v2412 = vld [vmem:[%s3 + $0xf8] sm:$0xff]
  %v2413 = vld [vmem:[%s3 + $0x100] sm:$0xff]
  %v2414 = vld [vmem:[%s3 + $0x108] sm:$0xff]
  %v2415 = vld [vmem:[%s3 + $0x110] sm:$0xff]
  %v2416 = vld [vmem:[%s3 + $0x118] sm:$0xff]
  %v2417 = vld [vmem:[%s3 + $0x120] sm:$0xff]
  %v2418 = vld [vmem:[%s3 + $0x128] sm:$0xff]
  %v2419 = vld [vmem:[%s3 + $0x130] sm:$0xff]
  %v2420 = vld [vmem:[%s3 + $0x138] sm:$0xff]
  %v2421 = vld [vmem:[%s3 + $0x140] sm:$0xff]
  %v2422 = vld [vmem:[%s3 + $0x148] sm:$0xff]
  %v2423 = vld [vmem:[%s3 + $0x150] sm:$0xff]
  %v2424 = vld [vmem:[%s3 + $0x158] sm:$0xff]
  %v2425 = vld [vmem:[%s3 + $0x160] sm:$0xff]
  %v2426 = vld [vmem:[%s3 + $0x168] sm:$0xff]
  %v2427 = vld [vmem:[%s3 + $0x170] sm:$0xff]
  %v2428 = vld [vmem:[%s3 + $0x178] sm:$0xff]
  %v2429 = vld [vmem:[%s3 + $0x180] sm:$0xff]
  %v2430 = vld [vmem:[%s3 + $0x188] sm:$0xff]
  %v2431 = vld [vmem:[%s3 + $0x190] sm:$0xff]
  %v2432 = vld [vmem:[%s3 + $0x198] sm:$0xff]
  %v2433 = vld [vmem:[%s3 + $0x1a0] sm:$0xff]
  %v2434 = vld [vmem:[%s3 + $0x1a8] sm:$0xff]
  %v2435 = vld [vmem:[%s3 + $0x1b0] sm:$0xff]
  %v2436 = vld [vmem:[%s3 + $0x1b8] sm:$0xff]
  %v2437 = vld [vmem:[%s3 + $0x1c0] sm:$0xff]
  %v2438 = vld [vmem:[%s3 + $0x1c8] sm:$0xff]
  %v2439 = vld [vmem:[%s3 + $0x1d0] sm:$0xff]
  %v2440 = vld [vmem:[%s3 + $0x1d8] sm:$0xff]
  %v2441 = vld [vmem:[%s3 + $0x1e0] sm:$0xff]
  %v2442 = vld [vmem:[%s3 + $0x1e8] sm:$0xff]
  %v2443 = vld [vmem:[%s3 + $0x1f0] sm:$0xff]
  %v2444 = vld [vmem:[%s3 + $0x1f8] sm:$0xff]
  %v2445 = vld [vmem:[%s3 + $0x200] sm:$0xff]
  %v2446 = vld [vmem:[%s3 + $0x208] sm:$0xff]
  %v2447 = vld [vmem:[%s3 + $0x210] sm:$0xff]
  %v2448 = vld [vmem:[%s3 + $0x218] sm:$0xff]
  %v2449 = vld [vmem:[%s3 + $0x220] sm:$0xff]
  %v2450 = vld [vmem:[%s3 + $0x228] sm:$0xff]
  %v2451 = vld [vmem:[%s3 + $0x230] sm:$0xff]
  %v2452 = vld [vmem:[%s3 + $0x238] sm:$0xff]
  %v2453 = vld [vmem:[%s3 + $0x240] sm:$0xff]
  %v2454 = vld [vmem:[%s3 + $0x248] sm:$0xff]
  %v2455 = vld [vmem:[%s3 + $0x250] sm:$0xff]
  %v2456 = vld [vmem:[%s3 + $0x258] sm:$0xff]
  %v2457 = vld [vmem:[%s3 + $0x260] sm:$0xff]
  %v2458 = vld [vmem:[%s3 + $0x268] sm:$0xff]
  %v2459 = vld [vmem:[%s3 + $0x270] sm:$0xff]
  %v2460 = vld [vmem:[%s3 + $0x278] sm:$0xff]
  %v2461 = vld [vmem:[%s3 + $0x280] sm:$0xff]
  %v2462 = vld [vmem:[%s3 + $0x288] sm:$0xff]
  %v2463 = vld [vmem:[%s3 + $0x290] sm:$0xff]
  %v2464 = vld [vmem:[%s3 + $0x298] sm:$0xff]
  %v2465 = vld [vmem:[%s3 + $0x2a0] sm:$0xff]
  %v2466 = vld [vmem:[%s3 + $0x2a8] sm:$0xff]
  %v2467 = vld [vmem:[%s3 + $0x2b0] sm:$0xff]
  %v2468 = vld [vmem:[%s3 + $0x2b8] sm:$0xff]
  %v2469 = vld [vmem:[%s3 + $0x2c0] sm:$0xff]
  %v2470 = vld [vmem:[%s3 + $0x2c8] sm:$0xff]
  %v2471 = vld [vmem:[%s3 + $0x2d0] sm:$0xff]
  %v2472 = vld [vmem:[%s3 + $0x2d8] sm:$0xff]
  %v2473 = vld [vmem:[%s3 + $0x2e0] sm:$0xff]
  %v2474 = vld [vmem:[%s3 + $0x2e8] sm:$0xff]
  %v2475 = vld [vmem:[%s3 + $0x2f0] sm:$0xff]
  %v2476 = vld [vmem:[%s3 + $0x2f8] sm:$0xff]
  %v2477 = vld [vmem:[%s3 + $0x300] sm:$0xff]
  %v2478 = vld [vmem:[%s3 + $0x308] sm:$0xff]
  %v2479 = vld [vmem:[%s3 + $0x310] sm:$0xff]
  %v2480 = vld [vmem:[%s3 + $0x318] sm:$0xff]
  %v2481 = vld [vmem:[%s3 + $0x320] sm:$0xff]
  %v2482 = vld [vmem:[%s3 + $0x328] sm:$0xff]
  %v2483 = vld [vmem:[%s3 + $0x330] sm:$0xff]
  %v2484 = vld [vmem:[%s3 + $0x338] sm:$0xff]
  %v2485 = vld [vmem:[%s3 + $0x340] sm:$0xff]
  %v2486 = vld [vmem:[%s3 + $0x348] sm:$0xff]
  %v2487 = vld [vmem:[%s3 + $0x350] sm:$0xff]
  %v2488 = vld [vmem:[%s3 + $0x358] sm:$0xff]
  %v2489 = vld [vmem:[%s3 + $0x360] sm:$0xff]
  %v2490 = vld [vmem:[%s3 + $0x368] sm:$0xff]
  %v2491 = vld [vmem:[%s3 + $0x370] sm:$0xff]
  %v2492 = vld [vmem:[%s3 + $0x378] sm:$0xff]
  %v2493 = vld [vmem:[%s3 + $0x380] sm:$0xff]
  %v2494 = vld [vmem:[%s3 + $0x388] sm:$0xff]
  %v2495 = vld [vmem:[%s3 + $0x390] sm:$0xff]
  %v2496 = vld [vmem:[%s3 + $0x398] sm:$0xff]
  %v2497 = vld [vmem:[%s3 + $0x3a0] sm:$0xff]
  %v2498 = vld [vmem:[%s3 + $0x3a8] sm:$0xff]
  %v2499 = vld [vmem:[%s3 + $0x3b0] sm:$0xff]
  %v2500 = vld [vmem:[%s3 + $0x3b8] sm:$0xff]
  %v2501 = vld [vmem:[%s3 + $0x3c0] sm:$0xff]
  %v2502 = vld [vmem:[%s3 + $0x3c8] sm:$0xff]
  %v2503 = vld [vmem:[%s3 + $0x3d0] sm:$0xff]
  %v2504 = vld [vmem:[%s3 + $0x3d8] sm:$0xff]
  %v2505 = vld [vmem:[%s3 + $0x3e0] sm:$0xff]
  %v2506 = vld [vmem:[%s3 + $0x3e8] sm:$0xff]
  %v2507 = vld [vmem:[%s3 + $0x3f0] sm:$0xff]
  %v2508 = vld [vmem:[%s3 + $0x3f8] sm:$0xff]
  %v2509 = vld [vmem:[%s3 + $0x400] sm:$0xff]
  %v2510 = vld [vmem:[%s3 + $0x408] sm:$0xff]
  %v2511 = vld [vmem:[%s3 + $0x410] sm:$0xff]
  %v2512 = vld [vmem:[%s3 + $0x418] sm:$0xff]
  %v2513 = vld [vmem:[%s3 + $0x420] sm:$0xff]
  %v2514 = vld [vmem:[%s3 + $0x428] sm:$0xff]
  %v2515 = vld [vmem:[%s3 + $0x430] sm:$0xff]
  %v2516 = vld [vmem:[%s3 + $0x438] sm:$0xff]
  %v2517 = vld [vmem:[%s3 + $0x440] sm:$0xff]
  %v2518 = vld [vmem:[%s3 + $0x448] sm:$0xff]
  %v2519 = vld [vmem:[%s3 + $0x450] sm:$0xff]
  %v2520 = vld [vmem:[%s3 + $0x458] sm:$0xff]
  %v2521 = vld [vmem:[%s3 + $0x460] sm:$0xff]
  %v2522 = vld [vmem:[%s3 + $0x468] sm:$0xff]
  %v2523 = vld [vmem:[%s3 + $0x470] sm:$0xff]
  %v2524 = vld [vmem:[%s3 + $0x478] sm:$0xff]
  %v2525 = vld [vmem:[%s3 + $0x480] sm:$0xff]
  %v2526 = vld [vmem:[%s3 + $0x488] sm:$0xff]
  %v2527 = vld [vmem:[%s3 + $0x490] sm:$0xff]
  %v2528 = vld [vmem:[%s3 + $0x498] sm:$0xff]
  %v2529 = vld [vmem:[%s3 + $0x4a0] sm:$0xff]
  %v2530 = vld [vmem:[%s3 + $0x4a8] sm:$0xff]
  %v2531 = vld [vmem:[%s3 + $0x4b0] sm:$0xff]
  %v2532 = vld [vmem:[%s3 + $0x4b8] sm:$0xff]
  %v2533 = vld [vmem:[%s3 + $0x4c0] sm:$0xff]
  %v2534 = vld [vmem:[%s3 + $0x4c8] sm:$0xff]
  %v2535 = vld [vmem:[%s3 + $0x4d0] sm:$0xff]
  %v2536 = vld [vmem:[%s3 + $0x4d8] sm:$0xff]
  %v2537 = vld [vmem:[%s3 + $0x4e0] sm:$0xff]
  %v2538 = vld [vmem:[%s3 + $0x4e8] sm:$0xff]
  %v2539 = vld [vmem:[%s3 + $0x4f0] sm:$0xff]
  %v2540 = vld [vmem:[%s3 + $0x4f8] sm:$0xff]
  %v2541 = vld [vmem:[%s3 + $0x500] sm:$0xff]
  %v2542 = vld [vmem:[%s3 + $0x508] sm:$0xff]
  %v2543 = vld [vmem:[%s3 + $0x510] sm:$0xff]
  %v2544 = vld [vmem:[%s3 + $0x518] sm:$0xff]
  %v2545 = vld [vmem:[%s3 + $0x520] sm:$0xff]
  %v2546 = vld [vmem:[%s3 + $0x528] sm:$0xff]
  %v2547 = vld [vmem:[%s3 + $0x530] sm:$0xff]
  %v2548 = vld [vmem:[%s3 + $0x538] sm:$0xff]
  %v2549 = vld [vmem:[%s3 + $0x540] sm:$0xff]
  %v2550 = vld [vmem:[%s3 + $0x548] sm:$0xff]
  %v2551 = vld [vmem:[%s3 + $0x550] sm:$0xff]
  %v2552 = vld [vmem:[%s3 + $0x558] sm:$0xff]
  %v2553 = vld [vmem:[%s3 + $0x560] sm:$0xff]
  %v2554 = vld [vmem:[%s3 + $0x568] sm:$0xff]
  %v2555 = vld [vmem:[%s3 + $0x570] sm:$0xff]
  %v2556 = vld [vmem:[%s3 + $0x578] sm:$0xff]
  %v2557 = vld [vmem:[%s3 + $0x580] sm:$0xff]
  %v2558 = vld [vmem:[%s3 + $0x588] sm:$0xff]
  %v2559 = vld [vmem:[%s3 + $0x590] sm:$0xff]
  %v2560 = vld [vmem:[%s3 + $0x598] sm:$0xff]
  %v2561 = vld [vmem:[%s3 + $0x5a0] sm:$0xff]
  %v2562 = vld [vmem:[%s3 + $0x5a8] sm:$0xff]
  %v2563 = vld [vmem:[%s3 + $0x5b0] sm:$0xff]
  %v2564 = vld [vmem:[%s3 + $0x5b8] sm:$0xff]
  %v2565 = vld [vmem:[%s3 + $0x5c0] sm:$0xff]
  %v2566 = vld [vmem:[%s3 + $0x5c8] sm:$0xff]
  %v2567 = vld [vmem:[%s3 + $0x5d0] sm:$0xff]
  %v2568 = vld [vmem:[%s3 + $0x5d8] sm:$0xff]
  %v2569 = vld [vmem:[%s3 + $0x5e0] sm:$0xff]
  %v2570 = vld [vmem:[%s3 + $0x5e8] sm:$0xff]
  %v2571 = vld [vmem:[%s3 + $0x5f0] sm:$0xff]
  %v2572 = vld [vmem:[%s3 + $0x5f8] sm:$0xff]
  %v2573 = vld [vmem:[%s3 + $0x600] sm:$0xff]
  %v2574 = vld [vmem:[%s3 + $0x608] sm:$0xff]
  %v2575 = vld [vmem:[%s3 + $0x610] sm:$0xff]
  %v2576 = vld [vmem:[%s3 + $0x618] sm:$0xff]
  %v2577 = vld [vmem:[%s3 + $0x620] sm:$0xff]
  %v2578 = vld [vmem:[%s3 + $0x628] sm:$0xff]
  %v2579 = vld [vmem:[%s3 + $0x630] sm:$0xff]
  %v2580 = vld [vmem:[%s3 + $0x638] sm:$0xff]
  %v2581 = vld [vmem:[%s3 + $0x640] sm:$0xff]
  %v2582 = vld [vmem:[%s3 + $0x648] sm:$0xff]
  %v2583 = vld [vmem:[%s3 + $0x650] sm:$0xff]
  %v2584 = vld [vmem:[%s3 + $0x658] sm:$0xff]
  %v2585 = vld [vmem:[%s3 + $0x660] sm:$0xff]
  %v2586 = vld [vmem:[%s3 + $0x668] sm:$0xff]
  %v2587 = vld [vmem:[%s3 + $0x670] sm:$0xff]
  %v2588 = vld [vmem:[%s3 + $0x678] sm:$0xff]
  %v2589 = vld [vmem:[%s3 + $0x680] sm:$0xff]
  %v2590 = vld [vmem:[%s3 + $0x688] sm:$0xff]
  %v2591 = vld [vmem:[%s3 + $0x690] sm:$0xff]
  %v2592 = vld [vmem:[%s3 + $0x698] sm:$0xff]
  %v2593 = vld [vmem:[%s3 + $0x6a0] sm:$0xff]
  %v2594 = vld [vmem:[%s3 + $0x6a8] sm:$0xff]
  %v2595 = vld [vmem:[%s3 + $0x6b0] sm:$0xff]
  %v2596 = vld [vmem:[%s3 + $0x6b8] sm:$0xff]
  %v2597 = vld [vmem:[%s3 + $0x6c0] sm:$0xff]
  %v2598 = vld [vmem:[%s3 + $0x6c8] sm:$0xff]
  %v2599 = vld [vmem:[%s3 + $0x6d0] sm:$0xff]
  %v2600 = vld [vmem:[%s3 + $0x6d8] sm:$0xff]
  %v2601 = vld [vmem:[%s3 + $0x6e0] sm:$0xff]
  %v2602 = vld [vmem:[%s3 + $0x6e8] sm:$0xff]
  %v2603 = vld [vmem:[%s3 + $0x6f0] sm:$0xff]
  %v2604 = vld [vmem:[%s3 + $0x6f8] sm:$0xff]
  %v2605 = vld [vmem:[%s3 + $0x700] sm:$0xff]
  %v2606 = vld [vmem:[%s3 + $0x708] sm:$0xff]
  %v2607 = vld [vmem:[%s3 + $0x710] sm:$0xff]
  %v2608 = vld [vmem:[%s3 + $0x718] sm:$0xff]
  %v2609 = vld [vmem:[%s3 + $0x720] sm:$0xff]
  %v2610 = vld [vmem:[%s3 + $0x728] sm:$0xff]
  %v2611 = vld [vmem:[%s3 + $0x730] sm:$0xff]
  %v2612 = vld [vmem:[%s3 + $0x738] sm:$0xff]
  %v2613 = vld [vmem:[%s3 + $0x740] sm:$0xff]
  %v2614 = vld [vmem:[%s3 + $0x748] sm:$0xff]
  %v2615 = vld [vmem:[%s3 + $0x750] sm:$0xff]
  %v2616 = vld [vmem:[%s3 + $0x758] sm:$0xff]
  %v2617 = vld [vmem:[%s3 + $0x760] sm:$0xff]
  %v2618 = vld [vmem:[%s3 + $0x768] sm:$0xff]
  %v2619 = vld [vmem:[%s3 + $0x770] sm:$0xff]
  %v2620 = vld [vmem:[%s3 + $0x778] sm:$0xff]
  %v2621 = vld [vmem:[%s3 + $0x780] sm:$0xff]
  %v2622 = vld [vmem:[%s3 + $0x788] sm:$0xff]
  %v2623 = vld [vmem:[%s3 + $0x790] sm:$0xff]
  %v2624 = vld [vmem:[%s3 + $0x798] sm:$0xff]
  %v2625 = vld [vmem:[%s3 + $0x7a0] sm:$0xff]
  %v2626 = vld [vmem:[%s3 + $0x7a8] sm:$0xff]
  %v2627 = vld [vmem:[%s3 + $0x7b0] sm:$0xff]
  %v2628 = vld [vmem:[%s3 + $0x7b8] sm:$0xff]
  %v2629 = vld [vmem:[%s3 + $0x7c0] sm:$0xff]
  %v2630 = vld [vmem:[%s3 + $0x7c8] sm:$0xff]
  %v2631 = vld [vmem:[%s3 + $0x7d0] sm:$0xff]
  %v2632 = vld [vmem:[%s3 + $0x7d8] sm:$0xff]
  %v2633 = vld [vmem:[%s3 + $0x7e0] sm:$0xff]
  %v2634 = vld [vmem:[%s3 + $0x7e8] sm:$0xff]
  %v2635 = vld [vmem:[%s3 + $0x7f0] sm:$0xff]
  %v2636 = vld [vmem:[%s3 + $0x7f8] sm:$0xff]
  %v2637 = vld [vmem:[%s3 + $0x800] sm:$0xff]
  %v2638 = vld [vmem:[%s3 + $0x808] sm:$0xff]
  %v2639 = vld [vmem:[%s3 + $0x810] sm:$0xff]
  %v2640 = vld [vmem:[%s3 + $0x818] sm:$0xff]
  %v2641 = vld [vmem:[%s3 + $0x820] sm:$0xff]
  %v2642 = vld [vmem:[%s3 + $0x828] sm:$0xff]
  %v2643 = vld [vmem:[%s3 + $0x830] sm:$0xff]
  %v2644 = vld [vmem:[%s3 + $0x838] sm:$0xff]
  %v2645 = vld [vmem:[%s3 + $0x840] sm:$0xff]
  %v2646 = vld [vmem:[%s3 + $0x848] sm:$0xff]
  %v2647 = vld [vmem:[%s3 + $0x850] sm:$0xff]
  %v2648 = vld [vmem:[%s3 + $0x858] sm:$0xff]
  %v2649 = vld [vmem:[%s3 + $0x860] sm:$0xff]
  %v2650 = vld [vmem:[%s3 + $0x868] sm:$0xff]
  %v2651 = vld [vmem:[%s3 + $0x870] sm:$0xff]
  %v2652 = vld [vmem:[%s3 + $0x878] sm:$0xff]
  %v2653 = vld [vmem:[%s3 + $0x880] sm:$0xff]
  %v2654 = vld [vmem:[%s3 + $0x888] sm:$0xff]
  %v2655 = vld [vmem:[%s3 + $0x890] sm:$0xff]
  %v2656 = vld [vmem:[%s3 + $0x898] sm:$0xff]
  %v2657 = vld [vmem:[%s3 + $0x8a0] sm:$0xff]
  %v2658 = vld [vmem:[%s3 + $0x8a8] sm:$0xff]
  %v2659 = vld [vmem:[%s3 + $0x8b0] sm:$0xff]
  %v2660 = vld [vmem:[%s3 + $0x8b8] sm:$0xff]
  %v2661 = vld [vmem:[%s3 + $0x8c0] sm:$0xff]
  %v2662 = vld [vmem:[%s3 + $0x8c8] sm:$0xff]
  %v2663 = vld [vmem:[%s3 + $0x8d0] sm:$0xff]
  %v2664 = vld [vmem:[%s3 + $0x8d8] sm:$0xff]
  %v2665 = vld [vmem:[%s3 + $0x8e0] sm:$0xff]
  %v2666 = vld [vmem:[%s3 + $0x8e8] sm:$0xff]
  %v2667 = vld [vmem:[%s3 + $0x8f0] sm:$0xff]
  %v2668 = vld [vmem:[%s3 + $0x8f8] sm:$0xff]
  %v2669 = vld [vmem:[%s3 + $0x900] sm:$0xff]
  %v2670 = vld [vmem:[%s3 + $0x908] sm:$0xff]
  %v2671 = vld [vmem:[%s3 + $0x910] sm:$0xff]
  %v2672 = vld [vmem:[%s3 + $0x918] sm:$0xff]
  %v2673 = vld [vmem:[%s3 + $0x920] sm:$0xff]
  %v2674 = vld [vmem:[%s3 + $0x928] sm:$0xff]
  %v2675 = vld [vmem:[%s3 + $0x930] sm:$0xff]
  %v2676 = vld [vmem:[%s3 + $0x938] sm:$0xff]
  %v2677 = vld [vmem:[%s3 + $0x940] sm:$0xff]
  %v2678 = vld [vmem:[%s3 + $0x948] sm:$0xff]
  %v2679 = vld [vmem:[%s3 + $0x950] sm:$0xff]
  %v2680 = vld [vmem:[%s3 + $0x958] sm:$0xff]
  %v2681 = vld [vmem:[%s3 + $0x960] sm:$0xff]
  %v2682 = vld [vmem:[%s3 + $0x968] sm:$0xff]
  %v2683 = vld [vmem:[%s3 + $0x970] sm:$0xff]
  %v2684 = vld [vmem:[%s3 + $0x978] sm:$0xff]
  %v2685 = vld [vmem:[%s3 + $0x980] sm:$0xff]
  %v2686 = vld [vmem:[%s3 + $0x988] sm:$0xff]
  %v2687 = vld [vmem:[%s3 + $0x990] sm:$0xff]
  %v2688 = vld [vmem:[%s3 + $0x998] sm:$0xff]
  %v2689 = vld [vmem:[%s3 + $0x9a0] sm:$0xff]
  %v2690 = vld [vmem:[%s3 + $0x9a8] sm:$0xff]
  %v2691 = vld [vmem:[%s3 + $0x9b0] sm:$0xff]
  %v2692 = vld [vmem:[%s3 + $0x9b8] sm:$0xff]
  %v2693 = vld [vmem:[%s3 + $0x9c0] sm:$0xff]
  %v2694 = vld [vmem:[%s3 + $0x9c8] sm:$0xff]
  %v2695 = vld [vmem:[%s3 + $0x9d0] sm:$0xff]
  %v2696 = vld [vmem:[%s3 + $0x9d8] sm:$0xff]
  %v2697 = vld [vmem:[%s3 + $0x9e0] sm:$0xff]
  %v2698 = vld [vmem:[%s3 + $0x9e8] sm:$0xff]
  %v2699 = vld [vmem:[%s3 + $0x9f0] sm:$0xff]
  %v2700 = vld [vmem:[%s3 + $0x9f8] sm:$0xff]
  %v2701 = vld [vmem:[%s3 + $0xa00] sm:$0xff]
  %v2702 = vld [vmem:[%s3 + $0xa08] sm:$0xff]
  %v2703 = vld [vmem:[%s3 + $0xa10] sm:$0xff]
  %v2704 = vld [vmem:[%s3 + $0xa18] sm:$0xff]
  %v2705 = vld [vmem:[%s3 + $0xa20] sm:$0xff]
  %v2706 = vld [vmem:[%s3 + $0xa28] sm:$0xff]
  %v2707 = vld [vmem:[%s3 + $0xa30] sm:$0xff]
  %v2708 = vld [vmem:[%s3 + $0xa38] sm:$0xff]
  %v2709 = vld [vmem:[%s3 + $0xa40] sm:$0xff]
  %v2710 = vld [vmem:[%s3 + $0xa48] sm:$0xff]
  %v2711 = vld [vmem:[%s3 + $0xa50] sm:$0xff]
  %v2712 = vld [vmem:[%s3 + $0xa58] sm:$0xff]
  %v2713 = vld [vmem:[%s3 + $0xa60] sm:$0xff]
  %v2714 = vld [vmem:[%s3 + $0xa68] sm:$0xff]
  %v2715 = vld [vmem:[%s3 + $0xa70] sm:$0xff]
  %v2716 = vld [vmem:[%s3 + $0xa78] sm:$0xff]
  %2718 = vset.pattern.permute.xlu0 0
  %2719 = vperm.xlu0 %2718, %v2046
  %v2720 = vpop.permute.xlu0 %2719
  %2723 = vset.pattern.permute.xlu0 0
  %2724 = vperm.xlu0 %2723, %v2048
  %v2725 = vpop.permute.xlu0 %2724
  %2728 = vset.pattern.permute.xlu0 0
  %2729 = vperm.xlu0 %2728, %v2050
  %v2730 = vpop.permute.xlu0 %2729
  %2733 = vset.pattern.permute.xlu0 0
  %2734 = vperm.xlu0 %2733, %v2052
  %v2735 = vpop.permute.xlu0 %2734
  %2738 = vset.pattern.permute.xlu0 0
  %2739 = vperm.xlu0 %2738, %v2054
  %v2740 = vpop.permute.xlu0 %2739
  %2743 = vset.pattern.permute.xlu0 0
  %2744 = vperm.xlu0 %2743, %v2056
  %v2745 = vpop.permute.xlu0 %2744
  %2748 = vset.pattern.permute.xlu0 0
  %2749 = vperm.xlu0 %2748, %v2058
  %v2750 = vpop.permute.xlu0 %2749
  %2753 = vset.pattern.permute.xlu0 0
  %2754 = vperm.xlu0 %2753, %v2060
  %v2755 = vpop.permute.xlu0 %2754
  %2758 = vset.pattern.permute.xlu0 0
  %2759 = vperm.xlu0 %2758, %v2062
  %v2760 = vpop.permute.xlu0 %2759
  %2763 = vset.pattern.permute.xlu0 0
  %2764 = vperm.xlu0 %2763, %v2064
  %v2765 = vpop.permute.xlu0 %2764
  %2768 = vset.pattern.permute.xlu0 0
  %2769 = vperm.xlu0 %2768, %v2066
  %v2770 = vpop.permute.xlu0 %2769
  %2773 = vset.pattern.permute.xlu0 0
  %2774 = vperm.xlu0 %2773, %v2068
  %v2775 = vpop.permute.xlu0 %2774
  %2778 = vset.pattern.permute.xlu0 0
  %2779 = vperm.xlu0 %2778, %v2070
  %v2780 = vpop.permute.xlu0 %2779
  %2783 = vset.pattern.permute.xlu0 0
  %2784 = vperm.xlu0 %2783, %v2072
  %v2785 = vpop.permute.xlu0 %2784
  %2788 = vset.pattern.permute.xlu0 0
  %2789 = vperm.xlu0 %2788, %v2074
  %v2790 = vpop.permute.xlu0 %2789
  %2793 = vset.pattern.permute.xlu0 0
  %2794 = vperm.xlu0 %2793, %v2076
  %v2795 = vpop.permute.xlu0 %2794
  %2798 = vset.pattern.permute.xlu0 0
  %2799 = vperm.xlu0 %2798, %v2078
  %v2800 = vpop.permute.xlu0 %2799
  %2803 = vset.pattern.permute.xlu0 0
  %2804 = vperm.xlu0 %2803, %v2080
  %v2805 = vpop.permute.xlu0 %2804
  %2808 = vset.pattern.permute.xlu0 0
  %2809 = vperm.xlu0 %2808, %v2082
  %v2810 = vpop.permute.xlu0 %2809
  %2813 = vset.pattern.permute.xlu0 0
  %2814 = vperm.xlu0 %2813, %v2084
  %v2815 = vpop.permute.xlu0 %2814
  %2818 = vset.pattern.permute.xlu0 0
  %2819 = vperm.xlu0 %2818, %v2086
  %v2820 = vpop.permute.xlu0 %2819
  %2823 = vset.pattern.permute.xlu0 0
  %2824 = vperm.xlu0 %2823, %v2088
  %v2825 = vpop.permute.xlu0 %2824
  %2828 = vset.pattern.permute.xlu0 0
  %2829 = vperm.xlu0 %2828, %v2090
  %v2830 = vpop.permute.xlu0 %2829
  %2833 = vset.pattern.permute.xlu0 0
  %2834 = vperm.xlu0 %2833, %v2092
  %v2835 = vpop.permute.xlu0 %2834
  %2838 = vset.pattern.permute.xlu0 0
  %2839 = vperm.xlu0 %2838, %v2094
  %v2840 = vpop.permute.xlu0 %2839
  %2843 = vset.pattern.permute.xlu0 0
  %2844 = vperm.xlu0 %2843, %v2096
  %v2845 = vpop.permute.xlu0 %2844
  %2848 = vset.pattern.permute.xlu0 0
  %2849 = vperm.xlu0 %2848, %v2098
  %v2850 = vpop.permute.xlu0 %2849
  %2853 = vset.pattern.permute.xlu0 0
  %2854 = vperm.xlu0 %2853, %v2100
  %v2855 = vpop.permute.xlu0 %2854
  %2858 = vset.pattern.permute.xlu0 0
  %2859 = vperm.xlu0 %2858, %v2102
  %v2860 = vpop.permute.xlu0 %2859
  %2863 = vset.pattern.permute.xlu0 0
  %2864 = vperm.xlu0 %2863, %v2104
  %v2865 = vpop.permute.xlu0 %2864
  %2868 = vset.pattern.permute.xlu0 0
  %2869 = vperm.xlu0 %2868, %v2106
  %v2870 = vpop.permute.xlu0 %2869
  %2873 = vset.pattern.permute.xlu0 0
  %2874 = vperm.xlu0 %2873, %v2108
  %v2875 = vpop.permute.xlu0 %2874
  %2878 = vset.pattern.permute.xlu0 0
  %2879 = vperm.xlu0 %2878, %v2110
  %v2880 = vpop.permute.xlu0 %2879
  %2883 = vset.pattern.permute.xlu0 0
  %2884 = vperm.xlu0 %2883, %v2112
  %v2885 = vpop.permute.xlu0 %2884
  %2888 = vset.pattern.permute.xlu0 0
  %2889 = vperm.xlu0 %2888, %v2114
  %v2890 = vpop.permute.xlu0 %2889
  %2893 = vset.pattern.permute.xlu0 0
  %2894 = vperm.xlu0 %2893, %v2116
  %v2895 = vpop.permute.xlu0 %2894
  %2898 = vset.pattern.permute.xlu0 0
  %2899 = vperm.xlu0 %2898, %v2118
  %v2900 = vpop.permute.xlu0 %2899
  %2903 = vset.pattern.permute.xlu0 0
  %2904 = vperm.xlu0 %2903, %v2120
  %v2905 = vpop.permute.xlu0 %2904
  %2908 = vset.pattern.permute.xlu0 0
  %2909 = vperm.xlu0 %2908, %v2122
  %v2910 = vpop.permute.xlu0 %2909
  %2913 = vset.pattern.permute.xlu0 0
  %2914 = vperm.xlu0 %2913, %v2124
  %v2915 = vpop.permute.xlu0 %2914
  %2918 = vset.pattern.permute.xlu0 0
  %2919 = vperm.xlu0 %2918, %v2126
  %v2920 = vpop.permute.xlu0 %2919
  %2923 = vset.pattern.permute.xlu0 0
  %2924 = vperm.xlu0 %2923, %v2128
  %v2925 = vpop.permute.xlu0 %2924
  %2928 = vset.pattern.permute.xlu0 0
  %2929 = vperm.xlu0 %2928, %v2130
  %v2930 = vpop.permute.xlu0 %2929
  %2933 = vset.pattern.permute.xlu0 0
  %2934 = vperm.xlu0 %2933, %v2132
  %v2935 = vpop.permute.xlu0 %2934
  %2938 = vset.pattern.permute.xlu0 0
  %2939 = vperm.xlu0 %2938, %v2134
  %v2940 = vpop.permute.xlu0 %2939
  %2943 = vset.pattern.permute.xlu0 0
  %2944 = vperm.xlu0 %2943, %v2136
  %v2945 = vpop.permute.xlu0 %2944
  %2948 = vset.pattern.permute.xlu0 0
  %2949 = vperm.xlu0 %2948, %v2138
  %v2950 = vpop.permute.xlu0 %2949
  %2953 = vset.pattern.permute.xlu0 0
  %2954 = vperm.xlu0 %2953, %v2140
  %v2955 = vpop.permute.xlu0 %2954
  %2958 = vset.pattern.permute.xlu0 0
  %2959 = vperm.xlu0 %2958, %v2142
  %v2960 = vpop.permute.xlu0 %2959
  %2963 = vset.pattern.permute.xlu0 0
  %2964 = vperm.xlu0 %2963, %v2144
  %v2965 = vpop.permute.xlu0 %2964
  %2968 = vset.pattern.permute.xlu0 0
  %2969 = vperm.xlu0 %2968, %v2146
  %v2970 = vpop.permute.xlu0 %2969
  %2973 = vset.pattern.permute.xlu0 0
  %2974 = vperm.xlu0 %2973, %v2148
  %v2975 = vpop.permute.xlu0 %2974
  %2978 = vset.pattern.permute.xlu0 0
  %2979 = vperm.xlu0 %2978, %v2150
  %v2980 = vpop.permute.xlu0 %2979
  %2983 = vset.pattern.permute.xlu0 0
  %2984 = vperm.xlu0 %2983, %v2152
  %v2985 = vpop.permute.xlu0 %2984
  %2988 = vset.pattern.permute.xlu0 0
  %2989 = vperm.xlu0 %2988, %v2154
  %v2990 = vpop.permute.xlu0 %2989
  %2993 = vset.pattern.permute.xlu0 0
  %2994 = vperm.xlu0 %2993, %v2156
  %v2995 = vpop.permute.xlu0 %2994
  %2998 = vset.pattern.permute.xlu0 0
  %2999 = vperm.xlu0 %2998, %v2158
  %v3000 = vpop.permute.xlu0 %2999
  %3003 = vset.pattern.permute.xlu0 0
  %3004 = vperm.xlu0 %3003, %v2160
  %v3005 = vpop.permute.xlu0 %3004
  %3008 = vset.pattern.permute.xlu0 0
  %3009 = vperm.xlu0 %3008, %v2162
  %v3010 = vpop.permute.xlu0 %3009
  %3013 = vset.pattern.permute.xlu0 0
  %3014 = vperm.xlu0 %3013, %v2164
  %v3015 = vpop.permute.xlu0 %3014
  %3018 = vset.pattern.permute.xlu0 0
  %3019 = vperm.xlu0 %3018, %v2166
  %v3020 = vpop.permute.xlu0 %3019
  %3023 = vset.pattern.permute.xlu0 0
  %3024 = vperm.xlu0 %3023, %v2168
  %v3025 = vpop.permute.xlu0 %3024
  %3028 = vset.pattern.permute.xlu0 0
  %3029 = vperm.xlu0 %3028, %v2170
  %v3030 = vpop.permute.xlu0 %3029
  %3033 = vset.pattern.permute.xlu0 0
  %3034 = vperm.xlu0 %3033, %v2172
  %v3035 = vpop.permute.xlu0 %3034
  %3038 = vset.pattern.permute.xlu0 0
  %3039 = vperm.xlu0 %3038, %v2174
  %v3040 = vpop.permute.xlu0 %3039
  %3043 = vset.pattern.permute.xlu0 0
  %3044 = vperm.xlu0 %3043, %v2176
  %v3045 = vpop.permute.xlu0 %3044
  %3048 = vset.pattern.permute.xlu0 0
  %3049 = vperm.xlu0 %3048, %v2178
  %v3050 = vpop.permute.xlu0 %3049
  %3053 = vset.pattern.permute.xlu0 0
  %3054 = vperm.xlu0 %3053, %v2180
  %v3055 = vpop.permute.xlu0 %3054
  %3058 = vset.pattern.permute.xlu0 0
  %3059 = vperm.xlu0 %3058, %v2182
  %v3060 = vpop.permute.xlu0 %3059
  %3063 = vset.pattern.permute.xlu0 0
  %3064 = vperm.xlu0 %3063, %v2184
  %v3065 = vpop.permute.xlu0 %3064
  %3068 = vset.pattern.permute.xlu0 0
  %3069 = vperm.xlu0 %3068, %v2186
  %v3070 = vpop.permute.xlu0 %3069
  %3073 = vset.pattern.permute.xlu0 0
  %3074 = vperm.xlu0 %3073, %v2188
  %v3075 = vpop.permute.xlu0 %3074
  %3078 = vset.pattern.permute.xlu0 0
  %3079 = vperm.xlu0 %3078, %v2190
  %v3080 = vpop.permute.xlu0 %3079
  %3083 = vset.pattern.permute.xlu0 0
  %3084 = vperm.xlu0 %3083, %v2192
  %v3085 = vpop.permute.xlu0 %3084
  %3088 = vset.pattern.permute.xlu0 0
  %3089 = vperm.xlu0 %3088, %v2194
  %v3090 = vpop.permute.xlu0 %3089
  %3093 = vset.pattern.permute.xlu0 0
  %3094 = vperm.xlu0 %3093, %v2196
  %v3095 = vpop.permute.xlu0 %3094
  %3098 = vset.pattern.permute.xlu0 0
  %3099 = vperm.xlu0 %3098, %v2198
  %v3100 = vpop.permute.xlu0 %3099
  %3103 = vset.pattern.permute.xlu0 0
  %3104 = vperm.xlu0 %3103, %v2200
  %v3105 = vpop.permute.xlu0 %3104
  %3108 = vset.pattern.permute.xlu0 0
  %3109 = vperm.xlu0 %3108, %v2202
  %v3110 = vpop.permute.xlu0 %3109
  %3113 = vset.pattern.permute.xlu0 0
  %3114 = vperm.xlu0 %3113, %v2204
  %v3115 = vpop.permute.xlu0 %3114
  %3118 = vset.pattern.permute.xlu0 0
  %3119 = vperm.xlu0 %3118, %v2206
  %v3120 = vpop.permute.xlu0 %3119
  %3123 = vset.pattern.permute.xlu0 0
  %3124 = vperm.xlu0 %3123, %v2208
  %v3125 = vpop.permute.xlu0 %3124
  %3128 = vset.pattern.permute.xlu0 0
  %3129 = vperm.xlu0 %3128, %v2210
  %v3130 = vpop.permute.xlu0 %3129
  %3133 = vset.pattern.permute.xlu0 0
  %3134 = vperm.xlu0 %3133, %v2212
  %v3135 = vpop.permute.xlu0 %3134
  %3138 = vset.pattern.permute.xlu0 0
  %3139 = vperm.xlu0 %3138, %v2214
  %v3140 = vpop.permute.xlu0 %3139
  %3143 = vset.pattern.permute.xlu0 0
  %3144 = vperm.xlu0 %3143, %v2216
  %v3145 = vpop.permute.xlu0 %3144
  %3148 = vset.pattern.permute.xlu0 0
  %3149 = vperm.xlu0 %3148, %v2218
  %v3150 = vpop.permute.xlu0 %3149
  %3153 = vset.pattern.permute.xlu0 0
  %3154 = vperm.xlu0 %3153, %v2220
  %v3155 = vpop.permute.xlu0 %3154
  %3158 = vset.pattern.permute.xlu0 0
  %3159 = vperm.xlu0 %3158, %v2222
  %v3160 = vpop.permute.xlu0 %3159
  %3163 = vset.pattern.permute.xlu0 0
  %3164 = vperm.xlu0 %3163, %v2224
  %v3165 = vpop.permute.xlu0 %3164
  %3168 = vset.pattern.permute.xlu0 0
  %3169 = vperm.xlu0 %3168, %v2226
  %v3170 = vpop.permute.xlu0 %3169
  %3173 = vset.pattern.permute.xlu0 0
  %3174 = vperm.xlu0 %3173, %v2228
  %v3175 = vpop.permute.xlu0 %3174
  %3178 = vset.pattern.permute.xlu0 0
  %3179 = vperm.xlu0 %3178, %v2230
  %v3180 = vpop.permute.xlu0 %3179
  %3183 = vset.pattern.permute.xlu0 0
  %3184 = vperm.xlu0 %3183, %v2232
  %v3185 = vpop.permute.xlu0 %3184
  %3188 = vset.pattern.permute.xlu0 0
  %3189 = vperm.xlu0 %3188, %v2234
  %v3190 = vpop.permute.xlu0 %3189
  %3193 = vset.pattern.permute.xlu0 0
  %3194 = vperm.xlu0 %3193, %v2236
  %v3195 = vpop.permute.xlu0 %3194
  %3198 = vset.pattern.permute.xlu0 0
  %3199 = vperm.xlu0 %3198, %v2238
  %v3200 = vpop.permute.xlu0 %3199
  %3203 = vset.pattern.permute.xlu0 0
  %3204 = vperm.xlu0 %3203, %v2240
  %v3205 = vpop.permute.xlu0 %3204
  %3208 = vset.pattern.permute.xlu0 0
  %3209 = vperm.xlu0 %3208, %v2242
  %v3210 = vpop.permute.xlu0 %3209
  %3213 = vset.pattern.permute.xlu0 0
  %3214 = vperm.xlu0 %3213, %v2244
  %v3215 = vpop.permute.xlu0 %3214
  %3218 = vset.pattern.permute.xlu0 0
  %3219 = vperm.xlu0 %3218, %v2246
  %v3220 = vpop.permute.xlu0 %3219
  %3223 = vset.pattern.permute.xlu0 0
  %3224 = vperm.xlu0 %3223, %v2248
  %v3225 = vpop.permute.xlu0 %3224
  %3228 = vset.pattern.permute.xlu0 0
  %3229 = vperm.xlu0 %3228, %v2250
  %v3230 = vpop.permute.xlu0 %3229
  %3233 = vset.pattern.permute.xlu0 0
  %3234 = vperm.xlu0 %3233, %v2252
  %v3235 = vpop.permute.xlu0 %3234
  %3238 = vset.pattern.permute.xlu0 0
  %3239 = vperm.xlu0 %3238, %v2254
  %v3240 = vpop.permute.xlu0 %3239
  %3243 = vset.pattern.permute.xlu0 0
  %3244 = vperm.xlu0 %3243, %v2256
  %v3245 = vpop.permute.xlu0 %3244
  %3248 = vset.pattern.permute.xlu0 0
  %3249 = vperm.xlu0 %3248, %v2258
  %v3250 = vpop.permute.xlu0 %3249
  %3253 = vset.pattern.permute.xlu0 0
  %3254 = vperm.xlu0 %3253, %v2260
  %v3255 = vpop.permute.xlu0 %3254
  %3258 = vset.pattern.permute.xlu0 0
  %3259 = vperm.xlu0 %3258, %v2262
  %v3260 = vpop.permute.xlu0 %3259
  %3263 = vset.pattern.permute.xlu0 0
  %3264 = vperm.xlu0 %3263, %v2264
  %v3265 = vpop.permute.xlu0 %3264
  %3268 = vset.pattern.permute.xlu0 0
  %3269 = vperm.xlu0 %3268, %v2266
  %v3270 = vpop.permute.xlu0 %3269
  %3273 = vset.pattern.permute.xlu0 0
  %3274 = vperm.xlu0 %3273, %v2268
  %v3275 = vpop.permute.xlu0 %3274
  %3278 = vset.pattern.permute.xlu0 0
  %3279 = vperm.xlu0 %3278, %v2270
  %v3280 = vpop.permute.xlu0 %3279
  %3283 = vset.pattern.permute.xlu0 0
  %3284 = vperm.xlu0 %3283, %v2272
  %v3285 = vpop.permute.xlu0 %3284
  %3288 = vset.pattern.permute.xlu0 0
  %3289 = vperm.xlu0 %3288, %v2274
  %v3290 = vpop.permute.xlu0 %3289
  %3293 = vset.pattern.permute.xlu0 0
  %3294 = vperm.xlu0 %3293, %v2276
  %v3295 = vpop.permute.xlu0 %3294
  %3298 = vset.pattern.permute.xlu0 0
  %3299 = vperm.xlu0 %3298, %v2278
  %v3300 = vpop.permute.xlu0 %3299
  %3303 = vset.pattern.permute.xlu0 0
  %3304 = vperm.xlu0 %3303, %v2280
  %v3305 = vpop.permute.xlu0 %3304
  %3308 = vset.pattern.permute.xlu0 0
  %3309 = vperm.xlu0 %3308, %v2282
  %v3310 = vpop.permute.xlu0 %3309
  %3313 = vset.pattern.permute.xlu0 0
  %3314 = vperm.xlu0 %3313, %v2284
  %v3315 = vpop.permute.xlu0 %3314
  %3318 = vset.pattern.permute.xlu0 0
  %3319 = vperm.xlu0 %3318, %v2286
  %v3320 = vpop.permute.xlu0 %3319
  %3323 = vset.pattern.permute.xlu0 0
  %3324 = vperm.xlu0 %3323, %v2288
  %v3325 = vpop.permute.xlu0 %3324
  %3328 = vset.pattern.permute.xlu0 0
  %3329 = vperm.xlu0 %3328, %v2290
  %v3330 = vpop.permute.xlu0 %3329
  %3333 = vset.pattern.permute.xlu0 0
  %3334 = vperm.xlu0 %3333, %v2292
  %v3335 = vpop.permute.xlu0 %3334
  %3338 = vset.pattern.permute.xlu0 0
  %3339 = vperm.xlu0 %3338, %v2294
  %v3340 = vpop.permute.xlu0 %3339
  %3343 = vset.pattern.permute.xlu0 0
  %3344 = vperm.xlu0 %3343, %v2296
  %v3345 = vpop.permute.xlu0 %3344
  %3348 = vset.pattern.permute.xlu0 0
  %3349 = vperm.xlu0 %3348, %v2298
  %v3350 = vpop.permute.xlu0 %3349
  %3353 = vset.pattern.permute.xlu0 0
  %3354 = vperm.xlu0 %3353, %v2300
  %v3355 = vpop.permute.xlu0 %3354
  %3358 = vset.pattern.permute.xlu0 0
  %3359 = vperm.xlu0 %3358, %v2302
  %v3360 = vpop.permute.xlu0 %3359
  %3363 = vset.pattern.permute.xlu0 0
  %3364 = vperm.xlu0 %3363, %v2304
  %v3365 = vpop.permute.xlu0 %3364
  %3368 = vset.pattern.permute.xlu0 0
  %3369 = vperm.xlu0 %3368, %v2306
  %v3370 = vpop.permute.xlu0 %3369
  %3373 = vset.pattern.permute.xlu0 0
  %3374 = vperm.xlu0 %3373, %v2308
  %v3375 = vpop.permute.xlu0 %3374
  %3378 = vset.pattern.permute.xlu0 0
  %3379 = vperm.xlu0 %3378, %v2310
  %v3380 = vpop.permute.xlu0 %3379
  %3383 = vset.pattern.permute.xlu0 0
  %3384 = vperm.xlu0 %3383, %v2312
  %v3385 = vpop.permute.xlu0 %3384
  %3388 = vset.pattern.permute.xlu0 0
  %3389 = vperm.xlu0 %3388, %v2314
  %v3390 = vpop.permute.xlu0 %3389
  %3393 = vset.pattern.permute.xlu0 0
  %3394 = vperm.xlu0 %3393, %v2316
  %v3395 = vpop.permute.xlu0 %3394
  %3398 = vset.pattern.permute.xlu0 0
  %3399 = vperm.xlu0 %3398, %v2318
  %v3400 = vpop.permute.xlu0 %3399
  %3403 = vset.pattern.permute.xlu0 0
  %3404 = vperm.xlu0 %3403, %v2320
  %v3405 = vpop.permute.xlu0 %3404
  %3408 = vset.pattern.permute.xlu0 0
  %3409 = vperm.xlu0 %3408, %v2322
  %v3410 = vpop.permute.xlu0 %3409
  %3413 = vset.pattern.permute.xlu0 0
  %3414 = vperm.xlu0 %3413, %v2324
  %v3415 = vpop.permute.xlu0 %3414
  %3418 = vset.pattern.permute.xlu0 0
  %3419 = vperm.xlu0 %3418, %v2326
  %v3420 = vpop.permute.xlu0 %3419
  %3423 = vset.pattern.permute.xlu0 0
  %3424 = vperm.xlu0 %3423, %v2328
  %v3425 = vpop.permute.xlu0 %3424
  %3428 = vset.pattern.permute.xlu0 0
  %3429 = vperm.xlu0 %3428, %v2330
  %v3430 = vpop.permute.xlu0 %3429
  %3433 = vset.pattern.permute.xlu0 0
  %3434 = vperm.xlu0 %3433, %v2332
  %v3435 = vpop.permute.xlu0 %3434
  %3438 = vset.pattern.permute.xlu0 0
  %3439 = vperm.xlu0 %3438, %v2334
  %v3440 = vpop.permute.xlu0 %3439
  %3443 = vset.pattern.permute.xlu0 0
  %3444 = vperm.xlu0 %3443, %v2336
  %v3445 = vpop.permute.xlu0 %3444
  %3448 = vset.pattern.permute.xlu0 0
  %3449 = vperm.xlu0 %3448, %v2338
  %v3450 = vpop.permute.xlu0 %3449
  %3453 = vset.pattern.permute.xlu0 0
  %3454 = vperm.xlu0 %3453, %v2340
  %v3455 = vpop.permute.xlu0 %3454
  %3458 = vset.pattern.permute.xlu0 0
  %3459 = vperm.xlu0 %3458, %v2342
  %v3460 = vpop.permute.xlu0 %3459
  %3463 = vset.pattern.permute.xlu0 0
  %3464 = vperm.xlu0 %3463, %v2344
  %v3465 = vpop.permute.xlu0 %3464
  %3468 = vset.pattern.permute.xlu0 0
  %3469 = vperm.xlu0 %3468, %v2346
  %v3470 = vpop.permute.xlu0 %3469
  %3473 = vset.pattern.permute.xlu0 0
  %3474 = vperm.xlu0 %3473, %v2348
  %v3475 = vpop.permute.xlu0 %3474
  %3478 = vset.pattern.permute.xlu0 0
  %3479 = vperm.xlu0 %3478, %v2350
  %v3480 = vpop.permute.xlu0 %3479
  %3483 = vset.pattern.permute.xlu0 0
  %3484 = vperm.xlu0 %3483, %v2352
  %v3485 = vpop.permute.xlu0 %3484
  %3488 = vset.pattern.permute.xlu0 0
  %3489 = vperm.xlu0 %3488, %v2354
  %v3490 = vpop.permute.xlu0 %3489
  %3493 = vset.pattern.permute.xlu0 0
  %3494 = vperm.xlu0 %3493, %v2356
  %v3495 = vpop.permute.xlu0 %3494
  %3498 = vset.pattern.permute.xlu0 0
  %3499 = vperm.xlu0 %3498, %v2358
  %v3500 = vpop.permute.xlu0 %3499
  %3503 = vset.pattern.permute.xlu0 0
  %3504 = vperm.xlu0 %3503, %v2360
  %v3505 = vpop.permute.xlu0 %3504
  %3508 = vset.pattern.permute.xlu0 0
  %3509 = vperm.xlu0 %3508, %v2362
  %v3510 = vpop.permute.xlu0 %3509
  %3513 = vset.pattern.permute.xlu0 0
  %3514 = vperm.xlu0 %3513, %v2364
  %v3515 = vpop.permute.xlu0 %3514
  %3518 = vset.pattern.permute.xlu0 0
  %3519 = vperm.xlu0 %3518, %v2366
  %v3520 = vpop.permute.xlu0 %3519
  %3523 = vset.pattern.permute.xlu0 0
  %3524 = vperm.xlu0 %3523, %v2368
  %v3525 = vpop.permute.xlu0 %3524
  %3528 = vset.pattern.permute.xlu0 0
  %3529 = vperm.xlu0 %3528, %v2370
  %v3530 = vpop.permute.xlu0 %3529
  %3533 = vset.pattern.permute.xlu0 0
  %3534 = vperm.xlu0 %3533, %v2372
  %v3535 = vpop.permute.xlu0 %3534
  %3538 = vset.pattern.permute.xlu0 0
  %3539 = vperm.xlu0 %3538, %v2374
  %v3540 = vpop.permute.xlu0 %3539
  %3543 = vset.pattern.permute.xlu0 0
  %3544 = vperm.xlu0 %3543, %v2376
  %v3545 = vpop.permute.xlu0 %3544
  %3548 = vset.pattern.permute.xlu0 0
  %3549 = vperm.xlu0 %3548, %v2378
  %v3550 = vpop.permute.xlu0 %3549
  %3553 = vset.pattern.permute.xlu0 0
  %3554 = vperm.xlu0 %3553, %v2380
  %v3555 = vpop.permute.xlu0 %3554
  %v3557 = vmul.f32 %v2720, %v2381
  %v3558 = vmul.f32 %v2720, %v2382
  %v3559 = vmul.f32 %v2725, %v2383
  %v3560 = vmul.f32 %v2725, %v2384
  %v3561 = vmul.f32 %v2730, %v2385
  %v3562 = vmul.f32 %v2730, %v2386
  %v3563 = vmul.f32 %v2735, %v2387
  %v3564 = vmul.f32 %v2735, %v2388
  %v3565 = vmul.f32 %v2740, %v2389
  %v3566 = vmul.f32 %v2740, %v2390
  %v3567 = vmul.f32 %v2745, %v2391
  %v3568 = vmul.f32 %v2745, %v2392
  %v3569 = vmul.f32 %v2750, %v2393
  %v3570 = vmul.f32 %v2750, %v2394
  %v3571 = vmul.f32 %v2755, %v2395
  %v3572 = vmul.f32 %v2755, %v2396
  %v3573 = vmul.f32 %v2760, %v2397
  %v3574 = vmul.f32 %v2760, %v2398
  %v3575 = vmul.f32 %v2765, %v2399
  %v3576 = vmul.f32 %v2765, %v2400
  %v3577 = vmul.f32 %v2770, %v2401
  %v3578 = vmul.f32 %v2770, %v2402
  %v3579 = vmul.f32 %v2775, %v2403
  %v3580 = vmul.f32 %v2775, %v2404
  %v3581 = vmul.f32 %v2780, %v2405
  %v3582 = vmul.f32 %v2780, %v2406
  %v3583 = vmul.f32 %v2785, %v2407
  %v3584 = vmul.f32 %v2785, %v2408
  %v3585 = vmul.f32 %v2790, %v2409
  %v3586 = vmul.f32 %v2790, %v2410
  %v3587 = vmul.f32 %v2795, %v2411
  %v3588 = vmul.f32 %v2795, %v2412
  %v3589 = vmul.f32 %v2800, %v2413
  %v3590 = vmul.f32 %v2800, %v2414
  %v3591 = vmul.f32 %v2805, %v2415
  %v3592 = vmul.f32 %v2805, %v2416
  %v3593 = vmul.f32 %v2810, %v2417
  %v3594 = vmul.f32 %v2810, %v2418
  %v3595 = vmul.f32 %v2815, %v2419
  %v3596 = vmul.f32 %v2815, %v2420
  %v3597 = vmul.f32 %v2820, %v2421
  %v3598 = vmul.f32 %v2820, %v2422
  %v3599 = vmul.f32 %v2825, %v2423
  %v3600 = vmul.f32 %v2825, %v2424
  %v3601 = vmul.f32 %v2830, %v2425
  %v3602 = vmul.f32 %v2830, %v2426
  %v3603 = vmul.f32 %v2835, %v2427
  %v3604 = vmul.f32 %v2835, %v2428
  %v3605 = vmul.f32 %v2840, %v2429
  %v3606 = vmul.f32 %v2840, %v2430
  %v3607 = vmul.f32 %v2845, %v2431
  %v3608 = vmul.f32 %v2845, %v2432
  %v3609 = vmul.f32 %v2850, %v2433
  %v3610 = vmul.f32 %v2850, %v2434
  %v3611 = vmul.f32 %v2855, %v2435
  %v3612 = vmul.f32 %v2855, %v2436
  %v3613 = vmul.f32 %v2860, %v2437
  %v3614 = vmul.f32 %v2860, %v2438
  %v3615 = vmul.f32 %v2865, %v2439
  %v3616 = vmul.f32 %v2865, %v2440
  %v3617 = vmul.f32 %v2870, %v2441
  %v3618 = vmul.f32 %v2870, %v2442
  %v3619 = vmul.f32 %v2875, %v2443
  %v3620 = vmul.f32 %v2875, %v2444
  %v3621 = vmul.f32 %v2880, %v2445
  %v3622 = vmul.f32 %v2880, %v2446
  %v3623 = vmul.f32 %v2885, %v2447
  %v3624 = vmul.f32 %v2885, %v2448
  %v3625 = vmul.f32 %v2890, %v2449
  %v3626 = vmul.f32 %v2890, %v2450
  %v3627 = vmul.f32 %v2895, %v2451
  %v3628 = vmul.f32 %v2895, %v2452
  %v3629 = vmul.f32 %v2900, %v2453
  %v3630 = vmul.f32 %v2900, %v2454
  %v3631 = vmul.f32 %v2905, %v2455
  %v3632 = vmul.f32 %v2905, %v2456
  %v3633 = vmul.f32 %v2910, %v2457
  %v3634 = vmul.f32 %v2910, %v2458
  %v3635 = vmul.f32 %v2915, %v2459
  %v3636 = vmul.f32 %v2915, %v2460
  %v3637 = vmul.f32 %v2920, %v2461
  %v3638 = vmul.f32 %v2920, %v2462
  %v3639 = vmul.f32 %v2925, %v2463
  %v3640 = vmul.f32 %v2925, %v2464
  %v3641 = vmul.f32 %v2930, %v2465
  %v3642 = vmul.f32 %v2930, %v2466
  %v3643 = vmul.f32 %v2935, %v2467
  %v3644 = vmul.f32 %v2935, %v2468
  %v3645 = vmul.f32 %v2940, %v2469
  %v3646 = vmul.f32 %v2940, %v2470
  %v3647 = vmul.f32 %v2945, %v2471
  %v3648 = vmul.f32 %v2945, %v2472
  %v3649 = vmul.f32 %v2950, %v2473
  %v3650 = vmul.f32 %v2950, %v2474
  %v3651 = vmul.f32 %v2955, %v2475
  %v3652 = vmul.f32 %v2955, %v2476
  %v3653 = vmul.f32 %v2960, %v2477
  %v3654 = vmul.f32 %v2960, %v2478
  %v3655 = vmul.f32 %v2965, %v2479
  %v3656 = vmul.f32 %v2965, %v2480
  %v3657 = vmul.f32 %v2970, %v2481
  %v3658 = vmul.f32 %v2970, %v2482
  %v3659 = vmul.f32 %v2975, %v2483
  %v3660 = vmul.f32 %v2975, %v2484
  %v3661 = vmul.f32 %v2980, %v2485
  %v3662 = vmul.f32 %v2980, %v2486
  %v3663 = vmul.f32 %v2985, %v2487
  %v3664 = vmul.f32 %v2985, %v2488
  %v3665 = vmul.f32 %v2990, %v2489
  %v3666 = vmul.f32 %v2990, %v2490
  %v3667 = vmul.f32 %v2995, %v2491
  %v3668 = vmul.f32 %v2995, %v2492
  %v3669 = vmul.f32 %v3000, %v2493
  %v3670 = vmul.f32 %v3000, %v2494
  %v3671 = vmul.f32 %v3005, %v2495
  %v3672 = vmul.f32 %v3005, %v2496
  %v3673 = vmul.f32 %v3010, %v2497
  %v3674 = vmul.f32 %v3010, %v2498
  %v3675 = vmul.f32 %v3015, %v2499
  %v3676 = vmul.f32 %v3015, %v2500
  %v3677 = vmul.f32 %v3020, %v2501
  %v3678 = vmul.f32 %v3020, %v2502
  %v3679 = vmul.f32 %v3025, %v2503
  %v3680 = vmul.f32 %v3025, %v2504
  %v3681 = vmul.f32 %v3030, %v2505
  %v3682 = vmul.f32 %v3030, %v2506
  %v3683 = vmul.f32 %v3035, %v2507
  %v3684 = vmul.f32 %v3035, %v2508
  %v3685 = vmul.f32 %v3040, %v2509
  %v3686 = vmul.f32 %v3040, %v2510
  %v3687 = vmul.f32 %v3045, %v2511
  %v3688 = vmul.f32 %v3045, %v2512
  %v3689 = vmul.f32 %v3050, %v2513
  %v3690 = vmul.f32 %v3050, %v2514
  %v3691 = vmul.f32 %v3055, %v2515
  %v3692 = vmul.f32 %v3055, %v2516
  %v3693 = vmul.f32 %v3060, %v2517
  %v3694 = vmul.f32 %v3060, %v2518
  %v3695 = vmul.f32 %v3065, %v2519
  %v3696 = vmul.f32 %v3065, %v2520
  %v3697 = vmul.f32 %v3070, %v2521
  %v3698 = vmul.f32 %v3070, %v2522
  %v3699 = vmul.f32 %v3075, %v2523
  %v3700 = vmul.f32 %v3075, %v2524
  %v3701 = vmul.f32 %v3080, %v2525
  %v3702 = vmul.f32 %v3080, %v2526
  %v3703 = vmul.f32 %v3085, %v2527
  %v3704 = vmul.f32 %v3085, %v2528
  %v3705 = vmul.f32 %v3090, %v2529
  %v3706 = vmul.f32 %v3090, %v2530
  %v3707 = vmul.f32 %v3095, %v2531
  %v3708 = vmul.f32 %v3095, %v2532
  %v3709 = vmul.f32 %v3100, %v2533
  %v3710 = vmul.f32 %v3100, %v2534
  %v3711 = vmul.f32 %v3105, %v2535
  %v3712 = vmul.f32 %v3105, %v2536
  %v3713 = vmul.f32 %v3110, %v2537
  %v3714 = vmul.f32 %v3110, %v2538
  %v3715 = vmul.f32 %v3115, %v2539
  %v3716 = vmul.f32 %v3115, %v2540
  %v3717 = vmul.f32 %v3120, %v2541
  %v3718 = vmul.f32 %v3120, %v2542
  %v3719 = vmul.f32 %v3125, %v2543
  %v3720 = vmul.f32 %v3125, %v2544
  %v3721 = vmul.f32 %v3130, %v2545
  %v3722 = vmul.f32 %v3130, %v2546
  %v3723 = vmul.f32 %v3135, %v2547
  %v3724 = vmul.f32 %v3135, %v2548
  %v3725 = vmul.f32 %v3140, %v2549
  %v3726 = vmul.f32 %v3140, %v2550
  %v3727 = vmul.f32 %v3145, %v2551
  %v3728 = vmul.f32 %v3145, %v2552
  %v3729 = vmul.f32 %v3150, %v2553
  %v3730 = vmul.f32 %v3150, %v2554
  %v3731 = vmul.f32 %v3155, %v2555
  %v3732 = vmul.f32 %v3155, %v2556
  %v3733 = vmul.f32 %v3160, %v2557
  %v3734 = vmul.f32 %v3160, %v2558
  %v3735 = vmul.f32 %v3165, %v2559
  %v3736 = vmul.f32 %v3165, %v2560
  %v3737 = vmul.f32 %v3170, %v2561
  %v3738 = vmul.f32 %v3170, %v2562
  %v3739 = vmul.f32 %v3175, %v2563
  %v3740 = vmul.f32 %v3175, %v2564
  %v3741 = vmul.f32 %v3180, %v2565
  %v3742 = vmul.f32 %v3180, %v2566
  %v3743 = vmul.f32 %v3185, %v2567
  %v3744 = vmul.f32 %v3185, %v2568
  %v3745 = vmul.f32 %v3190, %v2569
  %v3746 = vmul.f32 %v3190, %v2570
  %v3747 = vmul.f32 %v3195, %v2571
  %v3748 = vmul.f32 %v3195, %v2572
  %v3749 = vmul.f32 %v3200, %v2573
  %v3750 = vmul.f32 %v3200, %v2574
  %v3751 = vmul.f32 %v3205, %v2575
  %v3752 = vmul.f32 %v3205, %v2576
  %v3753 = vmul.f32 %v3210, %v2577
  %v3754 = vmul.f32 %v3210, %v2578
  %v3755 = vmul.f32 %v3215, %v2579
  %v3756 = vmul.f32 %v3215, %v2580
  %v3757 = vmul.f32 %v3220, %v2581
  %v3758 = vmul.f32 %v3220, %v2582
  %v3759 = vmul.f32 %v3225, %v2583
  %v3760 = vmul.f32 %v3225, %v2584
  %v3761 = vmul.f32 %v3230, %v2585
  %v3762 = vmul.f32 %v3230, %v2586
  %v3763 = vmul.f32 %v3235, %v2587
  %v3764 = vmul.f32 %v3235, %v2588
  %v3765 = vmul.f32 %v3240, %v2589
  %v3766 = vmul.f32 %v3240, %v2590
  %v3767 = vmul.f32 %v3245, %v2591
  %v3768 = vmul.f32 %v3245, %v2592
  %v3769 = vmul.f32 %v3250, %v2593
  %v3770 = vmul.f32 %v3250, %v2594
  %v3771 = vmul.f32 %v3255, %v2595
  %v3772 = vmul.f32 %v3255, %v2596
  %v3773 = vmul.f32 %v3260, %v2597
  %v3774 = vmul.f32 %v3260, %v2598
  %v3775 = vmul.f32 %v3265, %v2599
  %v3776 = vmul.f32 %v3265, %v2600
  %v3777 = vmul.f32 %v3270, %v2601
  %v3778 = vmul.f32 %v3270, %v2602
  %v3779 = vmul.f32 %v3275, %v2603
  %v3780 = vmul.f32 %v3275, %v2604
  %v3781 = vmul.f32 %v3280, %v2605
  %v3782 = vmul.f32 %v3280, %v2606
  %v3783 = vmul.f32 %v3285, %v2607
  %v3784 = vmul.f32 %v3285, %v2608
  %v3785 = vmul.f32 %v3290, %v2609
  %v3786 = vmul.f32 %v3290, %v2610
  %v3787 = vmul.f32 %v3295, %v2611
  %v3788 = vmul.f32 %v3295, %v2612
  %v3789 = vmul.f32 %v3300, %v2613
  %v3790 = vmul.f32 %v3300, %v2614
  %v3791 = vmul.f32 %v3305, %v2615
  %v3792 = vmul.f32 %v3305, %v2616
  %v3793 = vmul.f32 %v3310, %v2617
  %v3794 = vmul.f32 %v3310, %v2618
  %v3795 = vmul.f32 %v3315, %v2619
  %v3796 = vmul.f32 %v3315, %v2620
  %v3797 = vmul.f32 %v3320, %v2621
  %v3798 = vmul.f32 %v3320, %v2622
  %v3799 = vmul.f32 %v3325, %v2623
  %v3800 = vmul.f32 %v3325, %v2624
  %v3801 = vmul.f32 %v3330, %v2625
  %v3802 = vmul.f32 %v3330, %v2626
  %v3803 = vmul.f32 %v3335, %v2627
  %v3804 = vmul.f32 %v3335, %v2628
  %v3805 = vmul.f32 %v3340, %v2629
  %v3806 = vmul.f32 %v3340, %v2630
  %v3807 = vmul.f32 %v3345, %v2631
  %v3808 = vmul.f32 %v3345, %v2632
  %v3809 = vmul.f32 %v3350, %v2633
  %v3810 = vmul.f32 %v3350, %v2634
  %v3811 = vmul.f32 %v3355, %v2635
  %v3812 = vmul.f32 %v3355, %v2636
  %v3813 = vmul.f32 %v3360, %v2637
  %v3814 = vmul.f32 %v3360, %v2638
  %v3815 = vmul.f32 %v3365, %v2639
  %v3816 = vmul.f32 %v3365, %v2640
  %v3817 = vmul.f32 %v3370, %v2641
  %v3818 = vmul.f32 %v3370, %v2642
  %v3819 = vmul.f32 %v3375, %v2643
  %v3820 = vmul.f32 %v3375, %v2644
  %v3821 = vmul.f32 %v3380, %v2645
  %v3822 = vmul.f32 %v3380, %v2646
  %v3823 = vmul.f32 %v3385, %v2647
  %v3824 = vmul.f32 %v3385, %v2648
  %v3825 = vmul.f32 %v3390, %v2649
  %v3826 = vmul.f32 %v3390, %v2650
  %v3827 = vmul.f32 %v3395, %v2651
  %v3828 = vmul.f32 %v3395, %v2652
  %v3829 = vmul.f32 %v3400, %v2653
  %v3830 = vmul.f32 %v3400, %v2654
  %v3831 = vmul.f32 %v3405, %v2655
  %v3832 = vmul.f32 %v3405, %v2656
  %v3833 = vmul.f32 %v3410, %v2657
  %v3834 = vmul.f32 %v3410, %v2658
  %v3835 = vmul.f32 %v3415, %v2659
  %v3836 = vmul.f32 %v3415, %v2660
  %v3837 = vmul.f32 %v3420, %v2661
  %v3838 = vmul.f32 %v3420, %v2662
  %v3839 = vmul.f32 %v3425, %v2663
  %v3840 = vmul.f32 %v3425, %v2664
  %v3841 = vmul.f32 %v3430, %v2665
  %v3842 = vmul.f32 %v3430, %v2666
  %v3843 = vmul.f32 %v3435, %v2667
  %v3844 = vmul.f32 %v3435, %v2668
  %v3845 = vmul.f32 %v3440, %v2669
  %v3846 = vmul.f32 %v3440, %v2670
  %v3847 = vmul.f32 %v3445, %v2671
  %v3848 = vmul.f32 %v3445, %v2672
  %v3849 = vmul.f32 %v3450, %v2673
  %v3850 = vmul.f32 %v3450, %v2674
  %v3851 = vmul.f32 %v3455, %v2675
  %v3852 = vmul.f32 %v3455, %v2676
  %v3853 = vmul.f32 %v3460, %v2677
  %v3854 = vmul.f32 %v3460, %v2678
  %v3855 = vmul.f32 %v3465, %v2679
  %v3856 = vmul.f32 %v3465, %v2680
  %v3857 = vmul.f32 %v3470, %v2681
  %v3858 = vmul.f32 %v3470, %v2682
  %v3859 = vmul.f32 %v3475, %v2683
  %v3860 = vmul.f32 %v3475, %v2684
  %v3861 = vmul.f32 %v3480, %v2685
  %v3862 = vmul.f32 %v3480, %v2686
  %v3863 = vmul.f32 %v3485, %v2687
  %v3864 = vmul.f32 %v3485, %v2688
  %v3865 = vmul.f32 %v3490, %v2689
  %v3866 = vmul.f32 %v3490, %v2690
  %v3867 = vmul.f32 %v3495, %v2691
  %v3868 = vmul.f32 %v3495, %v2692
  %v3869 = vmul.f32 %v3500, %v2693
  %v3870 = vmul.f32 %v3500, %v2694
  %v3871 = vmul.f32 %v3505, %v2695
  %v3872 = vmul.f32 %v3505, %v2696
  %v3873 = vmul.f32 %v3510, %v2697
  %v3874 = vmul.f32 %v3510, %v2698
  %v3875 = vmul.f32 %v3515, %v2699
  %v3876 = vmul.f32 %v3515, %v2700
  %v3877 = vmul.f32 %v3520, %v2701
  %v3878 = vmul.f32 %v3520, %v2702
  %v3879 = vmul.f32 %v3525, %v2703
  %v3880 = vmul.f32 %v3525, %v2704
  %v3881 = vmul.f32 %v3530, %v2705
  %v3882 = vmul.f32 %v3530, %v2706
  %v3883 = vmul.f32 %v3535, %v2707
  %v3884 = vmul.f32 %v3535, %v2708
  %v3885 = vmul.f32 %v3540, %v2709
  %v3886 = vmul.f32 %v3540, %v2710
  %v3887 = vmul.f32 %v3545, %v2711
  %v3888 = vmul.f32 %v3545, %v2712
  %v3889 = vmul.f32 %v3550, %v2713
  %v3890 = vmul.f32 %v3550, %v2714
  %v3891 = vmul.f32 %v3555, %v2715
  %v3892 = vmul.f32 %v3555, %v2716
  %v3893 = vpack.c.bf16 %v3559, %v3557
  %v3894 = vpack.c.bf16 %v3560, %v3558
  %v3895 = vpack.c.bf16 %v3563, %v3561
  %v3896 = vpack.c.bf16 %v3564, %v3562
  %v3897 = vpack.c.bf16 %v3567, %v3565
  %v3898 = vpack.c.bf16 %v3568, %v3566
  %v3899 = vpack.c.bf16 %v3571, %v3569
  %v3900 = vpack.c.bf16 %v3572, %v3570
  %v3901 = vpack.c.bf16 %v3575, %v3573
  %v3902 = vpack.c.bf16 %v3576, %v3574
  %v3903 = vpack.c.bf16 %v3579, %v3577
  %v3904 = vpack.c.bf16 %v3580, %v3578
  %v3905 = vpack.c.bf16 %v3583, %v3581
  %v3906 = vpack.c.bf16 %v3584, %v3582
  %v3907 = vpack.c.bf16 %v3587, %v3585
  %v3908 = vpack.c.bf16 %v3588, %v3586
  %v3909 = vpack.c.bf16 %v3591, %v3589
  %v3910 = vpack.c.bf16 %v3592, %v3590
  %v3911 = vpack.c.bf16 %v3595, %v3593
  %v3912 = vpack.c.bf16 %v3596, %v3594
  %v3913 = vpack.c.bf16 %v3599, %v3597
  %v3914 = vpack.c.bf16 %v3600, %v3598
  %v3915 = vpack.c.bf16 %v3603, %v3601
  %v3916 = vpack.c.bf16 %v3604, %v3602
  %v3917 = vpack.c.bf16 %v3607, %v3605
  %v3918 = vpack.c.bf16 %v3608, %v3606
  %v3919 = vpack.c.bf16 %v3611, %v3609
  %v3920 = vpack.c.bf16 %v3612, %v3610
  %v3921 = vpack.c.bf16 %v3615, %v3613
  %v3922 = vpack.c.bf16 %v3616, %v3614
  %v3923 = vpack.c.bf16 %v3619, %v3617
  %v3924 = vpack.c.bf16 %v3620, %v3618
  %v3925 = vpack.c.bf16 %v3623, %v3621
  %v3926 = vpack.c.bf16 %v3624, %v3622
  %v3927 = vpack.c.bf16 %v3627, %v3625
  %v3928 = vpack.c.bf16 %v3628, %v3626
  %v3929 = vpack.c.bf16 %v3631, %v3629
  %v3930 = vpack.c.bf16 %v3632, %v3630
  %v3931 = vpack.c.bf16 %v3635, %v3633
  %v3932 = vpack.c.bf16 %v3636, %v3634
  %v3933 = vpack.c.bf16 %v3639, %v3637
  %v3934 = vpack.c.bf16 %v3640, %v3638
  %v3935 = vpack.c.bf16 %v3643, %v3641
  %v3936 = vpack.c.bf16 %v3644, %v3642
  %v3937 = vpack.c.bf16 %v3647, %v3645
  %v3938 = vpack.c.bf16 %v3648, %v3646
  %v3939 = vpack.c.bf16 %v3651, %v3649
  %v3940 = vpack.c.bf16 %v3652, %v3650
  %v3941 = vpack.c.bf16 %v3655, %v3653
  %v3942 = vpack.c.bf16 %v3656, %v3654
  %v3943 = vpack.c.bf16 %v3659, %v3657
  %v3944 = vpack.c.bf16 %v3660, %v3658
  %v3945 = vpack.c.bf16 %v3663, %v3661
  %v3946 = vpack.c.bf16 %v3664, %v3662
  %v3947 = vpack.c.bf16 %v3667, %v3665
  %v3948 = vpack.c.bf16 %v3668, %v3666
  %v3949 = vpack.c.bf16 %v3671, %v3669
  %v3950 = vpack.c.bf16 %v3672, %v3670
  %v3951 = vpack.c.bf16 %v3675, %v3673
  %v3952 = vpack.c.bf16 %v3676, %v3674
  %v3953 = vpack.c.bf16 %v3679, %v3677
  %v3954 = vpack.c.bf16 %v3680, %v3678
  %v3955 = vpack.c.bf16 %v3683, %v3681
  %v3956 = vpack.c.bf16 %v3684, %v3682
  %v3957 = vpack.c.bf16 %v3687, %v3685
  %v3958 = vpack.c.bf16 %v3688, %v3686
  %v3959 = vpack.c.bf16 %v3691, %v3689
  %v3960 = vpack.c.bf16 %v3692, %v3690
  %v3961 = vpack.c.bf16 %v3695, %v3693
  %v3962 = vpack.c.bf16 %v3696, %v3694
  %v3963 = vpack.c.bf16 %v3699, %v3697
  %v3964 = vpack.c.bf16 %v3700, %v3698
  %v3965 = vpack.c.bf16 %v3703, %v3701
  %v3966 = vpack.c.bf16 %v3704, %v3702
  %v3967 = vpack.c.bf16 %v3707, %v3705
  %v3968 = vpack.c.bf16 %v3708, %v3706
  %v3969 = vpack.c.bf16 %v3711, %v3709
  %v3970 = vpack.c.bf16 %v3712, %v3710
  %v3971 = vpack.c.bf16 %v3715, %v3713
  %v3972 = vpack.c.bf16 %v3716, %v3714
  %v3973 = vpack.c.bf16 %v3719, %v3717
  %v3974 = vpack.c.bf16 %v3720, %v3718
  %v3975 = vpack.c.bf16 %v3723, %v3721
  %v3976 = vpack.c.bf16 %v3724, %v3722
  %v3977 = vpack.c.bf16 %v3727, %v3725
  %v3978 = vpack.c.bf16 %v3728, %v3726
  %v3979 = vpack.c.bf16 %v3731, %v3729
  %v3980 = vpack.c.bf16 %v3732, %v3730
  %v3981 = vpack.c.bf16 %v3735, %v3733
  %v3982 = vpack.c.bf16 %v3736, %v3734
  %v3983 = vpack.c.bf16 %v3739, %v3737
  %v3984 = vpack.c.bf16 %v3740, %v3738
  %v3985 = vpack.c.bf16 %v3743, %v3741
  %v3986 = vpack.c.bf16 %v3744, %v3742
  %v3987 = vpack.c.bf16 %v3747, %v3745
  %v3988 = vpack.c.bf16 %v3748, %v3746
  %v3989 = vpack.c.bf16 %v3751, %v3749
  %v3990 = vpack.c.bf16 %v3752, %v3750
  %v3991 = vpack.c.bf16 %v3755, %v3753
  %v3992 = vpack.c.bf16 %v3756, %v3754
  %v3993 = vpack.c.bf16 %v3759, %v3757
  %v3994 = vpack.c.bf16 %v3760, %v3758
  %v3995 = vpack.c.bf16 %v3763, %v3761
  %v3996 = vpack.c.bf16 %v3764, %v3762
  %v3997 = vpack.c.bf16 %v3767, %v3765
  %v3998 = vpack.c.bf16 %v3768, %v3766
  %v3999 = vpack.c.bf16 %v3771, %v3769
  %v4000 = vpack.c.bf16 %v3772, %v3770
  %v4001 = vpack.c.bf16 %v3775, %v3773
  %v4002 = vpack.c.bf16 %v3776, %v3774
  %v4003 = vpack.c.bf16 %v3779, %v3777
  %v4004 = vpack.c.bf16 %v3780, %v3778
  %v4005 = vpack.c.bf16 %v3783, %v3781
  %v4006 = vpack.c.bf16 %v3784, %v3782
  %v4007 = vpack.c.bf16 %v3787, %v3785
  %v4008 = vpack.c.bf16 %v3788, %v3786
  %v4009 = vpack.c.bf16 %v3791, %v3789
  %v4010 = vpack.c.bf16 %v3792, %v3790
  %v4011 = vpack.c.bf16 %v3795, %v3793
  %v4012 = vpack.c.bf16 %v3796, %v3794
  %v4013 = vpack.c.bf16 %v3799, %v3797
  %v4014 = vpack.c.bf16 %v3800, %v3798
  %v4015 = vpack.c.bf16 %v3803, %v3801
  %v4016 = vpack.c.bf16 %v3804, %v3802
  %v4017 = vpack.c.bf16 %v3807, %v3805
  %v4018 = vpack.c.bf16 %v3808, %v3806
  %v4019 = vpack.c.bf16 %v3811, %v3809
  %v4020 = vpack.c.bf16 %v3812, %v3810
  %v4021 = vpack.c.bf16 %v3815, %v3813
  %v4022 = vpack.c.bf16 %v3816, %v3814
  %v4023 = vpack.c.bf16 %v3819, %v3817
  %v4024 = vpack.c.bf16 %v3820, %v3818
  %v4025 = vpack.c.bf16 %v3823, %v3821
  %v4026 = vpack.c.bf16 %v3824, %v3822
  %v4027 = vpack.c.bf16 %v3827, %v3825
  %v4028 = vpack.c.bf16 %v3828, %v3826
  %v4029 = vpack.c.bf16 %v3831, %v3829
  %v4030 = vpack.c.bf16 %v3832, %v3830
  %v4031 = vpack.c.bf16 %v3835, %v3833
  %v4032 = vpack.c.bf16 %v3836, %v3834
  %v4033 = vpack.c.bf16 %v3839, %v3837
  %v4034 = vpack.c.bf16 %v3840, %v3838
  %v4035 = vpack.c.bf16 %v3843, %v3841
  %v4036 = vpack.c.bf16 %v3844, %v3842
  %v4037 = vpack.c.bf16 %v3847, %v3845
  %v4038 = vpack.c.bf16 %v3848, %v3846
  %v4039 = vpack.c.bf16 %v3851, %v3849
  %v4040 = vpack.c.bf16 %v3852, %v3850
  %v4041 = vpack.c.bf16 %v3855, %v3853
  %v4042 = vpack.c.bf16 %v3856, %v3854
  %v4043 = vpack.c.bf16 %v3859, %v3857
  %v4044 = vpack.c.bf16 %v3860, %v3858
  %v4045 = vpack.c.bf16 %v3863, %v3861
  %v4046 = vpack.c.bf16 %v3864, %v3862
  %v4047 = vpack.c.bf16 %v3867, %v3865
  %v4048 = vpack.c.bf16 %v3868, %v3866
  %v4049 = vpack.c.bf16 %v3871, %v3869
  %v4050 = vpack.c.bf16 %v3872, %v3870
  %v4051 = vpack.c.bf16 %v3875, %v3873
  %v4052 = vpack.c.bf16 %v3876, %v3874
  %v4053 = vpack.c.bf16 %v3879, %v3877
  %v4054 = vpack.c.bf16 %v3880, %v3878
  %v4055 = vpack.c.bf16 %v3883, %v3881
  %v4056 = vpack.c.bf16 %v3884, %v3882
  %v4057 = vpack.c.bf16 %v3887, %v3885
  %v4058 = vpack.c.bf16 %v3888, %v3886
  %v4059 = vpack.c.bf16 %v3891, %v3889
  %v4060 = vpack.c.bf16 %v3892, %v3890
  %v4061 = vld [vmem:[%s4] sm:$0xff]
  %v4062 = vld [vmem:[%s4 + $0x8] sm:$0xff]
  %v4063 = vld [vmem:[%s4 + $0x10] sm:$0xff]
  %v4064 = vld [vmem:[%s4 + $0x18] sm:$0xff]
  %v4065 = vld [vmem:[%s4 + $0x20] sm:$0xff]
  %v4066 = vld [vmem:[%s4 + $0x28] sm:$0xf]
  %v4067 = vld [vmem:[%s4 + $0x2c] sm:$0xff]
  %v4068 = vld [vmem:[%s4 + $0x34] sm:$0xff]
  %v4069 = vld [vmem:[%s4 + $0x3c] sm:$0xff]
  %v4070 = vld [vmem:[%s4 + $0x44] sm:$0xff]
  %v4071 = vld [vmem:[%s4 + $0x4c] sm:$0xff]
  %v4072 = vld [vmem:[%s4 + $0x54] sm:$0xf]
  %v4073 = vld [vmem:[%s4 + $0x58] sm:$0xff]
  %v4074 = vld [vmem:[%s4 + $0x60] sm:$0xff]
  %v4075 = vld [vmem:[%s4 + $0x68] sm:$0xff]
  %v4076 = vld [vmem:[%s4 + $0x70] sm:$0xff]
  %v4077 = vld [vmem:[%s4 + $0x78] sm:$0xff]
  %v4078 = vld [vmem:[%s4 + $0x80] sm:$0xf]
  %v4079 = vld [vmem:[%s4 + $0x84] sm:$0xff]
  %v4080 = vld [vmem:[%s4 + $0x8c] sm:$0xff]
  %v4081 = vld [vmem:[%s4 + $0x94] sm:$0xff]
  %v4082 = vld [vmem:[%s4 + $0x9c] sm:$0xff]
  %v4083 = vld [vmem:[%s4 + $0xa4] sm:$0xff]
  %v4084 = vld [vmem:[%s4 + $0xac] sm:$0xf]
  %v4085 = vld [vmem:[%s4 + $0xb0] sm:$0xff]
  %v4086 = vld [vmem:[%s4 + $0xb8] sm:$0xff]
  %v4087 = vld [vmem:[%s4 + $0xc0] sm:$0xff]
  %v4088 = vld [vmem:[%s4 + $0xc8] sm:$0xff]
  %v4089 = vld [vmem:[%s4 + $0xd0] sm:$0xff]
  %v4090 = vld [vmem:[%s4 + $0xd8] sm:$0xf]
  %v4091 = vld [vmem:[%s4 + $0xdc] sm:$0xff]
  %v4092 = vld [vmem:[%s4 + $0xe4] sm:$0xff]
  %v4093 = vld [vmem:[%s4 + $0xec] sm:$0xff]
  %v4094 = vld [vmem:[%s4 + $0xf4] sm:$0xff]
  %v4095 = vld [vmem:[%s4 + $0xfc] sm:$0xff]
  %v4096 = vld [vmem:[%s4 + $0x104] sm:$0xf]
  %v4097 = vld [vmem:[%s4 + $0x108] sm:$0xff]
  %v4098 = vld [vmem:[%s4 + $0x110] sm:$0xff]
  %v4099 = vld [vmem:[%s4 + $0x118] sm:$0xff]
  %v4100 = vld [vmem:[%s4 + $0x120] sm:$0xff]
  %v4101 = vld [vmem:[%s4 + $0x128] sm:$0xff]
  %v4102 = vld [vmem:[%s4 + $0x130] sm:$0xf]
  %v4103 = vld [vmem:[%s4 + $0x134] sm:$0xff]
  %v4104 = vld [vmem:[%s4 + $0x13c] sm:$0xff]
  %v4105 = vld [vmem:[%s4 + $0x144] sm:$0xff]
  %v4106 = vld [vmem:[%s4 + $0x14c] sm:$0xff]
  %v4107 = vld [vmem:[%s4 + $0x154] sm:$0xff]
  %v4108 = vld [vmem:[%s4 + $0x15c] sm:$0xf]
  %v4109 = vld [vmem:[%s4 + $0x160] sm:$0xff]
  %v4110 = vld [vmem:[%s4 + $0x168] sm:$0xff]
  %v4111 = vld [vmem:[%s4 + $0x170] sm:$0xff]
  %v4112 = vld [vmem:[%s4 + $0x178] sm:$0xff]
  %v4113 = vld [vmem:[%s4 + $0x180] sm:$0xff]
  %v4114 = vld [vmem:[%s4 + $0x188] sm:$0xf]
  %v4115 = vld [vmem:[%s4 + $0x18c] sm:$0xff]
  %v4116 = vld [vmem:[%s4 + $0x194] sm:$0xff]
  %v4117 = vld [vmem:[%s4 + $0x19c] sm:$0xff]
  %v4118 = vld [vmem:[%s4 + $0x1a4] sm:$0xff]
  %v4119 = vld [vmem:[%s4 + $0x1ac] sm:$0xff]
  %v4120 = vld [vmem:[%s4 + $0x1b4] sm:$0xf]
  %v4121 = vld [vmem:[%s4 + $0x1b8] sm:$0xff]
  %v4122 = vld [vmem:[%s4 + $0x1c0] sm:$0xff]
  %v4123 = vld [vmem:[%s4 + $0x1c8] sm:$0xff]
  %v4124 = vld [vmem:[%s4 + $0x1d0] sm:$0xff]
  %v4125 = vld [vmem:[%s4 + $0x1d8] sm:$0xff]
  %v4126 = vld [vmem:[%s4 + $0x1e0] sm:$0xf]
  %v4127 = vld [vmem:[%s4 + $0x1e4] sm:$0xff]
  %v4128 = vld [vmem:[%s4 + $0x1ec] sm:$0xff]
  %v4129 = vld [vmem:[%s4 + $0x1f4] sm:$0xff]
  %v4130 = vld [vmem:[%s4 + $0x1fc] sm:$0xff]
  %v4131 = vld [vmem:[%s4 + $0x204] sm:$0xff]
  %v4132 = vld [vmem:[%s4 + $0x20c] sm:$0xf]
  %v4133 = vld [vmem:[%s4 + $0x210] sm:$0xff]
  %v4134 = vld [vmem:[%s4 + $0x218] sm:$0xff]
  %v4135 = vld [vmem:[%s4 + $0x220] sm:$0xff]
  %v4136 = vld [vmem:[%s4 + $0x228] sm:$0xff]
  %v4137 = vld [vmem:[%s4 + $0x230] sm:$0xff]
  %v4138 = vld [vmem:[%s4 + $0x238] sm:$0xf]
  %v4139 = vld [vmem:[%s4 + $0x23c] sm:$0xff]
  %v4140 = vld [vmem:[%s4 + $0x244] sm:$0xff]
  %v4141 = vld [vmem:[%s4 + $0x24c] sm:$0xff]
  %v4142 = vld [vmem:[%s4 + $0x254] sm:$0xff]
  %v4143 = vld [vmem:[%s4 + $0x25c] sm:$0xff]
  %v4144 = vld [vmem:[%s4 + $0x264] sm:$0xf]
  %v4145 = vld [vmem:[%s4 + $0x268] sm:$0xff]
  %v4146 = vld [vmem:[%s4 + $0x270] sm:$0xff]
  %v4147 = vld [vmem:[%s4 + $0x278] sm:$0xff]
  %v4148 = vld [vmem:[%s4 + $0x280] sm:$0xff]
  %v4149 = vld [vmem:[%s4 + $0x288] sm:$0xff]
  %v4150 = vld [vmem:[%s4 + $0x290] sm:$0xf]
  %v4151 = vld [vmem:[%s4 + $0x294] sm:$0xff]
  %v4152 = vld [vmem:[%s4 + $0x29c] sm:$0xff]
  %v4153 = vld [vmem:[%s4 + $0x2a4] sm:$0xff]
  %v4154 = vld [vmem:[%s4 + $0x2ac] sm:$0xff]
  %v4155 = vld [vmem:[%s4 + $0x2b4] sm:$0xff]
  %v4156 = vld [vmem:[%s4 + $0x2bc] sm:$0xf]
  %v4157 = vld [vmem:[%s4 + $0x2c0] sm:$0xff]
  %v4158 = vld [vmem:[%s4 + $0x2c8] sm:$0xff]
  %v4159 = vld [vmem:[%s4 + $0x2d0] sm:$0xff]
  %v4160 = vld [vmem:[%s4 + $0x2d8] sm:$0xff]
  %v4161 = vld [vmem:[%s4 + $0x2e0] sm:$0xff]
  %v4162 = vld [vmem:[%s4 + $0x2e8] sm:$0xf]
  %v4163 = vld [vmem:[%s4 + $0x2ec] sm:$0xff]
  %v4164 = vld [vmem:[%s4 + $0x2f4] sm:$0xff]
  %v4165 = vld [vmem:[%s4 + $0x2fc] sm:$0xff]
  %v4166 = vld [vmem:[%s4 + $0x304] sm:$0xff]
  %v4167 = vld [vmem:[%s4 + $0x30c] sm:$0xff]
  %v4168 = vld [vmem:[%s4 + $0x314] sm:$0xf]
  %v4169 = vld [vmem:[%s4 + $0x318] sm:$0xff]
  %v4170 = vld [vmem:[%s4 + $0x320] sm:$0xff]
  %v4171 = vld [vmem:[%s4 + $0x328] sm:$0xff]
  %v4172 = vld [vmem:[%s4 + $0x330] sm:$0xff]
  %v4173 = vld [vmem:[%s4 + $0x338] sm:$0xff]
  %v4174 = vld [vmem:[%s4 + $0x340] sm:$0xf]
  %v4175 = vld [vmem:[%s4 + $0x344] sm:$0xff]
  %v4176 = vld [vmem:[%s4 + $0x34c] sm:$0xff]
  %v4177 = vld [vmem:[%s4 + $0x354] sm:$0xff]
  %v4178 = vld [vmem:[%s4 + $0x35c] sm:$0xff]
  %v4179 = vld [vmem:[%s4 + $0x364] sm:$0xff]
  %v4180 = vld [vmem:[%s4 + $0x36c] sm:$0xf]
  %v4181 = vld [vmem:[%s4 + $0x370] sm:$0xff]
  %v4182 = vld [vmem:[%s4 + $0x378] sm:$0xff]
  %v4183 = vld [vmem:[%s4 + $0x380] sm:$0xff]
  %v4184 = vld [vmem:[%s4 + $0x388] sm:$0xff]
  %v4185 = vld [vmem:[%s4 + $0x390] sm:$0xff]
  %v4186 = vld [vmem:[%s4 + $0x398] sm:$0xf]
  %v4187 = vld [vmem:[%s4 + $0x39c] sm:$0xff]
  %v4188 = vld [vmem:[%s4 + $0x3a4] sm:$0xff]
  %v4189 = vld [vmem:[%s4 + $0x3ac] sm:$0xff]
  %v4190 = vld [vmem:[%s4 + $0x3b4] sm:$0xff]
  %v4191 = vld [vmem:[%s4 + $0x3bc] sm:$0xff]
  %v4192 = vld [vmem:[%s4 + $0x3c4] sm:$0xf]
  %v4193 = vld [vmem:[%s4 + $0x3c8] sm:$0xff]
  %v4194 = vld [vmem:[%s4 + $0x3d0] sm:$0xff]
  %v4195 = vld [vmem:[%s4 + $0x3d8] sm:$0xff]
  %v4196 = vld [vmem:[%s4 + $0x3e0] sm:$0xff]
  %v4197 = vld [vmem:[%s4 + $0x3e8] sm:$0xff]
  %v4198 = vld [vmem:[%s4 + $0x3f0] sm:$0xf]
  %v4199 = vld [vmem:[%s4 + $0x3f4] sm:$0xff]
  %v4200 = vld [vmem:[%s4 + $0x3fc] sm:$0xff]
  %v4201 = vld [vmem:[%s4 + $0x404] sm:$0xff]
  %v4202 = vld [vmem:[%s4 + $0x40c] sm:$0xff]
  %v4203 = vld [vmem:[%s4 + $0x414] sm:$0xff]
  %v4204 = vld [vmem:[%s4 + $0x41c] sm:$0xf]
  %v4205 = vld [vmem:[%s4 + $0x420] sm:$0xff]
  %v4206 = vld [vmem:[%s4 + $0x428] sm:$0xff]
  %v4207 = vld [vmem:[%s4 + $0x430] sm:$0xff]
  %v4208 = vld [vmem:[%s4 + $0x438] sm:$0xff]
  %v4209 = vld [vmem:[%s4 + $0x440] sm:$0xff]
  %v4210 = vld [vmem:[%s4 + $0x448] sm:$0xf]
  %v4211 = vld [vmem:[%s4 + $0x44c] sm:$0xff]
  %v4212 = vld [vmem:[%s4 + $0x454] sm:$0xff]
  %v4213 = vld [vmem:[%s4 + $0x45c] sm:$0xff]
  %v4214 = vld [vmem:[%s4 + $0x464] sm:$0xff]
  %v4215 = vld [vmem:[%s4 + $0x46c] sm:$0xff]
  %v4216 = vld [vmem:[%s4 + $0x474] sm:$0xf]
  %v4217 = vld [vmem:[%s4 + $0x478] sm:$0xff]
  %v4218 = vld [vmem:[%s4 + $0x480] sm:$0xff]
  %v4219 = vld [vmem:[%s4 + $0x488] sm:$0xff]
  %v4220 = vld [vmem:[%s4 + $0x490] sm:$0xff]
  %v4221 = vld [vmem:[%s4 + $0x498] sm:$0xff]
  %v4222 = vld [vmem:[%s4 + $0x4a0] sm:$0xf]
  %v4223 = vld [vmem:[%s4 + $0x4a4] sm:$0xff]
  %v4224 = vld [vmem:[%s4 + $0x4ac] sm:$0xff]
  %v4225 = vld [vmem:[%s4 + $0x4b4] sm:$0xff]
  %v4226 = vld [vmem:[%s4 + $0x4bc] sm:$0xff]
  %v4227 = vld [vmem:[%s4 + $0x4c4] sm:$0xff]
  %v4228 = vld [vmem:[%s4 + $0x4cc] sm:$0xf]
  %v4397 = vunpack.c.l.b16 %v4061
  %v4398 = vunpack.c.h.b16 %v4061
  %v4399 = vunpack.c.l.b16 %v4062
  %v4400 = vunpack.c.h.b16 %v4062
  %v4401 = vunpack.c.l.b16 %v4063
  %v4402 = vunpack.c.h.b16 %v4063
  %v4403 = vunpack.c.l.b16 %v4064
  %v4404 = vunpack.c.h.b16 %v4064
  %v4405 = vunpack.c.l.b16 %v4065
  %v4406 = vunpack.c.h.b16 %v4065
  %v4407 = vunpack.c.l.b16 %v4066
  %v4408 = vunpack.c.l.b16 %v4067
  %v4409 = vunpack.c.h.b16 %v4067
  %v4410 = vunpack.c.l.b16 %v4068
  %v4411 = vunpack.c.h.b16 %v4068
  %v4412 = vunpack.c.l.b16 %v4069
  %v4413 = vunpack.c.h.b16 %v4069
  %v4414 = vunpack.c.l.b16 %v4070
  %v4415 = vunpack.c.h.b16 %v4070
  %v4416 = vunpack.c.l.b16 %v4071
  %v4417 = vunpack.c.h.b16 %v4071
  %v4418 = vunpack.c.l.b16 %v4072
  %v4419 = vunpack.c.l.b16 %v4073
  %v4420 = vunpack.c.h.b16 %v4073
  %v4421 = vunpack.c.l.b16 %v4074
  %v4422 = vunpack.c.h.b16 %v4074
  %v4423 = vunpack.c.l.b16 %v4075
  %v4424 = vunpack.c.h.b16 %v4075
  %v4425 = vunpack.c.l.b16 %v4076
  %v4426 = vunpack.c.h.b16 %v4076
  %v4427 = vunpack.c.l.b16 %v4077
  %v4428 = vunpack.c.h.b16 %v4077
  %v4429 = vunpack.c.l.b16 %v4078
  %v4430 = vunpack.c.l.b16 %v4079
  %v4431 = vunpack.c.h.b16 %v4079
  %v4432 = vunpack.c.l.b16 %v4080
  %v4433 = vunpack.c.h.b16 %v4080
  %v4434 = vunpack.c.l.b16 %v4081
  %v4435 = vunpack.c.h.b16 %v4081
  %v4436 = vunpack.c.l.b16 %v4082
  %v4437 = vunpack.c.h.b16 %v4082
  %v4438 = vunpack.c.l.b16 %v4083
  %v4439 = vunpack.c.h.b16 %v4083
  %v4440 = vunpack.c.l.b16 %v4084
  %v4441 = vunpack.c.l.b16 %v4085
  %v4442 = vunpack.c.h.b16 %v4085
  %v4443 = vunpack.c.l.b16 %v4086
  %v4444 = vunpack.c.h.b16 %v4086
  %v4445 = vunpack.c.l.b16 %v4087
  %v4446 = vunpack.c.h.b16 %v4087
  %v4447 = vunpack.c.l.b16 %v4088
  %v4448 = vunpack.c.h.b16 %v4088
  %v4449 = vunpack.c.l.b16 %v4089
  %v4450 = vunpack.c.h.b16 %v4089
  %v4451 = vunpack.c.l.b16 %v4090
  %v4452 = vunpack.c.l.b16 %v4091
  %v4453 = vunpack.c.h.b16 %v4091
  %v4454 = vunpack.c.l.b16 %v4092
  %v4455 = vunpack.c.h.b16 %v4092
  %v4456 = vunpack.c.l.b16 %v4093
  %v4457 = vunpack.c.h.b16 %v4093
  %v4458 = vunpack.c.l.b16 %v4094
  %v4459 = vunpack.c.h.b16 %v4094
  %v4460 = vunpack.c.l.b16 %v4095
  %v4461 = vunpack.c.h.b16 %v4095
  %v4462 = vunpack.c.l.b16 %v4096
  %v4463 = vunpack.c.l.b16 %v4097
  %v4464 = vunpack.c.h.b16 %v4097
  %v4465 = vunpack.c.l.b16 %v4098
  %v4466 = vunpack.c.h.b16 %v4098
  %v4467 = vunpack.c.l.b16 %v4099
  %v4468 = vunpack.c.h.b16 %v4099
  %v4469 = vunpack.c.l.b16 %v4100
  %v4470 = vunpack.c.h.b16 %v4100
  %v4471 = vunpack.c.l.b16 %v4101
  %v4472 = vunpack.c.h.b16 %v4101
  %v4473 = vunpack.c.l.b16 %v4102
  %v4474 = vunpack.c.l.b16 %v4103
  %v4475 = vunpack.c.h.b16 %v4103
  %v4476 = vunpack.c.l.b16 %v4104
  %v4477 = vunpack.c.h.b16 %v4104
  %v4478 = vunpack.c.l.b16 %v4105
  %v4479 = vunpack.c.h.b16 %v4105
  %v4480 = vunpack.c.l.b16 %v4106
  %v4481 = vunpack.c.h.b16 %v4106
  %v4482 = vunpack.c.l.b16 %v4107
  %v4483 = vunpack.c.h.b16 %v4107
  %v4484 = vunpack.c.l.b16 %v4108
  %v4485 = vunpack.c.l.b16 %v4109
  %v4486 = vunpack.c.h.b16 %v4109
  %v4487 = vunpack.c.l.b16 %v4110
  %v4488 = vunpack.c.h.b16 %v4110
  %v4489 = vunpack.c.l.b16 %v4111
  %v4490 = vunpack.c.h.b16 %v4111
  %v4491 = vunpack.c.l.b16 %v4112
  %v4492 = vunpack.c.h.b16 %v4112
  %v4493 = vunpack.c.l.b16 %v4113
  %v4494 = vunpack.c.h.b16 %v4113
  %v4495 = vunpack.c.l.b16 %v4114
  %v4496 = vunpack.c.l.b16 %v4115
  %v4497 = vunpack.c.h.b16 %v4115
  %v4498 = vunpack.c.l.b16 %v4116
  %v4499 = vunpack.c.h.b16 %v4116
  %v4500 = vunpack.c.l.b16 %v4117
  %v4501 = vunpack.c.h.b16 %v4117
  %v4502 = vunpack.c.l.b16 %v4118
  %v4503 = vunpack.c.h.b16 %v4118
  %v4504 = vunpack.c.l.b16 %v4119
  %v4505 = vunpack.c.h.b16 %v4119
  %v4506 = vunpack.c.l.b16 %v4120
  %v4507 = vunpack.c.l.b16 %v4121
  %v4508 = vunpack.c.h.b16 %v4121
  %v4509 = vunpack.c.l.b16 %v4122
  %v4510 = vunpack.c.h.b16 %v4122
  %v4511 = vunpack.c.l.b16 %v4123
  %v4512 = vunpack.c.h.b16 %v4123
  %v4513 = vunpack.c.l.b16 %v4124
  %v4514 = vunpack.c.h.b16 %v4124
  %v4515 = vunpack.c.l.b16 %v4125
  %v4516 = vunpack.c.h.b16 %v4125
  %v4517 = vunpack.c.l.b16 %v4126
  %v4518 = vunpack.c.l.b16 %v4127
  %v4519 = vunpack.c.h.b16 %v4127
  %v4520 = vunpack.c.l.b16 %v4128
  %v4521 = vunpack.c.h.b16 %v4128
  %v4522 = vunpack.c.l.b16 %v4129
  %v4523 = vunpack.c.h.b16 %v4129
  %v4524 = vunpack.c.l.b16 %v4130
  %v4525 = vunpack.c.h.b16 %v4130
  %v4526 = vunpack.c.l.b16 %v4131
  %v4527 = vunpack.c.h.b16 %v4131
  %v4528 = vunpack.c.l.b16 %v4132
  %v4529 = vunpack.c.l.b16 %v4133
  %v4530 = vunpack.c.h.b16 %v4133
  %v4531 = vunpack.c.l.b16 %v4134
  %v4532 = vunpack.c.h.b16 %v4134
  %v4533 = vunpack.c.l.b16 %v4135
  %v4534 = vunpack.c.h.b16 %v4135
  %v4535 = vunpack.c.l.b16 %v4136
  %v4536 = vunpack.c.h.b16 %v4136
  %v4537 = vunpack.c.l.b16 %v4137
  %v4538 = vunpack.c.h.b16 %v4137
  %v4539 = vunpack.c.l.b16 %v4138
  %v4540 = vunpack.c.l.b16 %v4139
  %v4541 = vunpack.c.h.b16 %v4139
  %v4542 = vunpack.c.l.b16 %v4140
  %v4543 = vunpack.c.h.b16 %v4140
  %v4544 = vunpack.c.l.b16 %v4141
  %v4545 = vunpack.c.h.b16 %v4141
  %v4546 = vunpack.c.l.b16 %v4142
  %v4547 = vunpack.c.h.b16 %v4142
  %v4548 = vunpack.c.l.b16 %v4143
  %v4549 = vunpack.c.h.b16 %v4143
  %v4550 = vunpack.c.l.b16 %v4144
  %v4551 = vunpack.c.l.b16 %v4145
  %v4552 = vunpack.c.h.b16 %v4145
  %v4553 = vunpack.c.l.b16 %v4146
  %v4554 = vunpack.c.h.b16 %v4146
  %v4555 = vunpack.c.l.b16 %v4147
  %v4556 = vunpack.c.h.b16 %v4147
  %v4557 = vunpack.c.l.b16 %v4148
  %v4558 = vunpack.c.h.b16 %v4148
  %v4559 = vunpack.c.l.b16 %v4149
  %v4560 = vunpack.c.h.b16 %v4149
  %v4561 = vunpack.c.l.b16 %v4150
  %v4562 = vunpack.c.l.b16 %v4151
  %v4563 = vunpack.c.h.b16 %v4151
  %v4564 = vunpack.c.l.b16 %v4152
  %v4565 = vunpack.c.h.b16 %v4152
  %v4566 = vunpack.c.l.b16 %v4153
  %v4567 = vunpack.c.h.b16 %v4153
  %v4568 = vunpack.c.l.b16 %v4154
  %v4569 = vunpack.c.h.b16 %v4154
  %v4570 = vunpack.c.l.b16 %v4155
  %v4571 = vunpack.c.h.b16 %v4155
  %v4572 = vunpack.c.l.b16 %v4156
  %v4573 = vunpack.c.l.b16 %v4157
  %v4574 = vunpack.c.h.b16 %v4157
  %v4575 = vunpack.c.l.b16 %v4158
  %v4576 = vunpack.c.h.b16 %v4158
  %v4577 = vunpack.c.l.b16 %v4159
  %v4578 = vunpack.c.h.b16 %v4159
  %v4579 = vunpack.c.l.b16 %v4160
  %v4580 = vunpack.c.h.b16 %v4160
  %v4581 = vunpack.c.l.b16 %v4161
  %v4582 = vunpack.c.h.b16 %v4161
  %v4583 = vunpack.c.l.b16 %v4162
  %v4584 = vunpack.c.l.b16 %v4163
  %v4585 = vunpack.c.h.b16 %v4163
  %v4586 = vunpack.c.l.b16 %v4164
  %v4587 = vunpack.c.h.b16 %v4164
  %v4588 = vunpack.c.l.b16 %v4165
  %v4589 = vunpack.c.h.b16 %v4165
  %v4590 = vunpack.c.l.b16 %v4166
  %v4591 = vunpack.c.h.b16 %v4166
  %v4592 = vunpack.c.l.b16 %v4167
  %v4593 = vunpack.c.h.b16 %v4167
  %v4594 = vunpack.c.l.b16 %v4168
  %v4595 = vunpack.c.l.b16 %v4169
  %v4596 = vunpack.c.h.b16 %v4169
  %v4597 = vunpack.c.l.b16 %v4170
  %v4598 = vunpack.c.h.b16 %v4170
  %v4599 = vunpack.c.l.b16 %v4171
  %v4600 = vunpack.c.h.b16 %v4171
  %v4601 = vunpack.c.l.b16 %v4172
  %v4602 = vunpack.c.h.b16 %v4172
  %v4603 = vunpack.c.l.b16 %v4173
  %v4604 = vunpack.c.h.b16 %v4173
  %v4605 = vunpack.c.l.b16 %v4174
  %v4606 = vunpack.c.l.b16 %v4175
  %v4607 = vunpack.c.h.b16 %v4175
  %v4608 = vunpack.c.l.b16 %v4176
  %v4609 = vunpack.c.h.b16 %v4176
  %v4610 = vunpack.c.l.b16 %v4177
  %v4611 = vunpack.c.h.b16 %v4177
  %v4612 = vunpack.c.l.b16 %v4178
  %v4613 = vunpack.c.h.b16 %v4178
  %v4614 = vunpack.c.l.b16 %v4179
  %v4615 = vunpack.c.h.b16 %v4179
  %v4616 = vunpack.c.l.b16 %v4180
  %v4617 = vunpack.c.l.b16 %v4181
  %v4618 = vunpack.c.h.b16 %v4181
  %v4619 = vunpack.c.l.b16 %v4182
  %v4620 = vunpack.c.h.b16 %v4182
  %v4621 = vunpack.c.l.b16 %v4183
  %v4622 = vunpack.c.h.b16 %v4183
  %v4623 = vunpack.c.l.b16 %v4184
  %v4624 = vunpack.c.h.b16 %v4184
  %v4625 = vunpack.c.l.b16 %v4185
  %v4626 = vunpack.c.h.b16 %v4185
  %v4627 = vunpack.c.l.b16 %v4186
  %v4628 = vunpack.c.l.b16 %v4187
  %v4629 = vunpack.c.h.b16 %v4187
  %v4630 = vunpack.c.l.b16 %v4188
  %v4631 = vunpack.c.h.b16 %v4188
  %v4632 = vunpack.c.l.b16 %v4189
  %v4633 = vunpack.c.h.b16 %v4189
  %v4634 = vunpack.c.l.b16 %v4190
  %v4635 = vunpack.c.h.b16 %v4190
  %v4636 = vunpack.c.l.b16 %v4191
  %v4637 = vunpack.c.h.b16 %v4191
  %v4638 = vunpack.c.l.b16 %v4192
  %v4639 = vunpack.c.l.b16 %v4193
  %v4640 = vunpack.c.h.b16 %v4193
  %v4641 = vunpack.c.l.b16 %v4194
  %v4642 = vunpack.c.h.b16 %v4194
  %v4643 = vunpack.c.l.b16 %v4195
  %v4644 = vunpack.c.h.b16 %v4195
  %v4645 = vunpack.c.l.b16 %v4196
  %v4646 = vunpack.c.h.b16 %v4196
  %v4647 = vunpack.c.l.b16 %v4197
  %v4648 = vunpack.c.h.b16 %v4197
  %v4649 = vunpack.c.l.b16 %v4198
  %v4650 = vunpack.c.l.b16 %v4199
  %v4651 = vunpack.c.h.b16 %v4199
  %v4652 = vunpack.c.l.b16 %v4200
  %v4653 = vunpack.c.h.b16 %v4200
  %v4654 = vunpack.c.l.b16 %v4201
  %v4655 = vunpack.c.h.b16 %v4201
  %v4656 = vunpack.c.l.b16 %v4202
  %v4657 = vunpack.c.h.b16 %v4202
  %v4658 = vunpack.c.l.b16 %v4203
  %v4659 = vunpack.c.h.b16 %v4203
  %v4660 = vunpack.c.l.b16 %v4204
  %v4661 = vunpack.c.l.b16 %v4205
  %v4662 = vunpack.c.h.b16 %v4205
  %v4663 = vunpack.c.l.b16 %v4206
  %v4664 = vunpack.c.h.b16 %v4206
  %v4665 = vunpack.c.l.b16 %v4207
  %v4666 = vunpack.c.h.b16 %v4207
  %v4667 = vunpack.c.l.b16 %v4208
  %v4668 = vunpack.c.h.b16 %v4208
  %v4669 = vunpack.c.l.b16 %v4209
  %v4670 = vunpack.c.h.b16 %v4209
  %v4671 = vunpack.c.l.b16 %v4210
  %v4672 = vunpack.c.l.b16 %v4211
  %v4673 = vunpack.c.h.b16 %v4211
  %v4674 = vunpack.c.l.b16 %v4212
  %v4675 = vunpack.c.h.b16 %v4212
  %v4676 = vunpack.c.l.b16 %v4213
  %v4677 = vunpack.c.h.b16 %v4213
  %v4678 = vunpack.c.l.b16 %v4214
  %v4679 = vunpack.c.h.b16 %v4214
  %v4680 = vunpack.c.l.b16 %v4215
  %v4681 = vunpack.c.h.b16 %v4215
  %v4682 = vunpack.c.l.b16 %v4216
  %v4683 = vunpack.c.l.b16 %v4217
  %v4684 = vunpack.c.h.b16 %v4217
  %v4685 = vunpack.c.l.b16 %v4218
  %v4686 = vunpack.c.h.b16 %v4218
  %v4687 = vunpack.c.l.b16 %v4219
  %v4688 = vunpack.c.h.b16 %v4219
  %v4689 = vunpack.c.l.b16 %v4220
  %v4690 = vunpack.c.h.b16 %v4220
  %v4691 = vunpack.c.l.b16 %v4221
  %v4692 = vunpack.c.h.b16 %v4221
  %v4693 = vunpack.c.l.b16 %v4222
  %v4694 = vunpack.c.l.b16 %v4223
  %v4695 = vunpack.c.h.b16 %v4223
  %v4696 = vunpack.c.l.b16 %v4224
  %v4697 = vunpack.c.h.b16 %v4224
  %v4698 = vunpack.c.l.b16 %v4225
  %v4699 = vunpack.c.h.b16 %v4225
  %v4700 = vunpack.c.l.b16 %v4226
  %v4701 = vunpack.c.h.b16 %v4226
  %v4702 = vunpack.c.l.b16 %v4227
  %v4703 = vunpack.c.h.b16 %v4227
  %v4704 = vunpack.c.l.b16 %v4228
  %v4705 = vpack.c.b16 %v4408, %v4397
  %v4706 = vpack.c.b16 %v4409, %v4398
  %v4707 = vpack.c.b16 %v4410, %v4399
  %v4708 = vpack.c.b16 %v4411, %v4400
  %v4709 = vpack.c.b16 %v4412, %v4401
  %v4710 = vpack.c.b16 %v4413, %v4402
  %v4711 = vpack.c.b16 %v4414, %v4403
  %v4712 = vpack.c.b16 %v4415, %v4404
  %v4713 = vpack.c.b16 %v4416, %v4405
  %v4714 = vpack.c.b16 %v4417, %v4406
  %v4715 = vpack.c.b16 %v4418, %v4407
  %v4716 = vpack.c.b16 %v4430, %v4419
  %v4717 = vpack.c.b16 %v4431, %v4420
  %v4718 = vpack.c.b16 %v4432, %v4421
  %v4719 = vpack.c.b16 %v4433, %v4422
  %v4720 = vpack.c.b16 %v4434, %v4423
  %v4721 = vpack.c.b16 %v4435, %v4424
  %v4722 = vpack.c.b16 %v4436, %v4425
  %v4723 = vpack.c.b16 %v4437, %v4426
  %v4724 = vpack.c.b16 %v4438, %v4427
  %v4725 = vpack.c.b16 %v4439, %v4428
  %v4726 = vpack.c.b16 %v4440, %v4429
  %v4727 = vpack.c.b16 %v4452, %v4441
  %v4728 = vpack.c.b16 %v4453, %v4442
  %v4729 = vpack.c.b16 %v4454, %v4443
  %v4730 = vpack.c.b16 %v4455, %v4444
  %v4731 = vpack.c.b16 %v4456, %v4445
  %v4732 = vpack.c.b16 %v4457, %v4446
  %v4733 = vpack.c.b16 %v4458, %v4447
  %v4734 = vpack.c.b16 %v4459, %v4448
  %v4735 = vpack.c.b16 %v4460, %v4449
  %v4736 = vpack.c.b16 %v4461, %v4450
  %v4737 = vpack.c.b16 %v4462, %v4451
  %v4738 = vpack.c.b16 %v4474, %v4463
  %v4739 = vpack.c.b16 %v4475, %v4464
  %v4740 = vpack.c.b16 %v4476, %v4465
  %v4741 = vpack.c.b16 %v4477, %v4466
  %v4742 = vpack.c.b16 %v4478, %v4467
  %v4743 = vpack.c.b16 %v4479, %v4468
  %v4744 = vpack.c.b16 %v4480, %v4469
  %v4745 = vpack.c.b16 %v4481, %v4470
  %v4746 = vpack.c.b16 %v4482, %v4471
  %v4747 = vpack.c.b16 %v4483, %v4472
  %v4748 = vpack.c.b16 %v4484, %v4473
  %v4749 = vpack.c.b16 %v4496, %v4485
  %v4750 = vpack.c.b16 %v4497, %v4486
  %v4751 = vpack.c.b16 %v4498, %v4487
  %v4752 = vpack.c.b16 %v4499, %v4488
  %v4753 = vpack.c.b16 %v4500, %v4489
  %v4754 = vpack.c.b16 %v4501, %v4490
  %v4755 = vpack.c.b16 %v4502, %v4491
  %v4756 = vpack.c.b16 %v4503, %v4492
  %v4757 = vpack.c.b16 %v4504, %v4493
  %v4758 = vpack.c.b16 %v4505, %v4494
  %v4759 = vpack.c.b16 %v4506, %v4495
  %v4760 = vpack.c.b16 %v4518, %v4507
  %v4761 = vpack.c.b16 %v4519, %v4508
  %v4762 = vpack.c.b16 %v4520, %v4509
  %v4763 = vpack.c.b16 %v4521, %v4510
  %v4764 = vpack.c.b16 %v4522, %v4511
  %v4765 = vpack.c.b16 %v4523, %v4512
  %v4766 = vpack.c.b16 %v4524, %v4513
  %v4767 = vpack.c.b16 %v4525, %v4514
  %v4768 = vpack.c.b16 %v4526, %v4515
  %v4769 = vpack.c.b16 %v4527, %v4516
  %v4770 = vpack.c.b16 %v4528, %v4517
  %v4771 = vpack.c.b16 %v4540, %v4529
  %v4772 = vpack.c.b16 %v4541, %v4530
  %v4773 = vpack.c.b16 %v4542, %v4531
  %v4774 = vpack.c.b16 %v4543, %v4532
  %v4775 = vpack.c.b16 %v4544, %v4533
  %v4776 = vpack.c.b16 %v4545, %v4534
  %v4777 = vpack.c.b16 %v4546, %v4535
  %v4778 = vpack.c.b16 %v4547, %v4536
  %v4779 = vpack.c.b16 %v4548, %v4537
  %v4780 = vpack.c.b16 %v4549, %v4538
  %v4781 = vpack.c.b16 %v4550, %v4539
  %v4782 = vpack.c.b16 %v4562, %v4551
  %v4783 = vpack.c.b16 %v4563, %v4552
  %v4784 = vpack.c.b16 %v4564, %v4553
  %v4785 = vpack.c.b16 %v4565, %v4554
  %v4786 = vpack.c.b16 %v4566, %v4555
  %v4787 = vpack.c.b16 %v4567, %v4556
  %v4788 = vpack.c.b16 %v4568, %v4557
  %v4789 = vpack.c.b16 %v4569, %v4558
  %v4790 = vpack.c.b16 %v4570, %v4559
  %v4791 = vpack.c.b16 %v4571, %v4560
  %v4792 = vpack.c.b16 %v4572, %v4561
  %v4793 = vpack.c.b16 %v4584, %v4573
  %v4794 = vpack.c.b16 %v4585, %v4574
  %v4795 = vpack.c.b16 %v4586, %v4575
  %v4796 = vpack.c.b16 %v4587, %v4576
  %v4797 = vpack.c.b16 %v4588, %v4577
  %v4798 = vpack.c.b16 %v4589, %v4578
  %v4799 = vpack.c.b16 %v4590, %v4579
  %v4800 = vpack.c.b16 %v4591, %v4580
  %v4801 = vpack.c.b16 %v4592, %v4581
  %v4802 = vpack.c.b16 %v4593, %v4582
  %v4803 = vpack.c.b16 %v4594, %v4583
  %v4804 = vpack.c.b16 %v4606, %v4595
  %v4805 = vpack.c.b16 %v4607, %v4596
  %v4806 = vpack.c.b16 %v4608, %v4597
  %v4807 = vpack.c.b16 %v4609, %v4598
  %v4808 = vpack.c.b16 %v4610, %v4599
  %v4809 = vpack.c.b16 %v4611, %v4600
  %v4810 = vpack.c.b16 %v4612, %v4601
  %v4811 = vpack.c.b16 %v4613, %v4602
  %v4812 = vpack.c.b16 %v4614, %v4603
  %v4813 = vpack.c.b16 %v4615, %v4604
  %v4814 = vpack.c.b16 %v4616, %v4605
  %v4815 = vpack.c.b16 %v4628, %v4617
  %v4816 = vpack.c.b16 %v4629, %v4618
  %v4817 = vpack.c.b16 %v4630, %v4619
  %v4818 = vpack.c.b16 %v4631, %v4620
  %v4819 = vpack.c.b16 %v4632, %v4621
  %v4820 = vpack.c.b16 %v4633, %v4622
  %v4821 = vpack.c.b16 %v4634, %v4623
  %v4822 = vpack.c.b16 %v4635, %v4624
  %v4823 = vpack.c.b16 %v4636, %v4625
  %v4824 = vpack.c.b16 %v4637, %v4626
  %v4825 = vpack.c.b16 %v4638, %v4627
  %v4826 = vpack.c.b16 %v4650, %v4639
  %v4827 = vpack.c.b16 %v4651, %v4640
  %v4828 = vpack.c.b16 %v4652, %v4641
  %v4829 = vpack.c.b16 %v4653, %v4642
  %v4830 = vpack.c.b16 %v4654, %v4643
  %v4831 = vpack.c.b16 %v4655, %v4644
  %v4832 = vpack.c.b16 %v4656, %v4645
  %v4833 = vpack.c.b16 %v4657, %v4646
  %v4834 = vpack.c.b16 %v4658, %v4647
  %v4835 = vpack.c.b16 %v4659, %v4648
  %v4836 = vpack.c.b16 %v4660, %v4649
  %v4837 = vpack.c.b16 %v4672, %v4661
  %v4838 = vpack.c.b16 %v4673, %v4662
  %v4839 = vpack.c.b16 %v4674, %v4663
  %v4840 = vpack.c.b16 %v4675, %v4664
  %v4841 = vpack.c.b16 %v4676, %v4665
  %v4842 = vpack.c.b16 %v4677, %v4666
  %v4843 = vpack.c.b16 %v4678, %v4667
  %v4844 = vpack.c.b16 %v4679, %v4668
  %v4845 = vpack.c.b16 %v4680, %v4669
  %v4846 = vpack.c.b16 %v4681, %v4670
  %v4847 = vpack.c.b16 %v4682, %v4671
  %v4848 = vpack.c.b16 %v4694, %v4683
  %v4849 = vpack.c.b16 %v4695, %v4684
  %v4850 = vpack.c.b16 %v4696, %v4685
  %v4851 = vpack.c.b16 %v4697, %v4686
  %v4852 = vpack.c.b16 %v4698, %v4687
  %v4853 = vpack.c.b16 %v4699, %v4688
  %v4854 = vpack.c.b16 %v4700, %v4689
  %v4855 = vpack.c.b16 %v4701, %v4690
  %v4856 = vpack.c.b16 %v4702, %v4691
  %v4857 = vpack.c.b16 %v4703, %v4692
  %v4858 = vpack.c.b16 %v4704, %v4693
  %vm4999 = vcmask 523264
  %v5001 = vsel %vm4999, %v4715, 0
  %v5004 = vsel %vm4999, %v4726, 0
  %v5007 = vsel %vm4999, %v4737, 0
  %v5010 = vsel %vm4999, %v4748, 0
  %v5013 = vsel %vm4999, %v4759, 0
  %v5016 = vsel %vm4999, %v4770, 0
  %v5019 = vsel %vm4999, %v4781, 0
  %v5022 = vsel %vm4999, %v4792, 0
  %v5025 = vsel %vm4999, %v4803, 0
  %v5028 = vsel %vm4999, %v4814, 0
  %v5031 = vsel %vm4999, %v4825, 0
  %v5034 = vsel %vm4999, %v4836, 0
  %v5037 = vsel %vm4999, %v4847, 0
  %v5040 = vsel %vm4999, %v4858, 0
  %5042 = vmatprep.subr.bf16.mxu0 %v3894
  %5043 = vmatpush1.bf16.msra.mxu0 %v3893
  %5044 = vmatprep.subr.bf16.mxu0 %v3896
  %5045 = vmatpush1.bf16.msra.mxu0 %v3895
  %5046 = vmatprep.subr.bf16.mxu0 %v3898
  %5047 = vmatpush1.bf16.msra.mxu0 %v3897
  %5048 = vmatprep.subr.bf16.mxu0 %v3900
  %5049 = vmatpush1.bf16.msra.mxu0 %v3899
  %5050 = vmatprep.subr.bf16.mxu0 %v3902
  %5051 = vmatpush1.bf16.msra.mxu0 %v3901
  %5052 = vmatprep.subr.bf16.mxu0 %v3904
  %5053 = vmatpush1.bf16.msra.mxu0 %v3903
  %5054 = vmatprep.subr.bf16.mxu0 %v3906
  %5055 = vmatpush1.bf16.msra.mxu0 %v3905
  %5056 = vmatprep.subr.bf16.mxu0 %v3908
  %5057 = vmatpush1.bf16.msra.mxu0 %v3907
  %5058 = vmatprep.subr.bf16.mxu0 %v3910
  %5059 = vmatpush1.bf16.msra.mxu0 %v3909
  %5060 = vmatprep.subr.bf16.mxu0 %v3912
  %5061 = vmatpush1.bf16.msra.mxu0 %v3911
  %5062 = vmatprep.subr.bf16.mxu0 %v3914
  %5063 = vmatpush1.bf16.msra.mxu0 %v3913
  %5064 = vmatprep.subr.bf16.mxu0 %v3916
  %5065 = vmatpush1.bf16.msra.mxu0 %v3915
  %5066 = vmatprep.subr.bf16.mxu0 %v3918
  %5067 = vmatpush1.bf16.msra.mxu0 %v3917
  %5068 = vmatprep.subr.bf16.mxu0 %v3920
  %5069 = vmatpush1.bf16.msra.mxu0 %v3919
  %5070 = vmatprep.subr.bf16.mxu0 %v3922
  %5071 = vmatpush1.bf16.msra.mxu0 %v3921
  %5072 = vmatprep.subr.bf16.mxu0 %v3924
  %5073 = vmatpush1.bf16.msra.mxu0 %v3923
  %5074 = vmatprep.mubr.bf16.mxu0 %v4706
  %5075 = vmatmul.mubr.bf16.gmra.mrb[0].mxu0 %v4705
  %v5076 = vpop.f32.mrb[0].mxu0
  %v5077 = vadd.f32 0.0, %v5076
  %v5078 = vpop.f32.mrb[0].mxu0
  %v5079 = vadd.f32 0.0, %v5078
  %v5080 = vpop.f32.mrb[0].mxu0
  %v5081 = vadd.f32 0.0, %v5080
  %v5082 = vpop.f32.mrb[0].mxu0
  %v5083 = vadd.f32 0.0, %v5082
  %5084 = vmatprep.mubr.bf16.mxu0 %v4717
  %5085 = vmatmul.mubr.bf16.gmra.mrb[0].mxu0 %v4716
  %v5086 = vpop.f32.mrb[0].mxu0
  %v5087 = vadd.f32 0.0, %v5086
  %v5088 = vpop.f32.mrb[0].mxu0
  %v5089 = vadd.f32 0.0, %v5088
  %v5090 = vpop.f32.mrb[0].mxu0
  %v5091 = vadd.f32 0.0, %v5090
  %v5092 = vpop.f32.mrb[0].mxu0
  %v5093 = vadd.f32 0.0, %v5092
  %5094 = vmatprep.mubr.bf16.mxu0 %v4728
  %5095 = vmatmul.mubr.bf16.gmra.mrb[0].mxu0 %v4727
  %v5096 = vpop.f32.mrb[0].mxu0
  %v5097 = vadd.f32 0.0, %v5096
  %v5098 = vpop.f32.mrb[0].mxu0
  %v5099 = vadd.f32 0.0, %v5098
  %v5100 = vpop.f32.mrb[0].mxu0
  %v5101 = vadd.f32 0.0, %v5100
  %v5102 = vpop.f32.mrb[0].mxu0
  %v5103 = vadd.f32 0.0, %v5102
  %5104 = vmatprep.mubr.bf16.mxu0 %v4739
  %5105 = vmatmul.mubr.bf16.gmra.mrb[0].mxu0 %v4738
  %v5106 = vpop.f32.mrb[0].mxu0
  %v5107 = vadd.f32 0.0, %v5106
  %v5108 = vpop.f32.mrb[0].mxu0
  %v5109 = vadd.f32 0.0, %v5108
  %v5110 = vpop.f32.mrb[0].mxu0
  %v5111 = vadd.f32 0.0, %v5110
  %v5112 = vpop.f32.mrb[0].mxu0
  %v5113 = vadd.f32 0.0, %v5112
  %5114 = vmatprep.mubr.bf16.mxu0 %v4750
  %5115 = vmatmul.mubr.bf16.gmra.mrb[0].mxu0 %v4749
  %v5116 = vpop.f32.mrb[0].mxu0
  %v5117 = vadd.f32 0.0, %v5116
  %v5118 = vpop.f32.mrb[0].mxu0
  %v5119 = vadd.f32 0.0, %v5118
  %v5120 = vpop.f32.mrb[0].mxu0
  %v5121 = vadd.f32 0.0, %v5120
  %v5122 = vpop.f32.mrb[0].mxu0
  %v5123 = vadd.f32 0.0, %v5122
  %5124 = vmatprep.mubr.bf16.mxu0 %v4761
  %5125 = vmatmul.mubr.bf16.gmra.mrb[0].mxu0 %v4760
  %v5126 = vpop.f32.mrb[0].mxu0
  %v5127 = vadd.f32 0.0, %v5126
  %v5128 = vpop.f32.mrb[0].mxu0
  %v5129 = vadd.f32 0.0, %v5128
  %v5130 = vpop.f32.mrb[0].mxu0
  %v5131 = vadd.f32 0.0, %v5130
  %v5132 = vpop.f32.mrb[0].mxu0
  %v5133 = vadd.f32 0.0, %v5132
  %5134 = vmatprep.mubr.bf16.mxu0 %v4772
  %5135 = vmatmul.mubr.bf16.gmra.mrb[0].mxu0 %v4771
  %v5136 = vpop.f32.mrb[0].mxu0
  %v5137 = vadd.f32 0.0, %v5136
  %v5138 = vpop.f32.mrb[0].mxu0
  %v5139 = vadd.f32 0.0, %v5138
  %v5140 = vpop.f32.mrb[0].mxu0
  %v5141 = vadd.f32 0.0, %v5140
  %v5142 = vpop.f32.mrb[0].mxu0
  %v5143 = vadd.f32 0.0, %v5142
  %5144 = vmatprep.mubr.bf16.mxu0 %v4783
  %5145 = vmatmul.mubr.bf16.gmra.mrb[0].mxu0 %v4782
  %v5146 = vpop.f32.mrb[0].mxu0
  %v5147 = vadd.f32 0.0, %v5146
  %v5148 = vpop.f32.mrb[0].mxu0
  %v5149 = vadd.f32 0.0, %v5148
  %v5150 = vpop.f32.mrb[0].mxu0
  %v5151 = vadd.f32 0.0, %v5150
  %v5152 = vpop.f32.mrb[0].mxu0
  %v5153 = vadd.f32 0.0, %v5152
  %5154 = vmatprep.mubr.bf16.mxu0 %v4794
  %5155 = vmatmul.mubr.bf16.gmra.mrb[0].mxu0 %v4793
  %v5156 = vpop.f32.mrb[0].mxu0
  %v5157 = vadd.f32 0.0, %v5156
  %v5158 = vpop.f32.mrb[0].mxu0
  %v5159 = vadd.f32 0.0, %v5158
  %v5160 = vpop.f32.mrb[0].mxu0
  %v5161 = vadd.f32 0.0, %v5160
  %v5162 = vpop.f32.mrb[0].mxu0
  %v5163 = vadd.f32 0.0, %v5162
  %5164 = vmatprep.mubr.bf16.mxu0 %v4805
  %5165 = vmatmul.mubr.bf16.gmra.mrb[0].mxu0 %v4804
  %v5166 = vpop.f32.mrb[0].mxu0
  %v5167 = vadd.f32 0.0, %v5166
  %v5168 = vpop.f32.mrb[0].mxu0
  %v5169 = vadd.f32 0.0, %v5168
  %v5170 = vpop.f32.mrb[0].mxu0
  %v5171 = vadd.f32 0.0, %v5170
  %v5172 = vpop.f32.mrb[0].mxu0
  %v5173 = vadd.f32 0.0, %v5172
  %5174 = vmatprep.mubr.bf16.mxu0 %v4816
  %5175 = vmatmul.mubr.bf16.gmra.mrb[0].mxu0 %v4815
  %v5176 = vpop.f32.mrb[0].mxu0
  %v5177 = vadd.f32 0.0, %v5176
  %v5178 = vpop.f32.mrb[0].mxu0
  %v5179 = vadd.f32 0.0, %v5178
  %v5180 = vpop.f32.mrb[0].mxu0
  %v5181 = vadd.f32 0.0, %v5180
  %v5182 = vpop.f32.mrb[0].mxu0
  %v5183 = vadd.f32 0.0, %v5182
  %5184 = vmatprep.mubr.bf16.mxu0 %v4827
  %5185 = vmatmul.mubr.bf16.gmra.mrb[0].mxu0 %v4826
  %v5186 = vpop.f32.mrb[0].mxu0
  %v5187 = vadd.f32 0.0, %v5186
  %v5188 = vpop.f32.mrb[0].mxu0
  %v5189 = vadd.f32 0.0, %v5188
  %v5190 = vpop.f32.mrb[0].mxu0
  %v5191 = vadd.f32 0.0, %v5190
  %v5192 = vpop.f32.mrb[0].mxu0
  %v5193 = vadd.f32 0.0, %v5192
  %5194 = vmatprep.mubr.bf16.mxu0 %v4838
  %5195 = vmatmul.mubr.bf16.gmra.mrb[0].mxu0 %v4837
  %v5196 = vpop.f32.mrb[0].mxu0
  %v5197 = vadd.f32 0.0, %v5196
  %v5198 = vpop.f32.mrb[0].mxu0
  %v5199 = vadd.f32 0.0, %v5198
  %v5200 = vpop.f32.mrb[0].mxu0
  %v5201 = vadd.f32 0.0, %v5200
  %v5202 = vpop.f32.mrb[0].mxu0
  %v5203 = vadd.f32 0.0, %v5202
  %5204 = vmatprep.mubr.bf16.mxu0 %v4849
  %5205 = vmatmul.mubr.bf16.gmra.mrb[0].mxu0 %v4848
  %v5206 = vpop.f32.mrb[0].mxu0
  %v5207 = vadd.f32 0.0, %v5206
  %v5208 = vpop.f32.mrb[0].mxu0
  %v5209 = vadd.f32 0.0, %v5208
  %v5210 = vpop.f32.mrb[0].mxu0
  %v5211 = vadd.f32 0.0, %v5210
  %v5212 = vpop.f32.mrb[0].mxu0
  %v5213 = vadd.f32 0.0, %v5212
  %5214 = vdwg.mxu0
  %5215 = vmatprep.subr.bf16.mxu0 %v3926
  %5216 = vmatpush1.bf16.msra.mxu0 %v3925
  %5217 = vmatprep.subr.bf16.mxu0 %v3928
  %5218 = vmatpush1.bf16.msra.mxu0 %v3927
  %5219 = vmatprep.subr.bf16.mxu0 %v3930
  %5220 = vmatpush1.bf16.msra.mxu0 %v3929
  %5221 = vmatprep.subr.bf16.mxu0 %v3932
  %5222 = vmatpush1.bf16.msra.mxu0 %v3931
  %5223 = vmatprep.subr.bf16.mxu0 %v3934
  %5224 = vmatpush1.bf16.msra.mxu0 %v3933
  %5225 = vmatprep.subr.bf16.mxu0 %v3936
  %5226 = vmatpush1.bf16.msra.mxu0 %v3935
  %5227 = vmatprep.subr.bf16.mxu0 %v3938
  %5228 = vmatpush1.bf16.msra.mxu0 %v3937
  %5229 = vmatprep.subr.bf16.mxu0 %v3940
  %5230 = vmatpush1.bf16.msra.mxu0 %v3939
  %5231 = vmatprep.subr.bf16.mxu0 %v3942
  %5232 = vmatpush1.bf16.msra.mxu0 %v3941
  %5233 = vmatprep.subr.bf16.mxu0 %v3944
  %5234 = vmatpush1.bf16.msra.mxu0 %v3943
  %5235 = vmatprep.subr.bf16.mxu0 %v3946
  %5236 = vmatpush1.bf16.msra.mxu0 %v3945
  %5237 = vmatprep.subr.bf16.mxu0 %v3948
  %5238 = vmatpush1.bf16.msra.mxu0 %v3947
  %5239 = vmatprep.subr.bf16.mxu0 %v3950
  %5240 = vmatpush1.bf16.msra.mxu0 %v3949
  %5241 = vmatprep.subr.bf16.mxu0 %v3952
  %5242 = vmatpush1.bf16.msra.mxu0 %v3951
  %5243 = vmatprep.subr.bf16.mxu0 %v3954
  %5244 = vmatpush1.bf16.msra.mxu0 %v3953
  %5245 = vmatprep.subr.bf16.mxu0 %v3956
  %5246 = vmatpush1.bf16.msra.mxu0 %v3955
  %5247 = vmatprep.mubr.bf16.mxu0 %v4708
  %5248 = vmatmul.mubr.bf16.gmra.mrb[0].mxu0 %v4707
  %v5249 = vpop.f32.mrb[0].mxu0
  %v5250 = vadd.f32 %v5077, %v5249
  %v5251 = vpop.f32.mrb[0].mxu0
  %v5252 = vadd.f32 %v5079, %v5251
  %v5253 = vpop.f32.mrb[0].mxu0
  %v5254 = vadd.f32 %v5081, %v5253
  %v5255 = vpop.f32.mrb[0].mxu0
  %v5256 = vadd.f32 %v5083, %v5255
  %5257 = vmatprep.mubr.bf16.mxu0 %v4719
  %5258 = vmatmul.mubr.bf16.gmra.mrb[0].mxu0 %v4718
  %v5259 = vpop.f32.mrb[0].mxu0
  %v5260 = vadd.f32 %v5087, %v5259
  %v5261 = vpop.f32.mrb[0].mxu0
  %v5262 = vadd.f32 %v5089, %v5261
  %v5263 = vpop.f32.mrb[0].mxu0
  %v5264 = vadd.f32 %v5091, %v5263
  %v5265 = vpop.f32.mrb[0].mxu0
  %v5266 = vadd.f32 %v5093, %v5265
  %5267 = vmatprep.mubr.bf16.mxu0 %v4730
  %5268 = vmatmul.mubr.bf16.gmra.mrb[0].mxu0 %v4729
  %v5269 = vpop.f32.mrb[0].mxu0
  %v5270 = vadd.f32 %v5097, %v5269
  %v5271 = vpop.f32.mrb[0].mxu0
  %v5272 = vadd.f32 %v5099, %v5271
  %v5273 = vpop.f32.mrb[0].mxu0
  %v5274 = vadd.f32 %v5101, %v5273
  %v5275 = vpop.f32.mrb[0].mxu0
  %v5276 = vadd.f32 %v5103, %v5275
  %5277 = vmatprep.mubr.bf16.mxu0 %v4741
  %5278 = vmatmul.mubr.bf16.gmra.mrb[0].mxu0 %v4740
  %v5279 = vpop.f32.mrb[0].mxu0
  %v5280 = vadd.f32 %v5107, %v5279
  %v5281 = vpop.f32.mrb[0].mxu0
  %v5282 = vadd.f32 %v5109, %v5281
  %v5283 = vpop.f32.mrb[0].mxu0
  %v5284 = vadd.f32 %v5111, %v5283
  %v5285 = vpop.f32.mrb[0].mxu0
  %v5286 = vadd.f32 %v5113, %v5285
  %5287 = vmatprep.mubr.bf16.mxu0 %v4752
  %5288 = vmatmul.mubr.bf16.gmra.mrb[0].mxu0 %v4751
  %v5289 = vpop.f32.mrb[0].mxu0
  %v5290 = vadd.f32 %v5117, %v5289
  %v5291 = vpop.f32.mrb[0].mxu0
  %v5292 = vadd.f32 %v5119, %v5291
  %v5293 = vpop.f32.mrb[0].mxu0
  %v5294 = vadd.f32 %v5121, %v5293
  %v5295 = vpop.f32.mrb[0].mxu0
  %v5296 = vadd.f32 %v5123, %v5295
  %5297 = vmatprep.mubr.bf16.mxu0 %v4763
  %5298 = vmatmul.mubr.bf16.gmra.mrb[0].mxu0 %v4762
  %v5299 = vpop.f32.mrb[0].mxu0
  %v5300 = vadd.f32 %v5127, %v5299
  %v5301 = vpop.f32.mrb[0].mxu0
  %v5302 = vadd.f32 %v5129, %v5301
  %v5303 = vpop.f32.mrb[0].mxu0
  %v5304 = vadd.f32 %v5131, %v5303
  %v5305 = vpop.f32.mrb[0].mxu0
  %v5306 = vadd.f32 %v5133, %v5305
  %5307 = vmatprep.mubr.bf16.mxu0 %v4774
  %5308 = vmatmul.mubr.bf16.gmra.mrb[0].mxu0 %v4773
  %v5309 = vpop.f32.mrb[0].mxu0
  %v5310 = vadd.f32 %v5137, %v5309
  %v5311 = vpop.f32.mrb[0].mxu0
  %v5312 = vadd.f32 %v5139, %v5311
  %v5313 = vpop.f32.mrb[0].mxu0
  %v5314 = vadd.f32 %v5141, %v5313
  %v5315 = vpop.f32.mrb[0].mxu0
  %v5316 = vadd.f32 %v5143, %v5315
  %5317 = vmatprep.mubr.bf16.mxu0 %v4785
  %5318 = vmatmul.mubr.bf16.gmra.mrb[0].mxu0 %v4784
  %v5319 = vpop.f32.mrb[0].mxu0
  %v5320 = vadd.f32 %v5147, %v5319
  %v5321 = vpop.f32.mrb[0].mxu0
  %v5322 = vadd.f32 %v5149, %v5321
  %v5323 = vpop.f32.mrb[0].mxu0
  %v5324 = vadd.f32 %v5151, %v5323
  %v5325 = vpop.f32.mrb[0].mxu0
  %v5326 = vadd.f32 %v5153, %v5325
  %5327 = vmatprep.mubr.bf16.mxu0 %v4796
  %5328 = vmatmul.mubr.bf16.gmra.mrb[0].mxu0 %v4795
  %v5329 = vpop.f32.mrb[0].mxu0
  %v5330 = vadd.f32 %v5157, %v5329
  %v5331 = vpop.f32.mrb[0].mxu0
  %v5332 = vadd.f32 %v5159, %v5331
  %v5333 = vpop.f32.mrb[0].mxu0
  %v5334 = vadd.f32 %v5161, %v5333
  %v5335 = vpop.f32.mrb[0].mxu0
  %v5336 = vadd.f32 %v5163, %v5335
  %5337 = vmatprep.mubr.bf16.mxu0 %v4807
  %5338 = vmatmul.mubr.bf16.gmra.mrb[0].mxu0 %v4806
  %v5339 = vpop.f32.mrb[0].mxu0
  %v5340 = vadd.f32 %v5167, %v5339
  %v5341 = vpop.f32.mrb[0].mxu0
  %v5342 = vadd.f32 %v5169, %v5341
  %v5343 = vpop.f32.mrb[0].mxu0
  %v5344 = vadd.f32 %v5171, %v5343
  %v5345 = vpop.f32.mrb[0].mxu0
  %v5346 = vadd.f32 %v5173, %v5345
  %5347 = vmatprep.mubr.bf16.mxu0 %v4818
  %5348 = vmatmul.mubr.bf16.gmra.mrb[0].mxu0 %v4817
  %v5349 = vpop.f32.mrb[0].mxu0
  %v5350 = vadd.f32 %v5177, %v5349
  %v5351 = vpop.f32.mrb[0].mxu0
  %v5352 = vadd.f32 %v5179, %v5351
  %v5353 = vpop.f32.mrb[0].mxu0
  %v5354 = vadd.f32 %v5181, %v5353
  %v5355 = vpop.f32.mrb[0].mxu0
  %v5356 = vadd.f32 %v5183, %v5355
  %5357 = vmatprep.mubr.bf16.mxu0 %v4829
  %5358 = vmatmul.mubr.bf16.gmra.mrb[0].mxu0 %v4828
  %v5359 = vpop.f32.mrb[0].mxu0
  %v5360 = vadd.f32 %v5187, %v5359
  %v5361 = vpop.f32.mrb[0].mxu0
  %v5362 = vadd.f32 %v5189, %v5361
  %v5363 = vpop.f32.mrb[0].mxu0
  %v5364 = vadd.f32 %v5191, %v5363
  %v5365 = vpop.f32.mrb[0].mxu0
  %v5366 = vadd.f32 %v5193, %v5365
  %5367 = vmatprep.mubr.bf16.mxu0 %v4840
  %5368 = vmatmul.mubr.bf16.gmra.mrb[0].mxu0 %v4839
  %v5369 = vpop.f32.mrb[0].mxu0
  %v5370 = vadd.f32 %v5197, %v5369
  %v5371 = vpop.f32.mrb[0].mxu0
  %v5372 = vadd.f32 %v5199, %v5371
  %v5373 = vpop.f32.mrb[0].mxu0
  %v5374 = vadd.f32 %v5201, %v5373
  %v5375 = vpop.f32.mrb[0].mxu0
  %v5376 = vadd.f32 %v5203, %v5375
  %5377 = vmatprep.mubr.bf16.mxu0 %v4851
  %5378 = vmatmul.mubr.bf16.gmra.mrb[0].mxu0 %v4850
  %v5379 = vpop.f32.mrb[0].mxu0
  %v5380 = vadd.f32 %v5207, %v5379
  %v5381 = vpop.f32.mrb[0].mxu0
  %v5382 = vadd.f32 %v5209, %v5381
  %v5383 = vpop.f32.mrb[0].mxu0
  %v5384 = vadd.f32 %v5211, %v5383
  %v5385 = vpop.f32.mrb[0].mxu0
  %v5386 = vadd.f32 %v5213, %v5385
  %5387 = vdwg.mxu0
  %5388 = vmatprep.subr.bf16.mxu0 %v3958
  %5389 = vmatpush1.bf16.msra.mxu0 %v3957
  %5390 = vmatprep.subr.bf16.mxu0 %v3960
  %5391 = vmatpush1.bf16.msra.mxu0 %v3959
  %5392 = vmatprep.subr.bf16.mxu0 %v3962
  %5393 = vmatpush1.bf16.msra.mxu0 %v3961
  %5394 = vmatprep.subr.bf16.mxu0 %v3964
  %5395 = vmatpush1.bf16.msra.mxu0 %v3963
  %5396 = vmatprep.subr.bf16.mxu0 %v3966
  %5397 = vmatpush1.bf16.msra.mxu0 %v3965
  %5398 = vmatprep.subr.bf16.mxu0 %v3968
  %5399 = vmatpush1.bf16.msra.mxu0 %v3967
  %5400 = vmatprep.subr.bf16.mxu0 %v3970
  %5401 = vmatpush1.bf16.msra.mxu0 %v3969
  %5402 = vmatprep.subr.bf16.mxu0 %v3972
  %5403 = vmatpush1.bf16.msra.mxu0 %v3971
  %5404 = vmatprep.subr.bf16.mxu0 %v3974
  %5405 = vmatpush1.bf16.msra.mxu0 %v3973
  %5406 = vmatprep.subr.bf16.mxu0 %v3976
  %5407 = vmatpush1.bf16.msra.mxu0 %v3975
  %5408 = vmatprep.subr.bf16.mxu0 %v3978
  %5409 = vmatpush1.bf16.msra.mxu0 %v3977
  %5410 = vmatprep.subr.bf16.mxu0 %v3980
  %5411 = vmatpush1.bf16.msra.mxu0 %v3979
  %5412 = vmatprep.subr.bf16.mxu0 %v3982
  %5413 = vmatpush1.bf16.msra.mxu0 %v3981
  %5414 = vmatprep.subr.bf16.mxu0 %v3984
  %5415 = vmatpush1.bf16.msra.mxu0 %v3983
  %5416 = vmatprep.subr.bf16.mxu0 %v3986
  %5417 = vmatpush1.bf16.msra.mxu0 %v3985
  %5418 = vmatprep.subr.bf16.mxu0 %v3988
  %5419 = vmatpush1.bf16.msra.mxu0 %v3987
  %5420 = vmatprep.mubr.bf16.mxu0 %v4710
  %5421 = vmatmul.mubr.bf16.gmra.mrb[0].mxu0 %v4709
  %v5422 = vpop.f32.mrb[0].mxu0
  %v5423 = vadd.f32 %v5250, %v5422
  %v5424 = vpop.f32.mrb[0].mxu0
  %v5425 = vadd.f32 %v5252, %v5424
  %v5426 = vpop.f32.mrb[0].mxu0
  %v5427 = vadd.f32 %v5254, %v5426
  %v5428 = vpop.f32.mrb[0].mxu0
  %v5429 = vadd.f32 %v5256, %v5428
  %5430 = vmatprep.mubr.bf16.mxu0 %v4721
  %5431 = vmatmul.mubr.bf16.gmra.mrb[0].mxu0 %v4720
  %v5432 = vpop.f32.mrb[0].mxu0
  %v5433 = vadd.f32 %v5260, %v5432
  %v5434 = vpop.f32.mrb[0].mxu0
  %v5435 = vadd.f32 %v5262, %v5434
  %v5436 = vpop.f32.mrb[0].mxu0
  %v5437 = vadd.f32 %v5264, %v5436
  %v5438 = vpop.f32.mrb[0].mxu0
  %v5439 = vadd.f32 %v5266, %v5438
  %5440 = vmatprep.mubr.bf16.mxu0 %v4732
  %5441 = vmatmul.mubr.bf16.gmra.mrb[0].mxu0 %v4731
  %v5442 = vpop.f32.mrb[0].mxu0
  %v5443 = vadd.f32 %v5270, %v5442
  %v5444 = vpop.f32.mrb[0].mxu0
  %v5445 = vadd.f32 %v5272, %v5444
  %v5446 = vpop.f32.mrb[0].mxu0
  %v5447 = vadd.f32 %v5274, %v5446
  %v5448 = vpop.f32.mrb[0].mxu0
  %v5449 = vadd.f32 %v5276, %v5448
  %5450 = vmatprep.mubr.bf16.mxu0 %v4743
  %5451 = vmatmul.mubr.bf16.gmra.mrb[0].mxu0 %v4742
  %v5452 = vpop.f32.mrb[0].mxu0
  %v5453 = vadd.f32 %v5280, %v5452
  %v5454 = vpop.f32.mrb[0].mxu0
  %v5455 = vadd.f32 %v5282, %v5454
  %v5456 = vpop.f32.mrb[0].mxu0
  %v5457 = vadd.f32 %v5284, %v5456
  %v5458 = vpop.f32.mrb[0].mxu0
  %v5459 = vadd.f32 %v5286, %v5458
  %5460 = vmatprep.mubr.bf16.mxu0 %v4754
  %5461 = vmatmul.mubr.bf16.gmra.mrb[0].mxu0 %v4753
  %v5462 = vpop.f32.mrb[0].mxu0
  %v5463 = vadd.f32 %v5290, %v5462
  %v5464 = vpop.f32.mrb[0].mxu0
  %v5465 = vadd.f32 %v5292, %v5464
  %v5466 = vpop.f32.mrb[0].mxu0
  %v5467 = vadd.f32 %v5294, %v5466
  %v5468 = vpop.f32.mrb[0].mxu0
  %v5469 = vadd.f32 %v5296, %v5468
  %5470 = vmatprep.mubr.bf16.mxu0 %v4765
  %5471 = vmatmul.mubr.bf16.gmra.mrb[0].mxu0 %v4764
  %v5472 = vpop.f32.mrb[0].mxu0
  %v5473 = vadd.f32 %v5300, %v5472
  %v5474 = vpop.f32.mrb[0].mxu0
  %v5475 = vadd.f32 %v5302, %v5474
  %v5476 = vpop.f32.mrb[0].mxu0
  %v5477 = vadd.f32 %v5304, %v5476
  %v5478 = vpop.f32.mrb[0].mxu0
  %v5479 = vadd.f32 %v5306, %v5478
  %5480 = vmatprep.mubr.bf16.mxu0 %v4776
  %5481 = vmatmul.mubr.bf16.gmra.mrb[0].mxu0 %v4775
  %v5482 = vpop.f32.mrb[0].mxu0
  %v5483 = vadd.f32 %v5310, %v5482
  %v5484 = vpop.f32.mrb[0].mxu0
  %v5485 = vadd.f32 %v5312, %v5484
  %v5486 = vpop.f32.mrb[0].mxu0
  %v5487 = vadd.f32 %v5314, %v5486
  %v5488 = vpop.f32.mrb[0].mxu0
  %v5489 = vadd.f32 %v5316, %v5488
  %5490 = vmatprep.mubr.bf16.mxu0 %v4787
  %5491 = vmatmul.mubr.bf16.gmra.mrb[0].mxu0 %v4786
  %v5492 = vpop.f32.mrb[0].mxu0
  %v5493 = vadd.f32 %v5320, %v5492
  %v5494 = vpop.f32.mrb[0].mxu0
  %v5495 = vadd.f32 %v5322, %v5494
  %v5496 = vpop.f32.mrb[0].mxu0
  %v5497 = vadd.f32 %v5324, %v5496
  %v5498 = vpop.f32.mrb[0].mxu0
  %v5499 = vadd.f32 %v5326, %v5498
  %5500 = vmatprep.mubr.bf16.mxu0 %v4798
  %5501 = vmatmul.mubr.bf16.gmra.mrb[0].mxu0 %v4797
  %v5502 = vpop.f32.mrb[0].mxu0
  %v5503 = vadd.f32 %v5330, %v5502
  %v5504 = vpop.f32.mrb[0].mxu0
  %v5505 = vadd.f32 %v5332, %v5504
  %v5506 = vpop.f32.mrb[0].mxu0
  %v5507 = vadd.f32 %v5334, %v5506
  %v5508 = vpop.f32.mrb[0].mxu0
  %v5509 = vadd.f32 %v5336, %v5508
  %5510 = vmatprep.mubr.bf16.mxu0 %v4809
  %5511 = vmatmul.mubr.bf16.gmra.mrb[0].mxu0 %v4808
  %v5512 = vpop.f32.mrb[0].mxu0
  %v5513 = vadd.f32 %v5340, %v5512
  %v5514 = vpop.f32.mrb[0].mxu0
  %v5515 = vadd.f32 %v5342, %v5514
  %v5516 = vpop.f32.mrb[0].mxu0
  %v5517 = vadd.f32 %v5344, %v5516
  %v5518 = vpop.f32.mrb[0].mxu0
  %v5519 = vadd.f32 %v5346, %v5518
  %5520 = vmatprep.mubr.bf16.mxu0 %v4820
  %5521 = vmatmul.mubr.bf16.gmra.mrb[0].mxu0 %v4819
  %v5522 = vpop.f32.mrb[0].mxu0
  %v5523 = vadd.f32 %v5350, %v5522
  %v5524 = vpop.f32.mrb[0].mxu0
  %v5525 = vadd.f32 %v5352, %v5524
  %v5526 = vpop.f32.mrb[0].mxu0
  %v5527 = vadd.f32 %v5354, %v5526
  %v5528 = vpop.f32.mrb[0].mxu0
  %v5529 = vadd.f32 %v5356, %v5528
  %5530 = vmatprep.mubr.bf16.mxu0 %v4831
  %5531 = vmatmul.mubr.bf16.gmra.mrb[0].mxu0 %v4830
  %v5532 = vpop.f32.mrb[0].mxu0
  %v5533 = vadd.f32 %v5360, %v5532
  %v5534 = vpop.f32.mrb[0].mxu0
  %v5535 = vadd.f32 %v5362, %v5534
  %v5536 = vpop.f32.mrb[0].mxu0
  %v5537 = vadd.f32 %v5364, %v5536
  %v5538 = vpop.f32.mrb[0].mxu0
  %v5539 = vadd.f32 %v5366, %v5538
  %5540 = vmatprep.mubr.bf16.mxu0 %v4842
  %5541 = vmatmul.mubr.bf16.gmra.mrb[0].mxu0 %v4841
  %v5542 = vpop.f32.mrb[0].mxu0
  %v5543 = vadd.f32 %v5370, %v5542
  %v5544 = vpop.f32.mrb[0].mxu0
  %v5545 = vadd.f32 %v5372, %v5544
  %v5546 = vpop.f32.mrb[0].mxu0
  %v5547 = vadd.f32 %v5374, %v5546
  %v5548 = vpop.f32.mrb[0].mxu0
  %v5549 = vadd.f32 %v5376, %v5548
  %5550 = vmatprep.mubr.bf16.mxu0 %v4853
  %5551 = vmatmul.mubr.bf16.gmra.mrb[0].mxu0 %v4852
  %v5552 = vpop.f32.mrb[0].mxu0
  %v5553 = vadd.f32 %v5380, %v5552
  %v5554 = vpop.f32.mrb[0].mxu0
  %v5555 = vadd.f32 %v5382, %v5554
  %v5556 = vpop.f32.mrb[0].mxu0
  %v5557 = vadd.f32 %v5384, %v5556
  %v5558 = vpop.f32.mrb[0].mxu0
  %v5559 = vadd.f32 %v5386, %v5558
  %5560 = vdwg.mxu0
  %5561 = vmatprep.subr.bf16.mxu0 %v3990
  %5562 = vmatpush1.bf16.msra.mxu0 %v3989
  %5563 = vmatprep.subr.bf16.mxu0 %v3992
  %5564 = vmatpush1.bf16.msra.mxu0 %v3991
  %5565 = vmatprep.subr.bf16.mxu0 %v3994
  %5566 = vmatpush1.bf16.msra.mxu0 %v3993
  %5567 = vmatprep.subr.bf16.mxu0 %v3996
  %5568 = vmatpush1.bf16.msra.mxu0 %v3995
  %5569 = vmatprep.subr.bf16.mxu0 %v3998
  %5570 = vmatpush1.bf16.msra.mxu0 %v3997
  %5571 = vmatprep.subr.bf16.mxu0 %v4000
  %5572 = vmatpush1.bf16.msra.mxu0 %v3999
  %5573 = vmatprep.subr.bf16.mxu0 %v4002
  %5574 = vmatpush1.bf16.msra.mxu0 %v4001
  %5575 = vmatprep.subr.bf16.mxu0 %v4004
  %5576 = vmatpush1.bf16.msra.mxu0 %v4003
  %5577 = vmatprep.subr.bf16.mxu0 %v4006
  %5578 = vmatpush1.bf16.msra.mxu0 %v4005
  %5579 = vmatprep.subr.bf16.mxu0 %v4008
  %5580 = vmatpush1.bf16.msra.mxu0 %v4007
  %5581 = vmatprep.subr.bf16.mxu0 %v4010
  %5582 = vmatpush1.bf16.msra.mxu0 %v4009
  %5583 = vmatprep.subr.bf16.mxu0 %v4012
  %5584 = vmatpush1.bf16.msra.mxu0 %v4011
  %5585 = vmatprep.subr.bf16.mxu0 %v4014
  %5586 = vmatpush1.bf16.msra.mxu0 %v4013
  %5587 = vmatprep.subr.bf16.mxu0 %v4016
  %5588 = vmatpush1.bf16.msra.mxu0 %v4015
  %5589 = vmatprep.subr.bf16.mxu0 %v4018
  %5590 = vmatpush1.bf16.msra.mxu0 %v4017
  %5591 = vmatprep.subr.bf16.mxu0 %v4020
  %5592 = vmatpush1.bf16.msra.mxu0 %v4019
  %5593 = vmatprep.mubr.bf16.mxu0 %v4712
  %5594 = vmatmul.mubr.bf16.gmra.mrb[0].mxu0 %v4711
  %v5595 = vpop.f32.mrb[0].mxu0
  %v5596 = vadd.f32 %v5423, %v5595
  %v5597 = vpop.f32.mrb[0].mxu0
  %v5598 = vadd.f32 %v5425, %v5597
  %v5599 = vpop.f32.mrb[0].mxu0
  %v5600 = vadd.f32 %v5427, %v5599
  %v5601 = vpop.f32.mrb[0].mxu0
  %v5602 = vadd.f32 %v5429, %v5601
  %5603 = vmatprep.mubr.bf16.mxu0 %v4723
  %5604 = vmatmul.mubr.bf16.gmra.mrb[0].mxu0 %v4722
  %v5605 = vpop.f32.mrb[0].mxu0
  %v5606 = vadd.f32 %v5433, %v5605
  %v5607 = vpop.f32.mrb[0].mxu0
  %v5608 = vadd.f32 %v5435, %v5607
  %v5609 = vpop.f32.mrb[0].mxu0
  %v5610 = vadd.f32 %v5437, %v5609
  %v5611 = vpop.f32.mrb[0].mxu0
  %v5612 = vadd.f32 %v5439, %v5611
  %5613 = vmatprep.mubr.bf16.mxu0 %v4734
  %5614 = vmatmul.mubr.bf16.gmra.mrb[0].mxu0 %v4733
  %v5615 = vpop.f32.mrb[0].mxu0
  %v5616 = vadd.f32 %v5443, %v5615
  %v5617 = vpop.f32.mrb[0].mxu0
  %v5618 = vadd.f32 %v5445, %v5617
  %v5619 = vpop.f32.mrb[0].mxu0
  %v5620 = vadd.f32 %v5447, %v5619
  %v5621 = vpop.f32.mrb[0].mxu0
  %v5622 = vadd.f32 %v5449, %v5621
  %5623 = vmatprep.mubr.bf16.mxu0 %v4745
  %5624 = vmatmul.mubr.bf16.gmra.mrb[0].mxu0 %v4744
  %v5625 = vpop.f32.mrb[0].mxu0
  %v5626 = vadd.f32 %v5453, %v5625
  %v5627 = vpop.f32.mrb[0].mxu0
  %v5628 = vadd.f32 %v5455, %v5627
  %v5629 = vpop.f32.mrb[0].mxu0
  %v5630 = vadd.f32 %v5457, %v5629
  %v5631 = vpop.f32.mrb[0].mxu0
  %v5632 = vadd.f32 %v5459, %v5631
  %5633 = vmatprep.mubr.bf16.mxu0 %v4756
  %5634 = vmatmul.mubr.bf16.gmra.mrb[0].mxu0 %v4755
  %v5635 = vpop.f32.mrb[0].mxu0
  %v5636 = vadd.f32 %v5463, %v5635
  %v5637 = vpop.f32.mrb[0].mxu0
  %v5638 = vadd.f32 %v5465, %v5637
  %v5639 = vpop.f32.mrb[0].mxu0
  %v5640 = vadd.f32 %v5467, %v5639
  %v5641 = vpop.f32.mrb[0].mxu0
  %v5642 = vadd.f32 %v5469, %v5641
  %5643 = vmatprep.mubr.bf16.mxu0 %v4767
  %5644 = vmatmul.mubr.bf16.gmra.mrb[0].mxu0 %v4766
  %v5645 = vpop.f32.mrb[0].mxu0
  %v5646 = vadd.f32 %v5473, %v5645
  %v5647 = vpop.f32.mrb[0].mxu0
  %v5648 = vadd.f32 %v5475, %v5647
  %v5649 = vpop.f32.mrb[0].mxu0
  %v5650 = vadd.f32 %v5477, %v5649
  %v5651 = vpop.f32.mrb[0].mxu0
  %v5652 = vadd.f32 %v5479, %v5651
  %5653 = vmatprep.mubr.bf16.mxu0 %v4778
  %5654 = vmatmul.mubr.bf16.gmra.mrb[0].mxu0 %v4777
  %v5655 = vpop.f32.mrb[0].mxu0
  %v5656 = vadd.f32 %v5483, %v5655
  %v5657 = vpop.f32.mrb[0].mxu0
  %v5658 = vadd.f32 %v5485, %v5657
  %v5659 = vpop.f32.mrb[0].mxu0
  %v5660 = vadd.f32 %v5487, %v5659
  %v5661 = vpop.f32.mrb[0].mxu0
  %v5662 = vadd.f32 %v5489, %v5661
  %5663 = vmatprep.mubr.bf16.mxu0 %v4789
  %5664 = vmatmul.mubr.bf16.gmra.mrb[0].mxu0 %v4788
  %v5665 = vpop.f32.mrb[0].mxu0
  %v5666 = vadd.f32 %v5493, %v5665
  %v5667 = vpop.f32.mrb[0].mxu0
  %v5668 = vadd.f32 %v5495, %v5667
  %v5669 = vpop.f32.mrb[0].mxu0
  %v5670 = vadd.f32 %v5497, %v5669
  %v5671 = vpop.f32.mrb[0].mxu0
  %v5672 = vadd.f32 %v5499, %v5671
  %5673 = vmatprep.mubr.bf16.mxu0 %v4800
  %5674 = vmatmul.mubr.bf16.gmra.mrb[0].mxu0 %v4799
  %v5675 = vpop.f32.mrb[0].mxu0
  %v5676 = vadd.f32 %v5503, %v5675
  %v5677 = vpop.f32.mrb[0].mxu0
  %v5678 = vadd.f32 %v5505, %v5677
  %v5679 = vpop.f32.mrb[0].mxu0
  %v5680 = vadd.f32 %v5507, %v5679
  %v5681 = vpop.f32.mrb[0].mxu0
  %v5682 = vadd.f32 %v5509, %v5681
  %5683 = vmatprep.mubr.bf16.mxu0 %v4811
  %5684 = vmatmul.mubr.bf16.gmra.mrb[0].mxu0 %v4810
  %v5685 = vpop.f32.mrb[0].mxu0
  %v5686 = vadd.f32 %v5513, %v5685
  %v5687 = vpop.f32.mrb[0].mxu0
  %v5688 = vadd.f32 %v5515, %v5687
  %v5689 = vpop.f32.mrb[0].mxu0
  %v5690 = vadd.f32 %v5517, %v5689
  %v5691 = vpop.f32.mrb[0].mxu0
  %v5692 = vadd.f32 %v5519, %v5691
  %5693 = vmatprep.mubr.bf16.mxu0 %v4822
  %5694 = vmatmul.mubr.bf16.gmra.mrb[0].mxu0 %v4821
  %v5695 = vpop.f32.mrb[0].mxu0
  %v5696 = vadd.f32 %v5523, %v5695
  %v5697 = vpop.f32.mrb[0].mxu0
  %v5698 = vadd.f32 %v5525, %v5697
  %v5699 = vpop.f32.mrb[0].mxu0
  %v5700 = vadd.f32 %v5527, %v5699
  %v5701 = vpop.f32.mrb[0].mxu0
  %v5702 = vadd.f32 %v5529, %v5701
  %5703 = vmatprep.mubr.bf16.mxu0 %v4833
  %5704 = vmatmul.mubr.bf16.gmra.mrb[0].mxu0 %v4832
  %v5705 = vpop.f32.mrb[0].mxu0
  %v5706 = vadd.f32 %v5533, %v5705
  %v5707 = vpop.f32.mrb[0].mxu0
  %v5708 = vadd.f32 %v5535, %v5707
  %v5709 = vpop.f32.mrb[0].mxu0
  %v5710 = vadd.f32 %v5537, %v5709
  %v5711 = vpop.f32.mrb[0].mxu0
  %v5712 = vadd.f32 %v5539, %v5711
  %5713 = vmatprep.mubr.bf16.mxu0 %v4844
  %5714 = vmatmul.mubr.bf16.gmra.mrb[0].mxu0 %v4843
  %v5715 = vpop.f32.mrb[0].mxu0
  %v5716 = vadd.f32 %v5543, %v5715
  %v5717 = vpop.f32.mrb[0].mxu0
  %v5718 = vadd.f32 %v5545, %v5717
  %v5719 = vpop.f32.mrb[0].mxu0
  %v5720 = vadd.f32 %v5547, %v5719
  %v5721 = vpop.f32.mrb[0].mxu0
  %v5722 = vadd.f32 %v5549, %v5721
  %5723 = vmatprep.mubr.bf16.mxu0 %v4855
  %5724 = vmatmul.mubr.bf16.gmra.mrb[0].mxu0 %v4854
  %v5725 = vpop.f32.mrb[0].mxu0
  %v5726 = vadd.f32 %v5553, %v5725
  %v5727 = vpop.f32.mrb[0].mxu0
  %v5728 = vadd.f32 %v5555, %v5727
  %v5729 = vpop.f32.mrb[0].mxu0
  %v5730 = vadd.f32 %v5557, %v5729
  %v5731 = vpop.f32.mrb[0].mxu0
  %v5732 = vadd.f32 %v5559, %v5731
  %5733 = vdwg.mxu0
  %5734 = vmatprep.subr.bf16.mxu0 %v4022
  %5735 = vmatpush1.bf16.msra.mxu0 %v4021
  %5736 = vmatprep.subr.bf16.mxu0 %v4024
  %5737 = vmatpush1.bf16.msra.mxu0 %v4023
  %5738 = vmatprep.subr.bf16.mxu0 %v4026
  %5739 = vmatpush1.bf16.msra.mxu0 %v4025
  %5740 = vmatprep.subr.bf16.mxu0 %v4028
  %5741 = vmatpush1.bf16.msra.mxu0 %v4027
  %5742 = vmatprep.subr.bf16.mxu0 %v4030
  %5743 = vmatpush1.bf16.msra.mxu0 %v4029
  %5744 = vmatprep.subr.bf16.mxu0 %v4032
  %5745 = vmatpush1.bf16.msra.mxu0 %v4031
  %5746 = vmatprep.subr.bf16.mxu0 %v4034
  %5747 = vmatpush1.bf16.msra.mxu0 %v4033
  %5748 = vmatprep.subr.bf16.mxu0 %v4036
  %5749 = vmatpush1.bf16.msra.mxu0 %v4035
  %5750 = vmatprep.subr.bf16.mxu0 %v4038
  %5751 = vmatpush1.bf16.msra.mxu0 %v4037
  %5752 = vmatprep.subr.bf16.mxu0 %v4040
  %5753 = vmatpush1.bf16.msra.mxu0 %v4039
  %5754 = vmatprep.subr.bf16.mxu0 %v4042
  %5755 = vmatpush1.bf16.msra.mxu0 %v4041
  %5756 = vmatprep.subr.bf16.mxu0 %v4044
  %5757 = vmatpush1.bf16.msra.mxu0 %v4043
  %5758 = vmatprep.subr.bf16.mxu0 %v4046
  %5759 = vmatpush1.bf16.msra.mxu0 %v4045
  %5760 = vmatprep.subr.bf16.mxu0 %v4048
  %5761 = vmatpush1.bf16.msra.mxu0 %v4047
  %5762 = vmatprep.subr.bf16.mxu0 %v4050
  %5763 = vmatpush1.bf16.msra.mxu0 %v4049
  %5764 = vmatprep.subr.bf16.mxu0 %v4052
  %5765 = vmatpush1.bf16.msra.mxu0 %v4051
  %5766 = vmatprep.mubr.bf16.mxu0 %v4714
  %5767 = vmatmul.mubr.bf16.gmra.mrb[0].mxu0 %v4713
  %v5768 = vpop.f32.mrb[0].mxu0
  %v5769 = vadd.f32 %v5596, %v5768
  %v5770 = vpop.f32.mrb[0].mxu0
  %v5771 = vadd.f32 %v5598, %v5770
  %v5772 = vpop.f32.mrb[0].mxu0
  %v5773 = vadd.f32 %v5600, %v5772
  %v5774 = vpop.f32.mrb[0].mxu0
  %v5775 = vadd.f32 %v5602, %v5774
  %5776 = vmatprep.mubr.bf16.mxu0 %v4725
  %5777 = vmatmul.mubr.bf16.gmra.mrb[0].mxu0 %v4724
  %v5778 = vpop.f32.mrb[0].mxu0
  %v5779 = vadd.f32 %v5606, %v5778
  %v5780 = vpop.f32.mrb[0].mxu0
  %v5781 = vadd.f32 %v5608, %v5780
  %v5782 = vpop.f32.mrb[0].mxu0
  %v5783 = vadd.f32 %v5610, %v5782
  %v5784 = vpop.f32.mrb[0].mxu0
  %v5785 = vadd.f32 %v5612, %v5784
  %5786 = vmatprep.mubr.bf16.mxu0 %v4736
  %5787 = vmatmul.mubr.bf16.gmra.mrb[0].mxu0 %v4735
  %v5788 = vpop.f32.mrb[0].mxu0
  %v5789 = vadd.f32 %v5616, %v5788
  %v5790 = vpop.f32.mrb[0].mxu0
  %v5791 = vadd.f32 %v5618, %v5790
  %v5792 = vpop.f32.mrb[0].mxu0
  %v5793 = vadd.f32 %v5620, %v5792
  %v5794 = vpop.f32.mrb[0].mxu0
  %v5795 = vadd.f32 %v5622, %v5794
  %5796 = vmatprep.mubr.bf16.mxu0 %v4747
  %5797 = vmatmul.mubr.bf16.gmra.mrb[0].mxu0 %v4746
  %v5798 = vpop.f32.mrb[0].mxu0
  %v5799 = vadd.f32 %v5626, %v5798
  %v5800 = vpop.f32.mrb[0].mxu0
  %v5801 = vadd.f32 %v5628, %v5800
  %v5802 = vpop.f32.mrb[0].mxu0
  %v5803 = vadd.f32 %v5630, %v5802
  %v5804 = vpop.f32.mrb[0].mxu0
  %v5805 = vadd.f32 %v5632, %v5804
  %5806 = vmatprep.mubr.bf16.mxu0 %v4758
  %5807 = vmatmul.mubr.bf16.gmra.mrb[0].mxu0 %v4757
  %v5808 = vpop.f32.mrb[0].mxu0
  %v5809 = vadd.f32 %v5636, %v5808
  %v5810 = vpop.f32.mrb[0].mxu0
  %v5811 = vadd.f32 %v5638, %v5810
  %v5812 = vpop.f32.mrb[0].mxu0
  %v5813 = vadd.f32 %v5640, %v5812
  %v5814 = vpop.f32.mrb[0].mxu0
  %v5815 = vadd.f32 %v5642, %v5814
  %5816 = vmatprep.mubr.bf16.mxu0 %v4769
  %5817 = vmatmul.mubr.bf16.gmra.mrb[0].mxu0 %v4768
  %v5818 = vpop.f32.mrb[0].mxu0
  %v5819 = vadd.f32 %v5646, %v5818
  %v5820 = vpop.f32.mrb[0].mxu0
  %v5821 = vadd.f32 %v5648, %v5820
  %v5822 = vpop.f32.mrb[0].mxu0
  %v5823 = vadd.f32 %v5650, %v5822
  %v5824 = vpop.f32.mrb[0].mxu0
  %v5825 = vadd.f32 %v5652, %v5824
  %5826 = vmatprep.mubr.bf16.mxu0 %v4780
  %5827 = vmatmul.mubr.bf16.gmra.mrb[0].mxu0 %v4779
  %v5828 = vpop.f32.mrb[0].mxu0
  %v5829 = vadd.f32 %v5656, %v5828
  %v5830 = vpop.f32.mrb[0].mxu0
  %v5831 = vadd.f32 %v5658, %v5830
  %v5832 = vpop.f32.mrb[0].mxu0
  %v5833 = vadd.f32 %v5660, %v5832
  %v5834 = vpop.f32.mrb[0].mxu0
  %v5835 = vadd.f32 %v5662, %v5834
  %5836 = vmatprep.mubr.bf16.mxu0 %v4791
  %5837 = vmatmul.mubr.bf16.gmra.mrb[0].mxu0 %v4790
  %v5838 = vpop.f32.mrb[0].mxu0
  %v5839 = vadd.f32 %v5666, %v5838
  %v5840 = vpop.f32.mrb[0].mxu0
  %v5841 = vadd.f32 %v5668, %v5840
  %v5842 = vpop.f32.mrb[0].mxu0
  %v5843 = vadd.f32 %v5670, %v5842
  %v5844 = vpop.f32.mrb[0].mxu0
  %v5845 = vadd.f32 %v5672, %v5844
  %5846 = vmatprep.mubr.bf16.mxu0 %v4802
  %5847 = vmatmul.mubr.bf16.gmra.mrb[0].mxu0 %v4801
  %v5848 = vpop.f32.mrb[0].mxu0
  %v5849 = vadd.f32 %v5676, %v5848
  %v5850 = vpop.f32.mrb[0].mxu0
  %v5851 = vadd.f32 %v5678, %v5850
  %v5852 = vpop.f32.mrb[0].mxu0
  %v5853 = vadd.f32 %v5680, %v5852
  %v5854 = vpop.f32.mrb[0].mxu0
  %v5855 = vadd.f32 %v5682, %v5854
  %5856 = vmatprep.mubr.bf16.mxu0 %v4813
  %5857 = vmatmul.mubr.bf16.gmra.mrb[0].mxu0 %v4812
  %v5858 = vpop.f32.mrb[0].mxu0
  %v5859 = vadd.f32 %v5686, %v5858
  %v5860 = vpop.f32.mrb[0].mxu0
  %v5861 = vadd.f32 %v5688, %v5860
  %v5862 = vpop.f32.mrb[0].mxu0
  %v5863 = vadd.f32 %v5690, %v5862
  %v5864 = vpop.f32.mrb[0].mxu0
  %v5865 = vadd.f32 %v5692, %v5864
  %5866 = vmatprep.mubr.bf16.mxu0 %v4824
  %5867 = vmatmul.mubr.bf16.gmra.mrb[0].mxu0 %v4823
  %v5868 = vpop.f32.mrb[0].mxu0
  %v5869 = vadd.f32 %v5696, %v5868
  %v5870 = vpop.f32.mrb[0].mxu0
  %v5871 = vadd.f32 %v5698, %v5870
  %v5872 = vpop.f32.mrb[0].mxu0
  %v5873 = vadd.f32 %v5700, %v5872
  %v5874 = vpop.f32.mrb[0].mxu0
  %v5875 = vadd.f32 %v5702, %v5874
  %5876 = vmatprep.mubr.bf16.mxu0 %v4835
  %5877 = vmatmul.mubr.bf16.gmra.mrb[0].mxu0 %v4834
  %v5878 = vpop.f32.mrb[0].mxu0
  %v5879 = vadd.f32 %v5706, %v5878
  %v5880 = vpop.f32.mrb[0].mxu0
  %v5881 = vadd.f32 %v5708, %v5880
  %v5882 = vpop.f32.mrb[0].mxu0
  %v5883 = vadd.f32 %v5710, %v5882
  %v5884 = vpop.f32.mrb[0].mxu0
  %v5885 = vadd.f32 %v5712, %v5884
  %5886 = vmatprep.mubr.bf16.mxu0 %v4846
  %5887 = vmatmul.mubr.bf16.gmra.mrb[0].mxu0 %v4845
  %v5888 = vpop.f32.mrb[0].mxu0
  %v5889 = vadd.f32 %v5716, %v5888
  %v5890 = vpop.f32.mrb[0].mxu0
  %v5891 = vadd.f32 %v5718, %v5890
  %v5892 = vpop.f32.mrb[0].mxu0
  %v5893 = vadd.f32 %v5720, %v5892
  %v5894 = vpop.f32.mrb[0].mxu0
  %v5895 = vadd.f32 %v5722, %v5894
  %5896 = vmatprep.mubr.bf16.mxu0 %v4857
  %5897 = vmatmul.mubr.bf16.gmra.mrb[0].mxu0 %v4856
  %v5898 = vpop.f32.mrb[0].mxu0
  %v5899 = vadd.f32 %v5726, %v5898
  %v5900 = vpop.f32.mrb[0].mxu0
  %v5901 = vadd.f32 %v5728, %v5900
  %v5902 = vpop.f32.mrb[0].mxu0
  %v5903 = vadd.f32 %v5730, %v5902
  %v5904 = vpop.f32.mrb[0].mxu0
  %v5905 = vadd.f32 %v5732, %v5904
  %5906 = vdwg.mxu0
  %5907 = vmatprep.subr.bf16.mxu0 %v4054
  %5908 = vmatpush1.bf16.msra.mxu0 %v4053
  %5909 = vmatprep.subr.bf16.mxu0 %v4056
  %5910 = vmatpush1.bf16.msra.mxu0 %v4055
  %5911 = vmatprep.subr.bf16.mxu0 %v4058
  %5912 = vmatpush1.bf16.msra.mxu0 %v4057
  %5913 = vmatprep.subr.bf16.mxu0 %v4060
  %5914 = vmatpush1.bf16.msra.mxu0 %v4059
  %5915 = vmatprep.subr.bf16.mxu0 0
  %5916 = vmatpush1.bf16.msra.mxu0 0
  %5917 = vmatprep.subr.bf16.mxu0 0
  %5918 = vmatpush1.bf16.msra.mxu0 0
  %5919 = vmatprep.subr.bf16.mxu0 0
  %5920 = vmatpush1.bf16.msra.mxu0 0
  %5921 = vmatprep.subr.bf16.mxu0 0
  %5922 = vmatpush1.bf16.msra.mxu0 0
  %5923 = vmatprep.subr.bf16.mxu0 0
  %5924 = vmatpush1.bf16.msra.mxu0 0
  %5925 = vmatprep.subr.bf16.mxu0 0
  %5926 = vmatpush1.bf16.msra.mxu0 0
  %5927 = vmatprep.subr.bf16.mxu0 0
  %5928 = vmatpush1.bf16.msra.mxu0 0
  %5929 = vmatprep.subr.bf16.mxu0 0
  %5930 = vmatpush1.bf16.msra.mxu0 0
  %5931 = vmatprep.subr.bf16.mxu0 0
  %5932 = vmatpush1.bf16.msra.mxu0 0
  %5933 = vmatprep.subr.bf16.mxu0 0
  %5934 = vmatpush1.bf16.msra.mxu0 0
  %5935 = vmatprep.subr.bf16.mxu0 0
  %5936 = vmatpush1.bf16.msra.mxu0 0
  %5937 = vmatprep.subr.bf16.mxu0 0
  %5938 = vmatpush1.bf16.msra.mxu0 0
  %5939 = vmatprep.mubr.bf16.mxu0 0
  %5940 = vmatmul.mubr.bf16.gmra.mrb[0].mxu0 %v5001
  %v5941 = vpop.f32.mrb[0].mxu0
  %v5942 = vadd.f32 %v5769, %v5941
  %v5943 = vpop.f32.mrb[0].mxu0
  %v5944 = vadd.f32 %v5771, %v5943
  %v5945 = vpop.f32.mrb[0].mxu0
  %v5946 = vadd.f32 %v5773, %v5945
  %v5947 = vpop.f32.mrb[0].mxu0
  %v5948 = vadd.f32 %v5775, %v5947
  %5949 = vmatprep.mubr.bf16.mxu0 0
  %5950 = vmatmul.mubr.bf16.gmra.mrb[0].mxu0 %v5004
  %v5951 = vpop.f32.mrb[0].mxu0
  %v5952 = vadd.f32 %v5779, %v5951
  %v5953 = vpop.f32.mrb[0].mxu0
  %v5954 = vadd.f32 %v5781, %v5953
  %v5955 = vpop.f32.mrb[0].mxu0
  %v5956 = vadd.f32 %v5783, %v5955
  %v5957 = vpop.f32.mrb[0].mxu0
  %v5958 = vadd.f32 %v5785, %v5957
  %5959 = vmatprep.mubr.bf16.mxu0 0
  %5960 = vmatmul.mubr.bf16.gmra.mrb[0].mxu0 %v5007
  %v5961 = vpop.f32.mrb[0].mxu0
  %v5962 = vadd.f32 %v5789, %v5961
  %v5963 = vpop.f32.mrb[0].mxu0
  %v5964 = vadd.f32 %v5791, %v5963
  %v5965 = vpop.f32.mrb[0].mxu0
  %v5966 = vadd.f32 %v5793, %v5965
  %v5967 = vpop.f32.mrb[0].mxu0
  %v5968 = vadd.f32 %v5795, %v5967
  %5969 = vmatprep.mubr.bf16.mxu0 0
  %5970 = vmatmul.mubr.bf16.gmra.mrb[0].mxu0 %v5010
  %v5971 = vpop.f32.mrb[0].mxu0
  %v5972 = vadd.f32 %v5799, %v5971
  %v5973 = vpop.f32.mrb[0].mxu0
  %v5974 = vadd.f32 %v5801, %v5973
  %v5975 = vpop.f32.mrb[0].mxu0
  %v5976 = vadd.f32 %v5803, %v5975
  %v5977 = vpop.f32.mrb[0].mxu0
  %v5978 = vadd.f32 %v5805, %v5977
  %5979 = vmatprep.mubr.bf16.mxu0 0
  %5980 = vmatmul.mubr.bf16.gmra.mrb[0].mxu0 %v5013
  %v5981 = vpop.f32.mrb[0].mxu0
  %v5982 = vadd.f32 %v5809, %v5981
  %v5983 = vpop.f32.mrb[0].mxu0
  %v5984 = vadd.f32 %v5811, %v5983
  %v5985 = vpop.f32.mrb[0].mxu0
  %v5986 = vadd.f32 %v5813, %v5985
  %v5987 = vpop.f32.mrb[0].mxu0
  %v5988 = vadd.f32 %v5815, %v5987
  %5989 = vmatprep.mubr.bf16.mxu0 0
  %5990 = vmatmul.mubr.bf16.gmra.mrb[0].mxu0 %v5016
  %v5991 = vpop.f32.mrb[0].mxu0
  %v5992 = vadd.f32 %v5819, %v5991
  %v5993 = vpop.f32.mrb[0].mxu0
  %v5994 = vadd.f32 %v5821, %v5993
  %v5995 = vpop.f32.mrb[0].mxu0
  %v5996 = vadd.f32 %v5823, %v5995
  %v5997 = vpop.f32.mrb[0].mxu0
  %v5998 = vadd.f32 %v5825, %v5997
  %5999 = vmatprep.mubr.bf16.mxu0 0
  %6000 = vmatmul.mubr.bf16.gmra.mrb[0].mxu0 %v5019
  %v6001 = vpop.f32.mrb[0].mxu0
  %v6002 = vadd.f32 %v5829, %v6001
  %v6003 = vpop.f32.mrb[0].mxu0
  %v6004 = vadd.f32 %v5831, %v6003
  %v6005 = vpop.f32.mrb[0].mxu0
  %v6006 = vadd.f32 %v5833, %v6005
  %v6007 = vpop.f32.mrb[0].mxu0
  %v6008 = vadd.f32 %v5835, %v6007
  %6009 = vmatprep.mubr.bf16.mxu0 0
  %6010 = vmatmul.mubr.bf16.gmra.mrb[0].mxu0 %v5022
  %v6011 = vpop.f32.mrb[0].mxu0
  %v6012 = vadd.f32 %v5839, %v6011
  %v6013 = vpop.f32.mrb[0].mxu0
  %v6014 = vadd.f32 %v5841, %v6013
  %v6015 = vpop.f32.mrb[0].mxu0
  %v6016 = vadd.f32 %v5843, %v6015
  %v6017 = vpop.f32.mrb[0].mxu0
  %v6018 = vadd.f32 %v5845, %v6017
  %6019 = vmatprep.mubr.bf16.mxu0 0
  %6020 = vmatmul.mubr.bf16.gmra.mrb[0].mxu0 %v5025
  %v6021 = vpop.f32.mrb[0].mxu0
  %v6022 = vadd.f32 %v5849, %v6021
  %v6023 = vpop.f32.mrb[0].mxu0
  %v6024 = vadd.f32 %v5851, %v6023
  %v6025 = vpop.f32.mrb[0].mxu0
  %v6026 = vadd.f32 %v5853, %v6025
  %v6027 = vpop.f32.mrb[0].mxu0
  %v6028 = vadd.f32 %v5855, %v6027
  %6029 = vmatprep.mubr.bf16.mxu0 0
  %6030 = vmatmul.mubr.bf16.gmra.mrb[0].mxu0 %v5028
  %v6031 = vpop.f32.mrb[0].mxu0
  %v6032 = vadd.f32 %v5859, %v6031
  %v6033 = vpop.f32.mrb[0].mxu0
  %v6034 = vadd.f32 %v5861, %v6033
  %v6035 = vpop.f32.mrb[0].mxu0
  %v6036 = vadd.f32 %v5863, %v6035
  %v6037 = vpop.f32.mrb[0].mxu0
  %v6038 = vadd.f32 %v5865, %v6037
  %6039 = vmatprep.mubr.bf16.mxu0 0
  %6040 = vmatmul.mubr.bf16.gmra.mrb[0].mxu0 %v5031
  %v6041 = vpop.f32.mrb[0].mxu0
  %v6042 = vadd.f32 %v5869, %v6041
  %v6043 = vpop.f32.mrb[0].mxu0
  %v6044 = vadd.f32 %v5871, %v6043
  %v6045 = vpop.f32.mrb[0].mxu0
  %v6046 = vadd.f32 %v5873, %v6045
  %v6047 = vpop.f32.mrb[0].mxu0
  %v6048 = vadd.f32 %v5875, %v6047
  %6049 = vmatprep.mubr.bf16.mxu0 0
  %6050 = vmatmul.mubr.bf16.gmra.mrb[0].mxu0 %v5034
  %v6051 = vpop.f32.mrb[0].mxu0
  %v6052 = vadd.f32 %v5879, %v6051
  %v6053 = vpop.f32.mrb[0].mxu0
  %v6054 = vadd.f32 %v5881, %v6053
  %v6055 = vpop.f32.mrb[0].mxu0
  %v6056 = vadd.f32 %v5883, %v6055
  %v6057 = vpop.f32.mrb[0].mxu0
  %v6058 = vadd.f32 %v5885, %v6057
  %6059 = vmatprep.mubr.bf16.mxu0 0
  %6060 = vmatmul.mubr.bf16.gmra.mrb[0].mxu0 %v5037
  %v6061 = vpop.f32.mrb[0].mxu0
  %v6062 = vadd.f32 %v5889, %v6061
  %v6063 = vpop.f32.mrb[0].mxu0
  %v6064 = vadd.f32 %v5891, %v6063
  %v6065 = vpop.f32.mrb[0].mxu0
  %v6066 = vadd.f32 %v5893, %v6065
  %v6067 = vpop.f32.mrb[0].mxu0
  %v6068 = vadd.f32 %v5895, %v6067
  %6069 = vmatprep.mubr.bf16.mxu0 0
  %6070 = vmatmul.mubr.bf16.gmra.mrb[0].mxu0 %v5040
  %v6071 = vpop.f32.mrb[0].mxu0
  %v6072 = vadd.f32 %v5899, %v6071
  %v6073 = vpop.f32.mrb[0].mxu0
  %v6074 = vadd.f32 %v5901, %v6073
  %v6075 = vpop.f32.mrb[0].mxu0
  %v6076 = vadd.f32 %v5903, %v6075
  %v6077 = vpop.f32.mrb[0].mxu0
  %v6078 = vadd.f32 %v5905, %v6077
  %6079 = vdwg.mxu0
  %6080 = vst [vmem:[%s5] sm:$0xff] %v5942
  %vm6081 = vcmask 556032
  %6082 = vst.msk [vmem:[%s5 + $0x8] sm:$0xff] %vm6081, %v5944
  %6083 = vst [vmem:[%s5 + $0x10] sm:$0xff] %v5946
  %6084 = vst.msk [vmem:[%s5 + $0x18] sm:$0xff] %vm6081, %v5948
  %6085 = vst [vmem:[%s5 + $0x20] sm:$0xff] %v5952
  %6086 = vst.msk [vmem:[%s5 + $0x28] sm:$0xff] %vm6081, %v5954
  %6087 = vst [vmem:[%s5 + $0x30] sm:$0xff] %v5956
  %6088 = vst.msk [vmem:[%s5 + $0x38] sm:$0xff] %vm6081, %v5958
  %6089 = vst [vmem:[%s5 + $0x40] sm:$0xff] %v5962
  %6090 = vst.msk [vmem:[%s5 + $0x48] sm:$0xff] %vm6081, %v5964
  %6091 = vst [vmem:[%s5 + $0x50] sm:$0xff] %v5966
  %6092 = vst.msk [vmem:[%s5 + $0x58] sm:$0xff] %vm6081, %v5968
  %6093 = vst [vmem:[%s5 + $0x60] sm:$0xff] %v5972
  %6094 = vst.msk [vmem:[%s5 + $0x68] sm:$0xff] %vm6081, %v5974
  %6095 = vst [vmem:[%s5 + $0x70] sm:$0xff] %v5976
  %6096 = vst.msk [vmem:[%s5 + $0x78] sm:$0xff] %vm6081, %v5978
  %6097 = vst [vmem:[%s5 + $0x80] sm:$0xff] %v5982
  %6098 = vst.msk [vmem:[%s5 + $0x88] sm:$0xff] %vm6081, %v5984
  %6099 = vst [vmem:[%s5 + $0x90] sm:$0xff] %v5986
  %6100 = vst.msk [vmem:[%s5 + $0x98] sm:$0xff] %vm6081, %v5988
  %6101 = vst [vmem:[%s5 + $0xa0] sm:$0xff] %v5992
  %6102 = vst.msk [vmem:[%s5 + $0xa8] sm:$0xff] %vm6081, %v5994
  %6103 = vst [vmem:[%s5 + $0xb0] sm:$0xff] %v5996
  %6104 = vst.msk [vmem:[%s5 + $0xb8] sm:$0xff] %vm6081, %v5998
  %6105 = vst [vmem:[%s5 + $0xc0] sm:$0xff] %v6002
  %6106 = vst.msk [vmem:[%s5 + $0xc8] sm:$0xff] %vm6081, %v6004
  %6107 = vst [vmem:[%s5 + $0xd0] sm:$0xff] %v6006
  %6108 = vst.msk [vmem:[%s5 + $0xd8] sm:$0xff] %vm6081, %v6008
  %6109 = vst [vmem:[%s5 + $0xe0] sm:$0xff] %v6012
  %6110 = vst.msk [vmem:[%s5 + $0xe8] sm:$0xff] %vm6081, %v6014
  %6111 = vst [vmem:[%s5 + $0xf0] sm:$0xff] %v6016
  %6112 = vst.msk [vmem:[%s5 + $0xf8] sm:$0xff] %vm6081, %v6018
  %6113 = vst [vmem:[%s5 + $0x100] sm:$0xff] %v6022
  %6114 = vst.msk [vmem:[%s5 + $0x108] sm:$0xff] %vm6081, %v6024
  %6115 = vst [vmem:[%s5 + $0x110] sm:$0xff] %v6026
  %6116 = vst.msk [vmem:[%s5 + $0x118] sm:$0xff] %vm6081, %v6028
  %6117 = vst [vmem:[%s5 + $0x120] sm:$0xff] %v6032
  %6118 = vst.msk [vmem:[%s5 + $0x128] sm:$0xff] %vm6081, %v6034
  %6119 = vst [vmem:[%s5 + $0x130] sm:$0xff] %v6036
  %6120 = vst.msk [vmem:[%s5 + $0x138] sm:$0xff] %vm6081, %v6038
  %6121 = vst [vmem:[%s5 + $0x140] sm:$0xff] %v6042
  %6122 = vst.msk [vmem:[%s5 + $0x148] sm:$0xff] %vm6081, %v6044
  %6123 = vst [vmem:[%s5 + $0x150] sm:$0xff] %v6046
  %6124 = vst.msk [vmem:[%s5 + $0x158] sm:$0xff] %vm6081, %v6048
  %6125 = vst [vmem:[%s5 + $0x160] sm:$0xff] %v6052
  %6126 = vst.msk [vmem:[%s5 + $0x168] sm:$0xff] %vm6081, %v6054
  %6127 = vst [vmem:[%s5 + $0x170] sm:$0xff] %v6056
  %6128 = vst.msk [vmem:[%s5 + $0x178] sm:$0xff] %vm6081, %v6058
  %6129 = vst [vmem:[%s5 + $0x180] sm:$0xff] %v6062
  %6130 = vst.msk [vmem:[%s5 + $0x188] sm:$0xff] %vm6081, %v6064
  %6131 = vst [vmem:[%s5 + $0x190] sm:$0xff] %v6066
  %6132 = vst.msk [vmem:[%s5 + $0x198] sm:$0xff] %vm6081, %v6068
  %6133 = vst [vmem:[%s5 + $0x1a0] sm:$0xff] %v6072
  %6134 = vst.msk [vmem:[%s5 + $0x1a8] sm:$0xff] %vm6081, %v6074
  %6135 = vst [vmem:[%s5 + $0x1b0] sm:$0xff] %v6076
  %6136 = vst.msk [vmem:[%s5 + $0x1b8] sm:$0xff] %vm6081, %v6078
  // Predicated region
  $region22: #{se_block.1} parent=0 // pred_check
    _
  $region23: #{se_block.1} parent=0 // pred_check_branch
    %6138 = sbr.rel (0) target = $region25
  $region24: #{se_block.1} parent=0 // pred_region
    _
  $region25: #{se_block.1} parent=0 // pred_fallthru
    _
  // Predicated region
  $region26: #{se_block.1} parent=0 // pred_check
    _
  $region27: #{se_block.1} parent=0 // pred_check_branch
    %6140 = sbr.rel (0) target = $region29
  $region28: #{se_block.1} parent=0 // pred_region
    _
  $region29: #{se_block.1} parent=0 // pred_fallthru
    _

</llo_original>
